<compile_context>
chip_gen: v5e
topology: v5e:2x2
jax: 0.10.0
libtpu: 0.0.40
codegen_flags: <defaults>
</compile_context>

<pallas_src>
import math
import jax
import jax.numpy as jnp
from jax.experimental import pallas as pl
from jax.experimental.pallas import tpu as pltpu

# ---- small, module-consistent hyperparameters -------------------------------
BATCH = 2
SEQ = 8
D_MODEL = 64
NHEAD = 4
NUM_LAYERS = 2          # kernel body is specialized to 2 layers (layer-1 weights prefetched)
DIM_FF = 128
DDEEP = 64
DCLASS = 20
LN_EPS = 1e-5
HEAD_PAD = 128          # lane-dense padded width of the classifier output
DH = D_MODEL // NHEAD   # head dim


# ---- in-kernel helpers -------------------------------------------------------
def _layer_norm(x, gamma, beta):
    # PyTorch LayerNorm: biased variance, eps inside sqrt.
    mean = jnp.mean(x, axis=-1, keepdims=True)
    var = jnp.mean((x - mean) ** 2, axis=-1, keepdims=True)
    return (x - mean) * jax.lax.rsqrt(var + LN_EPS) * gamma + beta


def _encoder_layer(h, wqkv, wo_heads, w1, w2, vecs):
    """One TransformerEncoderLayer (batch_first, norm_first=False, dropout=identity).

    h:        (B*S, D)  f32 activations
    wqkv:     (D, 3D)   bf16, head-major [Q_h|K_h|V_h]*H, Q columns pre-scaled by 1/sqrt(dh)
    wo_heads: (H, dh, D) bf16 out-projection, split per head
    w1/w2:    (D, F) / (F, D) bf16
    vecs:     (8, 3D)   f32 packed vectors (bqkv, b1, bo, g1, be1, b2, g2, be2)
    """
    B, S, D, H, dh = BATCH, SEQ, D_MODEL, NHEAD, DH
    bqkv = vecs[0:1, :]
    b1 = vecs[1:2, :DIM_FF]
    bo = vecs[2:3, :D]
    g1 = vecs[3:4, :D]
    be1 = vecs[4:5, :D]
    b2 = vecs[5:6, :D]
    g2 = vecs[6:7, :D]
    be2 = vecs[7:8, :D]

    # packed QKV projection: one wide MXU matmul (bf16 operands, f32 accumulate).
    qkv = jnp.dot(h.astype(jnp.bfloat16), wqkv,
                  preferred_element_type=jnp.float32) + bqkv            # (B*S, 3D)

    # attention: per-head contiguous 48-lane window, batched over B with 3-D einsums;
    # head outputs accumulated directly through W_o (no concat).
    attn = None
    for hd in range(H):                                                  # static unroll
        base = hd * 3 * dh
        win = qkv[:, base:base + 3 * dh]                                 # (B*S, 3*dh)
        qh = win[:, 0 * dh:1 * dh].reshape(B, S, dh).astype(jnp.bfloat16)
        kh = win[:, 1 * dh:2 * dh].reshape(B, S, dh).astype(jnp.bfloat16)
        vh = win[:, 2 * dh:3 * dh].reshape(B, S, dh).astype(jnp.bfloat16)
        s = jnp.einsum('bqd,bkd->bqk', qh, kh,
                       preferred_element_type=jnp.float32)               # scale pre-folded
        s = s - jnp.max(s, axis=-1, keepdims=True)
        p = jnp.exp(s)
        p = p * pl.reciprocal(jnp.sum(p, axis=-1, keepdims=True), approx=True)
        o = jnp.einsum('bqk,bkd->bqd', p.astype(jnp.bfloat16), vh,
                       preferred_element_type=jnp.float32)               # (B, S, dh)
        contrib = jnp.dot(o.reshape(B * S, dh).astype(jnp.bfloat16), wo_heads[hd],
                          preferred_element_type=jnp.float32)            # (B*S, D)
        attn = contrib if attn is None else attn + contrib
    attn = attn + bo

    # residual + LayerNorm (norm_first=False); dropout == identity (eval mode)
    y = _layer_norm(h + attn, g1, be1)

    # feed-forward: Linear -> ReLU -> Linear
    ff = jnp.dot(y.astype(jnp.bfloat16), w1, preferred_element_type=jnp.float32) + b1
    ff = jnp.maximum(ff, 0.0)
    ff = jnp.dot(ff.astype(jnp.bfloat16), w2, preferred_element_type=jnp.float32) + b2
    return _layer_norm(y + ff, g2, be2)


# ---- fused Pallas kernel: PE add + both encoder layers + pool + MLP head -----
def fused_transformer_kernel(x_ref, pe_ref,
                             wqkv0_ref, wo0_ref, w10_ref, w20_ref, lvecs0_ref,
                             wqkv1_hbm, wo1_hbm, w11_hbm, w21_hbm, lvecs1_hbm,
                             wfc_ref, wfc2_ref, hvecs_ref,
                             out_ref,
                             wqkv1_s, wo1_s, w11_s, w21_s, lvecs1_s, dma_sems):
    B, S, D = BATCH, SEQ, D_MODEL

    # kick off layer-1 weight prefetch (HBM -> VMEM scratch); overlaps layer-0 compute.
    copies = (
        pltpu.make_async_copy(wqkv1_hbm, wqkv1_s, dma_sems.at[0]),
        pltpu.make_async_copy(wo1_hbm, wo1_s, dma_sems.at[1]),
        pltpu.make_async_copy(w11_hbm, w11_s, dma_sems.at[2]),
        pltpu.make_async_copy(w21_hbm, w21_s, dma_sems.at[3]),
        pltpu.make_async_copy(lvecs1_hbm, lvecs1_s, dma_sems.at[4]),
    )
    for cp in copies:
        cp.start()

    # positional-encoding add; fold batch into the matmul row dimension.
    h = (x_ref[...] + pe_ref[...][None, :, :]).reshape(B * S, D)         # (B*S, D) f32

    # layer 0: weights already VMEM-resident via BlockSpec.
    h = _encoder_layer(h, wqkv0_ref[...], wo0_ref[...], w10_ref[...], w20_ref[...],
                       lvecs0_ref[...])

    # layer 1: wait for prefetched weights, then compute.
    for cp in copies:
        cp.wait()
    h = _encoder_layer(h, wqkv1_s[...], wo1_s[...], w11_s[...], w21_s[...],
                       lvecs1_s[...])

    # head: AdaptiveAvgPool1d(1) over sequence, then fc -> relu -> fc2 (lane-padded to 128).
    pooled = jnp.mean(h.reshape(B, S, D), axis=1)                        # (B, D)
    bfc = hvecs_ref[0:1, :DDEEP]
    bfc2 = hvecs_ref[1:2, :]
    z = jnp.dot(pooled.astype(jnp.bfloat16), wfc_ref[...],
                preferred_element_type=jnp.float32) + bfc
    z = jnp.maximum(z, 0.0)
    out_ref[...] = jnp.dot(z.astype(jnp.bfloat16), wfc2_ref[...],
                           preferred_element_type=jnp.float32) + bfc2


def transformer_block_forward(x, weights):
    (pe, wqkv0, wo0, w10, w20, lvecs0,
     wqkv1, wo1, w11, w21, lvecs1, wfc, wfc2, hvecs) = weights

    vmem = pl.BlockSpec(memory_space=pltpu.MemorySpace.VMEM)
    hbm = pl.BlockSpec(memory_space=pl.ANY)     # raw HBM ref; manually DMA'd in the kernel

    out_padded = pl.pallas_call(
        fused_transformer_kernel,
        out_shape=jax.ShapeDtypeStruct((x.shape[0], HEAD_PAD), jnp.float32),
        in_specs=[vmem, vmem,                        # x, pe
                  vmem, vmem, vmem, vmem, vmem,      # layer-0 weights (VMEM-resident)
                  hbm, hbm, hbm, hbm, hbm,           # layer-1 weights (prefetched manually)
                  vmem, vmem, vmem],                 # head weights
        out_specs=vmem,
        scratch_shapes=[
            pltpu.VMEM((D_MODEL, 3 * D_MODEL), jnp.bfloat16),   # wqkv1
            pltpu.VMEM((NHEAD, DH, D_MODEL), jnp.bfloat16),     # wo1 (per-head)
            pltpu.VMEM((D_MODEL, DIM_FF), jnp.bfloat16),        # w1_1
            pltpu.VMEM((DIM_FF, D_MODEL), jnp.bfloat16),        # w2_1
            pltpu.VMEM((8, 3 * D_MODEL), jnp.float32),          # lvecs1
            pltpu.SemaphoreType.DMA((5,)),
        ],
    )(x, pe, wqkv0, wo0, w10, w20, lvecs0,
      wqkv1, wo1, w11, w21, lvecs1, wfc, wfc2, hvecs)
    return out_padded[:, :DCLASS]


# ---- parameter construction (deterministic, synthetic) -----------------------
def positional_encoding(seq, d_model):
    position = jnp.arange(seq, dtype=jnp.float32)[:, None]
    div_term = jnp.exp(jnp.arange(0, d_model, 2, dtype=jnp.float32)
                       * -(math.log(10000.0) / d_model))
    pe = jnp.zeros((seq, d_model), jnp.float32)
    pe = pe.at[:, 0::2].set(jnp.sin(position * div_term))
    pe = pe.at[:, 1::2].set(jnp.cos(position * div_term))
    return pe                                                            # (S, D)


def init_params(key):
    def w(k, shape, scale=0.05):
        return (scale * jax.random.normal(k, shape)).astype(jnp.float32)

    def row3d(v):
        r = jnp.zeros((3 * D_MODEL,), jnp.float32)
        return r.at[:v.shape[0]].set(v)

    qk_scale = 1.0 / math.sqrt(DH)

    wqkv_l, wo_l, w1_l, w2_l, lvecs_l = [], [], [], [], []
    for _ in range(NUM_LAYERS):
        key, *ks = jax.random.split(key, 13)
        wq = w(ks[0], (D_MODEL, D_MODEL)) * qk_scale     # fold 1/sqrt(dh) into Q weights
        wk = w(ks[1], (D_MODEL, D_MODEL))
        wv = w(ks[2], (D_MODEL, D_MODEL))
        bq = w(ks[3], (D_MODEL,), 0.02) * qk_scale       # ... and into the Q bias
        bk = w(ks[4], (D_MODEL,), 0.02)
        bv = w(ks[5], (D_MODEL,), 0.02)
        wo = w(ks[6], (D_MODEL, D_MODEL))
        bo = w(ks[7], (D_MODEL,), 0.02)
        w1 = w(ks[8], (D_MODEL, DIM_FF))
        b1 = w(ks[9], (DIM_FF,), 0.02)
        w2 = w(ks[10], (DIM_FF, D_MODEL))
        b2 = w(ks[11], (D_MODEL,), 0.02)

        # head-major QKV packing: columns [Q_h | K_h | V_h] per head (contiguous 3*dh window)
        cols, bias = [], []
        for hd in range(NHEAD):
            sl = slice(hd * DH, (hd + 1) * DH)
            cols += [wq[:, sl], wk[:, sl], wv[:, sl]]
            bias += [bq[sl], bk[sl], bv[sl]]
        wqkv_l.append(jnp.concatenate(cols, axis=1).astype(jnp.bfloat16))     # (D, 3D)
        wo_l.append(wo.reshape(NHEAD, DH, D_MODEL).astype(jnp.bfloat16))      # (H, dh, D)
        w1_l.append(w1.astype(jnp.bfloat16))
        w2_l.append(w2.astype(jnp.bfloat16))

        # packed per-layer vectors (f32, prefix-aligned rows of a (8, 3D) tile):
        #  0: bqkv (full 3D, head-major)  1: b1  2: bo  3: ln1 g  4: ln1 b  5: b2  6: ln2 g  7: ln2 b
        lvecs_l.append(jnp.stack([
            jnp.concatenate(bias),
            row3d(b1),
            row3d(bo),
            row3d(jnp.ones((D_MODEL,), jnp.float32)),
            row3d(jnp.zeros((D_MODEL,), jnp.float32)),
            row3d(b2),
            row3d(jnp.ones((D_MODEL,), jnp.float32)),
            row3d(jnp.zeros((D_MODEL,), jnp.float32)),
        ]))

    key, kf1, kf2, kb1, kb2 = jax.random.split(key, 5)
    wfc = w(kf1, (D_MODEL, DDEEP)).astype(jnp.bfloat16)                   # fc (pre-transposed)
    wfc2 = jnp.pad(w(kf2, (DDEEP, DCLASS)),                               # fc2, lane-padded
                   ((0, 0), (0, HEAD_PAD - DCLASS))).astype(jnp.bfloat16)
    bfc = w(kb1, (DDEEP,), 0.02)
    bfc2 = w(kb2, (DCLASS,), 0.02)
    hvecs = jnp.zeros((2, HEAD_PAD), jnp.float32)
    hvecs = hvecs.at[0, :DDEEP].set(bfc)                                  # fc bias
    hvecs = hvecs.at[1, :DCLASS].set(bfc2)                                # fc2 bias

    pe = positional_encoding(SEQ, D_MODEL)                                # hoisted constant

    return (pe,
            wqkv_l[0], wo_l[0], w1_l[0], w2_l[0], lvecs_l[0],
            wqkv_l[1], wo_l[1], w1_l[1], w2_l[1], lvecs_l[1],
            wfc, wfc2, hvecs)


if __name__ == "__main__":
    key = jax.random.PRNGKey(0)
    k_x, k_p = jax.random.split(key)
    x = jax.random.normal(k_x, (BATCH, SEQ, D_MODEL), dtype=jnp.float32)
    weights = init_params(k_p)

    out = transformer_block_forward(x, weights)
    out = jax.block_until_ready(out)
    assert out.shape == (BATCH, DCLASS), out.shape
    assert jnp.all(jnp.isfinite(out))
    print("KERNEL_OK")
</pallas_src>

<mosaic_0001>
module attributes {stable_mosaic.version = 11 : i64} {
  func.func @fused_transformer_kernel(%arg0: memref<2x8x64xf32, #tpu.memory_space<vmem>>, %arg1: memref<8x64xf32, #tpu.memory_space<vmem>>, %arg2: memref<64x192xbf16, #tpu.memory_space<vmem>>, %arg3: memref<4x16x64xbf16, #tpu.memory_space<vmem>>, %arg4: memref<64x128xbf16, #tpu.memory_space<vmem>>, %arg5: memref<128x64xbf16, #tpu.memory_space<vmem>>, %arg6: memref<8x192xf32, #tpu.memory_space<vmem>>, %arg7: memref<64x192xbf16, #tpu.memory_space<any>>, %arg8: memref<4x16x64xbf16, #tpu.memory_space<any>>, %arg9: memref<64x128xbf16, #tpu.memory_space<any>>, %arg10: memref<128x64xbf16, #tpu.memory_space<any>>, %arg11: memref<8x192xf32, #tpu.memory_space<any>>, %arg12: memref<64x64xbf16, #tpu.memory_space<vmem>>, %arg13: memref<64x128xbf16, #tpu.memory_space<vmem>>, %arg14: memref<2x128xf32, #tpu.memory_space<vmem>>, %arg15: memref<2x128xf32, #tpu.memory_space<vmem>>, %arg16: memref<64x192xbf16, #tpu.memory_space<vmem>>, %arg17: memref<4x16x64xbf16, #tpu.memory_space<vmem>>, %arg18: memref<64x128xbf16, #tpu.memory_space<vmem>>, %arg19: memref<128x64xbf16, #tpu.memory_space<vmem>>, %arg20: memref<8x192xf32, #tpu.memory_space<vmem>>, %arg21: memref<5x!tpu.dma_semaphore, #tpu.memory_space<semaphore_mem>>) attributes {dimension_semantics = [], scalar_prefetch = 0 : i64, scratch_operands = 6 : i64, tpu.core_type = #tpu.core_type<tc>} {
    %c0_i32 = arith.constant 0 : i32
    %0 = tpu.memref_slice %arg21[%c0_i32] : memref<5x!tpu.dma_semaphore, #tpu.memory_space<semaphore_mem>> -> memref<1x!tpu.dma_semaphore, #tpu.memory_space<semaphore_mem>>
    %1 = tpu.memref_squeeze %0 : memref<1x!tpu.dma_semaphore, #tpu.memory_space<semaphore_mem>> -> memref<!tpu.dma_semaphore, #tpu.memory_space<semaphore_mem>>
    tpu.enqueue_dma source(%arg7 : memref<64x192xbf16, #tpu.memory_space<any>>) target(%arg16 : memref<64x192xbf16, #tpu.memory_space<vmem>>) target_semaphore(%1 : memref<!tpu.dma_semaphore, #tpu.memory_space<semaphore_mem>>)
    %c1_i32 = arith.constant 1 : i32
    %2 = tpu.memref_slice %arg21[%c1_i32] : memref<5x!tpu.dma_semaphore, #tpu.memory_space<semaphore_mem>> -> memref<1x!tpu.dma_semaphore, #tpu.memory_space<semaphore_mem>>
    %3 = tpu.memref_squeeze %2 : memref<1x!tpu.dma_semaphore, #tpu.memory_space<semaphore_mem>> -> memref<!tpu.dma_semaphore, #tpu.memory_space<semaphore_mem>>
    tpu.enqueue_dma source(%arg8 : memref<4x16x64xbf16, #tpu.memory_space<any>>) target(%arg17 : memref<4x16x64xbf16, #tpu.memory_space<vmem>>) target_semaphore(%3 : memref<!tpu.dma_semaphore, #tpu.memory_space<semaphore_mem>>)
    %c2_i32 = arith.constant 2 : i32
    %4 = tpu.memref_slice %arg21[%c2_i32] : memref<5x!tpu.dma_semaphore, #tpu.memory_space<semaphore_mem>> -> memref<1x!tpu.dma_semaphore, #tpu.memory_space<semaphore_mem>>
    %5 = tpu.memref_squeeze %4 : memref<1x!tpu.dma_semaphore, #tpu.memory_space<semaphore_mem>> -> memref<!tpu.dma_semaphore, #tpu.memory_space<semaphore_mem>>
    tpu.enqueue_dma source(%arg9 : memref<64x128xbf16, #tpu.memory_space<any>>) target(%arg18 : memref<64x128xbf16, #tpu.memory_space<vmem>>) target_semaphore(%5 : memref<!tpu.dma_semaphore, #tpu.memory_space<semaphore_mem>>)
    %c3_i32 = arith.constant 3 : i32
    %6 = tpu.memref_slice %arg21[%c3_i32] : memref<5x!tpu.dma_semaphore, #tpu.memory_space<semaphore_mem>> -> memref<1x!tpu.dma_semaphore, #tpu.memory_space<semaphore_mem>>
    %7 = tpu.memref_squeeze %6 : memref<1x!tpu.dma_semaphore, #tpu.memory_space<semaphore_mem>> -> memref<!tpu.dma_semaphore, #tpu.memory_space<semaphore_mem>>
    tpu.enqueue_dma source(%arg10 : memref<128x64xbf16, #tpu.memory_space<any>>) target(%arg19 : memref<128x64xbf16, #tpu.memory_space<vmem>>) target_semaphore(%7 : memref<!tpu.dma_semaphore, #tpu.memory_space<semaphore_mem>>)
    %c4_i32 = arith.constant 4 : i32
    %8 = tpu.memref_slice %arg21[%c4_i32] : memref<5x!tpu.dma_semaphore, #tpu.memory_space<semaphore_mem>> -> memref<1x!tpu.dma_semaphore, #tpu.memory_space<semaphore_mem>>
    %9 = tpu.memref_squeeze %8 : memref<1x!tpu.dma_semaphore, #tpu.memory_space<semaphore_mem>> -> memref<!tpu.dma_semaphore, #tpu.memory_space<semaphore_mem>>
    tpu.enqueue_dma source(%arg11 : memref<8x192xf32, #tpu.memory_space<any>>) target(%arg20 : memref<8x192xf32, #tpu.memory_space<vmem>>) target_semaphore(%9 : memref<!tpu.dma_semaphore, #tpu.memory_space<semaphore_mem>>)
    %c0 = arith.constant 0 : index
    %c0_0 = arith.constant 0 : index
    %c0_1 = arith.constant 0 : index
    %10 = vector.load %arg0[%c0, %c0_0, %c0_1] : memref<2x8x64xf32, #tpu.memory_space<vmem>>, vector<2x8x64xf32>
    %c0_2 = arith.constant 0 : index
    %c0_3 = arith.constant 0 : index
    %11 = vector.load %arg1[%c0_2, %c0_3] : memref<8x64xf32, #tpu.memory_space<vmem>>, vector<8x64xf32>
    %12 = vector.shape_cast %11 : vector<8x64xf32> to vector<1x8x64xf32>
    %13 = vector.broadcast %12 : vector<1x8x64xf32> to vector<2x8x64xf32>
    %14 = arith.addf %10, %13 : vector<2x8x64xf32>
    %15 = vector.shape_cast %14 : vector<2x8x64xf32> to vector<16x64xf32>
    %c0_4 = arith.constant 0 : index
    %c0_5 = arith.constant 0 : index
    %16 = vector.load %arg2[%c0_4, %c0_5] : memref<64x192xbf16, #tpu.memory_space<vmem>>, vector<64x192xbf16>
    %c0_6 = arith.constant 0 : index
    %c0_7 = arith.constant 0 : index
    %c0_8 = arith.constant 0 : index
    %17 = vector.load %arg3[%c0_6, %c0_7, %c0_8] : memref<4x16x64xbf16, #tpu.memory_space<vmem>>, vector<4x16x64xbf16>
    %c0_9 = arith.constant 0 : index
    %c0_10 = arith.constant 0 : index
    %18 = vector.load %arg4[%c0_9, %c0_10] : memref<64x128xbf16, #tpu.memory_space<vmem>>, vector<64x128xbf16>
    %c0_11 = arith.constant 0 : index
    %c0_12 = arith.constant 0 : index
    %19 = vector.load %arg5[%c0_11, %c0_12] : memref<128x64xbf16, #tpu.memory_space<vmem>>, vector<128x64xbf16>
    %c0_13 = arith.constant 0 : index
    %c0_14 = arith.constant 0 : index
    %20 = vector.load %arg6[%c0_13, %c0_14] : memref<8x192xf32, #tpu.memory_space<vmem>>, vector<8x192xf32>
    %21 = vector.extract_strided_slice %20 {offsets = [0, 0], sizes = [1, 192], strides = [1, 1]} : vector<8x192xf32> to vector<1x192xf32>
    %22 = vector.extract_strided_slice %20 {offsets = [1, 0], sizes = [1, 128], strides = [1, 1]} : vector<8x192xf32> to vector<1x128xf32>
    %23 = vector.extract_strided_slice %20 {offsets = [2, 0], sizes = [1, 64], strides = [1, 1]} : vector<8x192xf32> to vector<1x64xf32>
    %24 = vector.extract_strided_slice %20 {offsets = [3, 0], sizes = [1, 64], strides = [1, 1]} : vector<8x192xf32> to vector<1x64xf32>
    %25 = vector.extract_strided_slice %20 {offsets = [4, 0], sizes = [1, 64], strides = [1, 1]} : vector<8x192xf32> to vector<1x64xf32>
    %26 = vector.extract_strided_slice %20 {offsets = [5, 0], sizes = [1, 64], strides = [1, 1]} : vector<8x192xf32> to vector<1x64xf32>
    %27 = vector.extract_strided_slice %20 {offsets = [6, 0], sizes = [1, 64], strides = [1, 1]} : vector<8x192xf32> to vector<1x64xf32>
    %28 = vector.extract_strided_slice %20 {offsets = [7, 0], sizes = [1, 64], strides = [1, 1]} : vector<8x192xf32> to vector<1x64xf32>
    %29 = arith.truncf %15 : vector<16x64xf32> to vector<16x64xbf16>
    %cst = arith.constant dense<0.000000e+00> : vector<16x192xf32>
    %30 = tpu.matmul %29, %16, %cst {dimension_numbers = #tpu.dot_dimension_numbers<[1], [0], [0], [1], [0, 0, 1, 1], [], []>} : vector<16x64xbf16>, vector<64x192xbf16>, vector<16x192xf32> -> vector<16x192xf32>
    %31 = vector.broadcast %21 : vector<1x192xf32> to vector<16x192xf32>
    %32 = arith.addf %30, %31 : vector<16x192xf32>
    %33 = vector.extract_strided_slice %32 {offsets = [0, 0], sizes = [16, 48], strides = [1, 1]} : vector<16x192xf32> to vector<16x48xf32>
    %34 = vector.extract_strided_slice %33 {offsets = [0, 0], sizes = [16, 16], strides = [1, 1]} : vector<16x48xf32> to vector<16x16xf32>
    %35 = vector.shape_cast %34 : vector<16x16xf32> to vector<2x8x16xf32>
    %36 = arith.truncf %35 : vector<2x8x16xf32> to vector<2x8x16xbf16>
    %37 = vector.extract_strided_slice %33 {offsets = [0, 16], sizes = [16, 16], strides = [1, 1]} : vector<16x48xf32> to vector<16x16xf32>
    %38 = vector.shape_cast %37 : vector<16x16xf32> to vector<2x8x16xf32>
    %39 = arith.truncf %38 : vector<2x8x16xf32> to vector<2x8x16xbf16>
    %40 = vector.extract_strided_slice %33 {offsets = [0, 32], sizes = [16, 16], strides = [1, 1]} : vector<16x48xf32> to vector<16x16xf32>
    %41 = vector.shape_cast %40 : vector<16x16xf32> to vector<2x8x16xf32>
    %42 = arith.truncf %41 : vector<2x8x16xf32> to vector<2x8x16xbf16>
    "tpu.trace_start"() <{level = 10 : i32, message = "bqd,bkd->bqk"}> : () -> ()
    %cst_15 = arith.constant dense<0.000000e+00> : vector<2x8x8xf32>
    %43 = tpu.matmul %36, %39, %cst_15 {dimension_numbers = #tpu.dot_dimension_numbers<[2], [2], [1], [1], [0, 0, 0, 1, 1, 1], [0], [0]>} : vector<2x8x16xbf16>, vector<2x8x16xbf16>, vector<2x8x8xf32> -> vector<2x8x8xf32>
    "tpu.trace_stop"() : () -> ()
    %cst_16 = arith.constant dense<0xFF800000> : vector<2x8xf32>
    %44 = vector.multi_reduction <maximumf>, %43, %cst_16 [2] : vector<2x8x8xf32> to vector<2x8xf32>
    %45 = vector.shape_cast %44 : vector<2x8xf32> to vector<2x8x1xf32>
    %46 = vector.broadcast %45 : vector<2x8x1xf32> to vector<2x8x8xf32>
    %47 = arith.subf %43, %46 : vector<2x8x8xf32>
    %48 = math.exp %47 : vector<2x8x8xf32>
    %cst_17 = arith.constant dense<0.000000e+00> : vector<2x8xf32>
    %49 = vector.multi_reduction <add>, %48, %cst_17 [2] : vector<2x8x8xf32> to vector<2x8xf32>
    %50 = vector.shape_cast %49 : vector<2x8xf32> to vector<2x8x1xf32>
    %51 = tpu.reciprocal %50 {approx = true} : vector<2x8x1xf32> -> vector<2x8x1xf32>
    %52 = vector.broadcast %51 : vector<2x8x1xf32> to vector<2x8x8xf32>
    %53 = arith.mulf %48, %52 : vector<2x8x8xf32>
    %54 = arith.truncf %53 : vector<2x8x8xf32> to vector<2x8x8xbf16>
    "tpu.trace_start"() <{level = 10 : i32, message = "bqk,bkd->bqd"}> : () -> ()
    %cst_18 = arith.constant dense<0.000000e+00> : vector<2x8x16xf32>
    %55 = tpu.matmul %54, %42, %cst_18 {dimension_numbers = #tpu.dot_dimension_numbers<[2], [1], [1], [2], [0, 0, 0, 1, 1, 2], [0], [0]>} : vector<2x8x8xbf16>, vector<2x8x16xbf16>, vector<2x8x16xf32> -> vector<2x8x16xf32>
    "tpu.trace_stop"() : () -> ()
    %56 = vector.shape_cast %55 : vector<2x8x16xf32> to vector<16x16xf32>
    %57 = arith.truncf %56 : vector<16x16xf32> to vector<16x16xbf16>
    %58 = vector.extract_strided_slice %17 {offsets = [0, 0, 0], sizes = [1, 16, 64], strides = [1, 1, 1]} : vector<4x16x64xbf16> to vector<1x16x64xbf16>
    %59 = vector.shape_cast %58 : vector<1x16x64xbf16> to vector<16x64xbf16>
    %cst_19 = arith.constant dense<0.000000e+00> : vector<16x64xf32>
    %60 = tpu.matmul %57, %59, %cst_19 {dimension_numbers = #tpu.dot_dimension_numbers<[1], [0], [0], [1], [0, 0, 1, 1], [], []>} : vector<16x16xbf16>, vector<16x64xbf16>, vector<16x64xf32> -> vector<16x64xf32>
    %61 = vector.extract_strided_slice %32 {offsets = [0, 48], sizes = [16, 48], strides = [1, 1]} : vector<16x192xf32> to vector<16x48xf32>
    %62 = vector.extract_strided_slice %61 {offsets = [0, 0], sizes = [16, 16], strides = [1, 1]} : vector<16x48xf32> to vector<16x16xf32>
    %63 = vector.shape_cast %62 : vector<16x16xf32> to vector<2x8x16xf32>
    %64 = arith.truncf %63 : vector<2x8x16xf32> to vector<2x8x16xbf16>
    %65 = vector.extract_strided_slice %61 {offsets = [0, 16], sizes = [16, 16], strides = [1, 1]} : vector<16x48xf32> to vector<16x16xf32>
    %66 = vector.shape_cast %65 : vector<16x16xf32> to vector<2x8x16xf32>
    %67 = arith.truncf %66 : vector<2x8x16xf32> to vector<2x8x16xbf16>
    %68 = vector.extract_strided_slice %61 {offsets = [0, 32], sizes = [16, 16], strides = [1, 1]} : vector<16x48xf32> to vector<16x16xf32>
    %69 = vector.shape_cast %68 : vector<16x16xf32> to vector<2x8x16xf32>
    %70 = arith.truncf %69 : vector<2x8x16xf32> to vector<2x8x16xbf16>
    "tpu.trace_start"() <{level = 10 : i32, message = "bqd,bkd->bqk"}> : () -> ()
    %cst_20 = arith.constant dense<0.000000e+00> : vector<2x8x8xf32>
    %71 = tpu.matmul %64, %67, %cst_20 {dimension_numbers = #tpu.dot_dimension_numbers<[2], [2], [1], [1], [0, 0, 0, 1, 1, 1], [0], [0]>} : vector<2x8x16xbf16>, vector<2x8x16xbf16>, vector<2x8x8xf32> -> vector<2x8x8xf32>
    "tpu.trace_stop"() : () -> ()
    %cst_21 = arith.constant dense<0xFF800000> : vector<2x8xf32>
    %72 = vector.multi_reduction <maximumf>, %71, %cst_21 [2] : vector<2x8x8xf32> to vector<2x8xf32>
    %73 = vector.shape_cast %72 : vector<2x8xf32> to vector<2x8x1xf32>
    %74 = vector.broadcast %73 : vector<2x8x1xf32> to vector<2x8x8xf32>
    %75 = arith.subf %71, %74 : vector<2x8x8xf32>
    %76 = math.exp %75 : vector<2x8x8xf32>
    %cst_22 = arith.constant dense<0.000000e+00> : vector<2x8xf32>
    %77 = vector.multi_reduction <add>, %76, %cst_22 [2] : vector<2x8x8xf32> to vector<2x8xf32>
    %78 = vector.shape_cast %77 : vector<2x8xf32> to vector<2x8x1xf32>
    %79 = tpu.reciprocal %78 {approx = true} : vector<2x8x1xf32> -> vector<2x8x1xf32>
    %80 = vector.broadcast %79 : vector<2x8x1xf32> to vector<2x8x8xf32>
    %81 = arith.mulf %76, %80 : vector<2x8x8xf32>
    %82 = arith.truncf %81 : vector<2x8x8xf32> to vector<2x8x8xbf16>
    "tpu.trace_start"() <{level = 10 : i32, message = "bqk,bkd->bqd"}> : () -> ()
    %cst_23 = arith.constant dense<0.000000e+00> : vector<2x8x16xf32>
    %83 = tpu.matmul %82, %70, %cst_23 {dimension_numbers = #tpu.dot_dimension_numbers<[2], [1], [1], [2], [0, 0, 0, 1, 1, 2], [0], [0]>} : vector<2x8x8xbf16>, vector<2x8x16xbf16>, vector<2x8x16xf32> -> vector<2x8x16xf32>
    "tpu.trace_stop"() : () -> ()
    %84 = vector.shape_cast %83 : vector<2x8x16xf32> to vector<16x16xf32>
    %85 = arith.truncf %84 : vector<16x16xf32> to vector<16x16xbf16>
    %86 = vector.extract_strided_slice %17 {offsets = [1, 0, 0], sizes = [1, 16, 64], strides = [1, 1, 1]} : vector<4x16x64xbf16> to vector<1x16x64xbf16>
    %87 = vector.shape_cast %86 : vector<1x16x64xbf16> to vector<16x64xbf16>
    %cst_24 = arith.constant dense<0.000000e+00> : vector<16x64xf32>
    %88 = tpu.matmul %85, %87, %cst_24 {dimension_numbers = #tpu.dot_dimension_numbers<[1], [0], [0], [1], [0, 0, 1, 1], [], []>} : vector<16x16xbf16>, vector<16x64xbf16>, vector<16x64xf32> -> vector<16x64xf32>
    %89 = arith.addf %60, %88 : vector<16x64xf32>
    %90 = vector.extract_strided_slice %32 {offsets = [0, 96], sizes = [16, 48], strides = [1, 1]} : vector<16x192xf32> to vector<16x48xf32>
    %91 = vector.extract_strided_slice %90 {offsets = [0, 0], sizes = [16, 16], strides = [1, 1]} : vector<16x48xf32> to vector<16x16xf32>
    %92 = vector.shape_cast %91 : vector<16x16xf32> to vector<2x8x16xf32>
    %93 = arith.truncf %92 : vector<2x8x16xf32> to vector<2x8x16xbf16>
    %94 = vector.extract_strided_slice %90 {offsets = [0, 16], sizes = [16, 16], strides = [1, 1]} : vector<16x48xf32> to vector<16x16xf32>
    %95 = vector.shape_cast %94 : vector<16x16xf32> to vector<2x8x16xf32>
    %96 = arith.truncf %95 : vector<2x8x16xf32> to vector<2x8x16xbf16>
    %97 = vector.extract_strided_slice %90 {offsets = [0, 32], sizes = [16, 16], strides = [1, 1]} : vector<16x48xf32> to vector<16x16xf32>
    %98 = vector.shape_cast %97 : vector<16x16xf32> to vector<2x8x16xf32>
    %99 = arith.truncf %98 : vector<2x8x16xf32> to vector<2x8x16xbf16>
    "tpu.trace_start"() <{level = 10 : i32, message = "bqd,bkd->bqk"}> : () -> ()
    %cst_25 = arith.constant dense<0.000000e+00> : vector<2x8x8xf32>
    %100 = tpu.matmul %93, %96, %cst_25 {dimension_numbers = #tpu.dot_dimension_numbers<[2], [2], [1], [1], [0, 0, 0, 1, 1, 1], [0], [0]>} : vector<2x8x16xbf16>, vector<2x8x16xbf16>, vector<2x8x8xf32> -> vector<2x8x8xf32>
    "tpu.trace_stop"() : () -> ()
    %cst_26 = arith.constant dense<0xFF800000> : vector<2x8xf32>
    %101 = vector.multi_reduction <maximumf>, %100, %cst_26 [2] : vector<2x8x8xf32> to vector<2x8xf32>
    %102 = vector.shape_cast %101 : vector<2x8xf32> to vector<2x8x1xf32>
    %103 = vector.broadcast %102 : vector<2x8x1xf32> to vector<2x8x8xf32>
    %104 = arith.subf %100, %103 : vector<2x8x8xf32>
    %105 = math.exp %104 : vector<2x8x8xf32>
    %cst_27 = arith.constant dense<0.000000e+00> : vector<2x8xf32>
    %106 = vector.multi_reduction <add>, %105, %cst_27 [2] : vector<2x8x8xf32> to vector<2x8xf32>
    %107 = vector.shape_cast %106 : vector<2x8xf32> to vector<2x8x1xf32>
    %108 = tpu.reciprocal %107 {approx = true} : vector<2x8x1xf32> -> vector<2x8x1xf32>
    %109 = vector.broadcast %108 : vector<2x8x1xf32> to vector<2x8x8xf32>
    %110 = arith.mulf %105, %109 : vector<2x8x8xf32>
    %111 = arith.truncf %110 : vector<2x8x8xf32> to vector<2x8x8xbf16>
    "tpu.trace_start"() <{level = 10 : i32, message = "bqk,bkd->bqd"}> : () -> ()
    %cst_28 = arith.constant dense<0.000000e+00> : vector<2x8x16xf32>
    %112 = tpu.matmul %111, %99, %cst_28 {dimension_numbers = #tpu.dot_dimension_numbers<[2], [1], [1], [2], [0, 0, 0, 1, 1, 2], [0], [0]>} : vector<2x8x8xbf16>, vector<2x8x16xbf16>, vector<2x8x16xf32> -> vector<2x8x16xf32>
    "tpu.trace_stop"() : () -> ()
    %113 = vector.shape_cast %112 : vector<2x8x16xf32> to vector<16x16xf32>
    %114 = arith.truncf %113 : vector<16x16xf32> to vector<16x16xbf16>
    %115 = vector.extract_strided_slice %17 {offsets = [2, 0, 0], sizes = [1, 16, 64], strides = [1, 1, 1]} : vector<4x16x64xbf16> to vector<1x16x64xbf16>
    %116 = vector.shape_cast %115 : vector<1x16x64xbf16> to vector<16x64xbf16>
    %cst_29 = arith.constant dense<0.000000e+00> : vector<16x64xf32>
    %117 = tpu.matmul %114, %116, %cst_29 {dimension_numbers = #tpu.dot_dimension_numbers<[1], [0], [0], [1], [0, 0, 1, 1], [], []>} : vector<16x16xbf16>, vector<16x64xbf16>, vector<16x64xf32> -> vector<16x64xf32>
    %118 = arith.addf %89, %117 : vector<16x64xf32>
    %119 = vector.extract_strided_slice %32 {offsets = [0, 144], sizes = [16, 48], strides = [1, 1]} : vector<16x192xf32> to vector<16x48xf32>
    %120 = vector.extract_strided_slice %119 {offsets = [0, 0], sizes = [16, 16], strides = [1, 1]} : vector<16x48xf32> to vector<16x16xf32>
    %121 = vector.shape_cast %120 : vector<16x16xf32> to vector<2x8x16xf32>
    %122 = arith.truncf %121 : vector<2x8x16xf32> to vector<2x8x16xbf16>
    %123 = vector.extract_strided_slice %119 {offsets = [0, 16], sizes = [16, 16], strides = [1, 1]} : vector<16x48xf32> to vector<16x16xf32>
    %124 = vector.shape_cast %123 : vector<16x16xf32> to vector<2x8x16xf32>
    %125 = arith.truncf %124 : vector<2x8x16xf32> to vector<2x8x16xbf16>
    %126 = vector.extract_strided_slice %119 {offsets = [0, 32], sizes = [16, 16], strides = [1, 1]} : vector<16x48xf32> to vector<16x16xf32>
    %127 = vector.shape_cast %126 : vector<16x16xf32> to vector<2x8x16xf32>
    %128 = arith.truncf %127 : vector<2x8x16xf32> to vector<2x8x16xbf16>
    "tpu.trace_start"() <{level = 10 : i32, message = "bqd,bkd->bqk"}> : () -> ()
    %cst_30 = arith.constant dense<0.000000e+00> : vector<2x8x8xf32>
    %129 = tpu.matmul %122, %125, %cst_30 {dimension_numbers = #tpu.dot_dimension_numbers<[2], [2], [1], [1], [0, 0, 0, 1, 1, 1], [0], [0]>} : vector<2x8x16xbf16>, vector<2x8x16xbf16>, vector<2x8x8xf32> -> vector<2x8x8xf32>
    "tpu.trace_stop"() : () -> ()
    %cst_31 = arith.constant dense<0xFF800000> : vector<2x8xf32>
    %130 = vector.multi_reduction <maximumf>, %129, %cst_31 [2] : vector<2x8x8xf32> to vector<2x8xf32>
    %131 = vector.shape_cast %130 : vector<2x8xf32> to vector<2x8x1xf32>
    %132 = vector.broadcast %131 : vector<2x8x1xf32> to vector<2x8x8xf32>
    %133 = arith.subf %129, %132 : vector<2x8x8xf32>
    %134 = math.exp %133 : vector<2x8x8xf32>
    %cst_32 = arith.constant dense<0.000000e+00> : vector<2x8xf32>
    %135 = vector.multi_reduction <add>, %134, %cst_32 [2] : vector<2x8x8xf32> to vector<2x8xf32>
    %136 = vector.shape_cast %135 : vector<2x8xf32> to vector<2x8x1xf32>
    %137 = tpu.reciprocal %136 {approx = true} : vector<2x8x1xf32> -> vector<2x8x1xf32>
    %138 = vector.broadcast %137 : vector<2x8x1xf32> to vector<2x8x8xf32>
    %139 = arith.mulf %134, %138 : vector<2x8x8xf32>
    %140 = arith.truncf %139 : vector<2x8x8xf32> to vector<2x8x8xbf16>
    "tpu.trace_start"() <{level = 10 : i32, message = "bqk,bkd->bqd"}> : () -> ()
    %cst_33 = arith.constant dense<0.000000e+00> : vector<2x8x16xf32>
    %141 = tpu.matmul %140, %128, %cst_33 {dimension_numbers = #tpu.dot_dimension_numbers<[2], [1], [1], [2], [0, 0, 0, 1, 1, 2], [0], [0]>} : vector<2x8x8xbf16>, vector<2x8x16xbf16>, vector<2x8x16xf32> -> vector<2x8x16xf32>
    "tpu.trace_stop"() : () -> ()
    %142 = vector.shape_cast %141 : vector<2x8x16xf32> to vector<16x16xf32>
    %143 = arith.truncf %142 : vector<16x16xf32> to vector<16x16xbf16>
    %144 = vector.extract_strided_slice %17 {offsets = [3, 0, 0], sizes = [1, 16, 64], strides = [1, 1, 1]} : vector<4x16x64xbf16> to vector<1x16x64xbf16>
    %145 = vector.shape_cast %144 : vector<1x16x64xbf16> to vector<16x64xbf16>
    %cst_34 = arith.constant dense<0.000000e+00> : vector<16x64xf32>
    %146 = tpu.matmul %143, %145, %cst_34 {dimension_numbers = #tpu.dot_dimension_numbers<[1], [0], [0], [1], [0, 0, 1, 1], [], []>} : vector<16x16xbf16>, vector<16x64xbf16>, vector<16x64xf32> -> vector<16x64xf32>
    %147 = arith.addf %118, %146 : vector<16x64xf32>
    %148 = vector.broadcast %23 : vector<1x64xf32> to vector<16x64xf32>
    %149 = arith.addf %147, %148 : vector<16x64xf32>
    %150 = arith.addf %15, %149 : vector<16x64xf32>
    %cst_35 = arith.constant dense<0.000000e+00> : vector<16xf32>
    %151 = vector.multi_reduction <add>, %150, %cst_35 [1] : vector<16x64xf32> to vector<16xf32>
    %152 = vector.shape_cast %151 : vector<16xf32> to vector<16x1xf32>
    %cst_36 = arith.constant 6.400000e+01 : f32
    %153 = vector.broadcast %cst_36 : f32 to vector<16x1xf32>
    %154 = arith.divf %152, %153 : vector<16x1xf32>
    %155 = vector.broadcast %154 : vector<16x1xf32> to vector<16x64xf32>
    %156 = arith.subf %150, %155 : vector<16x64xf32>
    %157 = arith.mulf %156, %156 : vector<16x64xf32>
    %cst_37 = arith.constant dense<0.000000e+00> : vector<16xf32>
    %158 = vector.multi_reduction <add>, %157, %cst_37 [1] : vector<16x64xf32> to vector<16xf32>
    %159 = vector.shape_cast %158 : vector<16xf32> to vector<16x1xf32>
    %cst_38 = arith.constant 6.400000e+01 : f32
    %160 = vector.broadcast %cst_38 : f32 to vector<16x1xf32>
    %161 = arith.divf %159, %160 : vector<16x1xf32>
    %162 = vector.broadcast %154 : vector<16x1xf32> to vector<16x64xf32>
    %163 = arith.subf %150, %162 : vector<16x64xf32>
    %cst_39 = arith.constant 9.99999974E-6 : f32
    %164 = vector.broadcast %cst_39 : f32 to vector<16x1xf32>
    %165 = arith.addf %161, %164 : vector<16x1xf32>
    %166 = math.rsqrt %165 : vector<16x1xf32>
    %167 = vector.broadcast %166 : vector<16x1xf32> to vector<16x64xf32>
    %168 = arith.mulf %163, %167 : vector<16x64xf32>
    %169 = vector.broadcast %24 : vector<1x64xf32> to vector<16x64xf32>
    %170 = arith.mulf %168, %169 : vector<16x64xf32>
    %171 = vector.broadcast %25 : vector<1x64xf32> to vector<16x64xf32>
    %172 = arith.addf %170, %171 : vector<16x64xf32>
    %173 = arith.truncf %172 : vector<16x64xf32> to vector<16x64xbf16>
    %cst_40 = arith.constant dense<0.000000e+00> : vector<16x128xf32>
    %174 = tpu.matmul %173, %18, %cst_40 {dimension_numbers = #tpu.dot_dimension_numbers<[1], [0], [0], [1], [0, 0, 1, 1], [], []>} : vector<16x64xbf16>, vector<64x128xbf16>, vector<16x128xf32> -> vector<16x128xf32>
    %175 = vector.broadcast %22 : vector<1x128xf32> to vector<16x128xf32>
    %176 = arith.addf %174, %175 : vector<16x128xf32>
    %cst_41 = arith.constant 0.000000e+00 : f32
    %177 = vector.broadcast %cst_41 : f32 to vector<16x128xf32>
    %178 = arith.maximumf %176, %177 : vector<16x128xf32>
    %179 = arith.truncf %178 : vector<16x128xf32> to vector<16x128xbf16>
    %cst_42 = arith.constant dense<0.000000e+00> : vector<16x64xf32>
    %180 = tpu.matmul %179, %19, %cst_42 {dimension_numbers = #tpu.dot_dimension_numbers<[1], [0], [0], [1], [0, 0, 1, 1], [], []>} : vector<16x128xbf16>, vector<128x64xbf16>, vector<16x64xf32> -> vector<16x64xf32>
    %181 = vector.broadcast %26 : vector<1x64xf32> to vector<16x64xf32>
    %182 = arith.addf %180, %181 : vector<16x64xf32>
    %183 = arith.addf %172, %182 : vector<16x64xf32>
    %cst_43 = arith.constant dense<0.000000e+00> : vector<16xf32>
    %184 = vector.multi_reduction <add>, %183, %cst_43 [1] : vector<16x64xf32> to vector<16xf32>
    %185 = vector.shape_cast %184 : vector<16xf32> to vector<16x1xf32>
    %cst_44 = arith.constant 6.400000e+01 : f32
    %186 = vector.broadcast %cst_44 : f32 to vector<16x1xf32>
    %187 = arith.divf %185, %186 : vector<16x1xf32>
    %188 = vector.broadcast %187 : vector<16x1xf32> to vector<16x64xf32>
    %189 = arith.subf %183, %188 : vector<16x64xf32>
    %190 = arith.mulf %189, %189 : vector<16x64xf32>
    %cst_45 = arith.constant dense<0.000000e+00> : vector<16xf32>
    %191 = vector.multi_reduction <add>, %190, %cst_45 [1] : vector<16x64xf32> to vector<16xf32>
    %192 = vector.shape_cast %191 : vector<16xf32> to vector<16x1xf32>
    %cst_46 = arith.constant 6.400000e+01 : f32
    %193 = vector.broadcast %cst_46 : f32 to vector<16x1xf32>
    %194 = arith.divf %192, %193 : vector<16x1xf32>
    %195 = vector.broadcast %187 : vector<16x1xf32> to vector<16x64xf32>
    %196 = arith.subf %183, %195 : vector<16x64xf32>
    %cst_47 = arith.constant 9.99999974E-6 : f32
    %197 = vector.broadcast %cst_47 : f32 to vector<16x1xf32>
    %198 = arith.addf %194, %197 : vector<16x1xf32>
    %199 = math.rsqrt %198 : vector<16x1xf32>
    %200 = vector.broadcast %199 : vector<16x1xf32> to vector<16x64xf32>
    %201 = arith.mulf %196, %200 : vector<16x64xf32>
    %202 = vector.broadcast %27 : vector<1x64xf32> to vector<16x64xf32>
    %203 = arith.mulf %201, %202 : vector<16x64xf32>
    %204 = vector.broadcast %28 : vector<1x64xf32> to vector<16x64xf32>
    %205 = arith.addf %203, %204 : vector<16x64xf32>
    %c0_i32_48 = arith.constant 0 : i32
    %206 = tpu.memref_slice %arg21[%c0_i32_48] : memref<5x!tpu.dma_semaphore, #tpu.memory_space<semaphore_mem>> -> memref<1x!tpu.dma_semaphore, #tpu.memory_space<semaphore_mem>>
    %207 = tpu.memref_squeeze %206 : memref<1x!tpu.dma_semaphore, #tpu.memory_space<semaphore_mem>> -> memref<!tpu.dma_semaphore, #tpu.memory_space<semaphore_mem>>
    tpu.wait_dma2 semaphore(%207 : memref<!tpu.dma_semaphore, #tpu.memory_space<semaphore_mem>>) src(%arg7 : memref<64x192xbf16, #tpu.memory_space<any>>) dst(%arg16 : memref<64x192xbf16, #tpu.memory_space<vmem>>)
    %c1_i32_49 = arith.constant 1 : i32
    %208 = tpu.memref_slice %arg21[%c1_i32_49] : memref<5x!tpu.dma_semaphore, #tpu.memory_space<semaphore_mem>> -> memref<1x!tpu.dma_semaphore, #tpu.memory_space<semaphore_mem>>
    %209 = tpu.memref_squeeze %208 : memref<1x!tpu.dma_semaphore, #tpu.memory_space<semaphore_mem>> -> memref<!tpu.dma_semaphore, #tpu.memory_space<semaphore_mem>>
    tpu.wait_dma2 semaphore(%209 : memref<!tpu.dma_semaphore, #tpu.memory_space<semaphore_mem>>) src(%arg8 : memref<4x16x64xbf16, #tpu.memory_space<any>>) dst(%arg17 : memref<4x16x64xbf16, #tpu.memory_space<vmem>>)
    %c2_i32_50 = arith.constant 2 : i32
    %210 = tpu.memref_slice %arg21[%c2_i32_50] : memref<5x!tpu.dma_semaphore, #tpu.memory_space<semaphore_mem>> -> memref<1x!tpu.dma_semaphore, #tpu.memory_space<semaphore_mem>>
    %211 = tpu.memref_squeeze %210 : memref<1x!tpu.dma_semaphore, #tpu.memory_space<semaphore_mem>> -> memref<!tpu.dma_semaphore, #tpu.memory_space<semaphore_mem>>
    tpu.wait_dma2 semaphore(%211 : memref<!tpu.dma_semaphore, #tpu.memory_space<semaphore_mem>>) src(%arg9 : memref<64x128xbf16, #tpu.memory_space<any>>) dst(%arg18 : memref<64x128xbf16, #tpu.memory_space<vmem>>)
    %c3_i32_51 = arith.constant 3 : i32
    %212 = tpu.memref_slice %arg21[%c3_i32_51] : memref<5x!tpu.dma_semaphore, #tpu.memory_space<semaphore_mem>> -> memref<1x!tpu.dma_semaphore, #tpu.memory_space<semaphore_mem>>
    %213 = tpu.memref_squeeze %212 : memref<1x!tpu.dma_semaphore, #tpu.memory_space<semaphore_mem>> -> memref<!tpu.dma_semaphore, #tpu.memory_space<semaphore_mem>>
    tpu.wait_dma2 semaphore(%213 : memref<!tpu.dma_semaphore, #tpu.memory_space<semaphore_mem>>) src(%arg10 : memref<128x64xbf16, #tpu.memory_space<any>>) dst(%arg19 : memref<128x64xbf16, #tpu.memory_space<vmem>>)
    %c4_i32_52 = arith.constant 4 : i32
    %214 = tpu.memref_slice %arg21[%c4_i32_52] : memref<5x!tpu.dma_semaphore, #tpu.memory_space<semaphore_mem>> -> memref<1x!tpu.dma_semaphore, #tpu.memory_space<semaphore_mem>>
    %215 = tpu.memref_squeeze %214 : memref<1x!tpu.dma_semaphore, #tpu.memory_space<semaphore_mem>> -> memref<!tpu.dma_semaphore, #tpu.memory_space<semaphore_mem>>
    tpu.wait_dma2 semaphore(%215 : memref<!tpu.dma_semaphore, #tpu.memory_space<semaphore_mem>>) src(%arg11 : memref<8x192xf32, #tpu.memory_space<any>>) dst(%arg20 : memref<8x192xf32, #tpu.memory_space<vmem>>)
    %c0_53 = arith.constant 0 : index
    %c0_54 = arith.constant 0 : index
    %216 = vector.load %arg16[%c0_53, %c0_54] : memref<64x192xbf16, #tpu.memory_space<vmem>>, vector<64x192xbf16>
    %c0_55 = arith.constant 0 : index
    %c0_56 = arith.constant 0 : index
    %c0_57 = arith.constant 0 : index
    %217 = vector.load %arg17[%c0_55, %c0_56, %c0_57] : memref<4x16x64xbf16, #tpu.memory_space<vmem>>, vector<4x16x64xbf16>
    %c0_58 = arith.constant 0 : index
    %c0_59 = arith.constant 0 : index
    %218 = vector.load %arg18[%c0_58, %c0_59] : memref<64x128xbf16, #tpu.memory_space<vmem>>, vector<64x128xbf16>
    %c0_60 = arith.constant 0 : index
    %c0_61 = arith.constant 0 : index
    %219 = vector.load %arg19[%c0_60, %c0_61] : memref<128x64xbf16, #tpu.memory_space<vmem>>, vector<128x64xbf16>
    %c0_62 = arith.constant 0 : index
    %c0_63 = arith.constant 0 : index
    %220 = vector.load %arg20[%c0_62, %c0_63] : memref<8x192xf32, #tpu.memory_space<vmem>>, vector<8x192xf32>
    %221 = vector.extract_strided_slice %220 {offsets = [0, 0], sizes = [1, 192], strides = [1, 1]} : vector<8x192xf32> to vector<1x192xf32>
    %222 = vector.extract_strided_slice %220 {offsets = [1, 0], sizes = [1, 128], strides = [1, 1]} : vector<8x192xf32> to vector<1x128xf32>
    %223 = vector.extract_strided_slice %220 {offsets = [2, 0], sizes = [1, 64], strides = [1, 1]} : vector<8x192xf32> to vector<1x64xf32>
    %224 = vector.extract_strided_slice %220 {offsets = [3, 0], sizes = [1, 64], strides = [1, 1]} : vector<8x192xf32> to vector<1x64xf32>
    %225 = vector.extract_strided_slice %220 {offsets = [4, 0], sizes = [1, 64], strides = [1, 1]} : vector<8x192xf32> to vector<1x64xf32>
    %226 = vector.extract_strided_slice %220 {offsets = [5, 0], sizes = [1, 64], strides = [1, 1]} : vector<8x192xf32> to vector<1x64xf32>
    %227 = vector.extract_strided_slice %220 {offsets = [6, 0], sizes = [1, 64], strides = [1, 1]} : vector<8x192xf32> to vector<1x64xf32>
    %228 = vector.extract_strided_slice %220 {offsets = [7, 0], sizes = [1, 64], strides = [1, 1]} : vector<8x192xf32> to vector<1x64xf32>
    %229 = arith.truncf %205 : vector<16x64xf32> to vector<16x64xbf16>
    %cst_64 = arith.constant dense<0.000000e+00> : vector<16x192xf32>
    %230 = tpu.matmul %229, %216, %cst_64 {dimension_numbers = #tpu.dot_dimension_numbers<[1], [0], [0], [1], [0, 0, 1, 1], [], []>} : vector<16x64xbf16>, vector<64x192xbf16>, vector<16x192xf32> -> vector<16x192xf32>
    %231 = vector.broadcast %221 : vector<1x192xf32> to vector<16x192xf32>
    %232 = arith.addf %230, %231 : vector<16x192xf32>
    %233 = vector.extract_strided_slice %232 {offsets = [0, 0], sizes = [16, 48], strides = [1, 1]} : vector<16x192xf32> to vector<16x48xf32>
    %234 = vector.extract_strided_slice %233 {offsets = [0, 0], sizes = [16, 16], strides = [1, 1]} : vector<16x48xf32> to vector<16x16xf32>
    %235 = vector.shape_cast %234 : vector<16x16xf32> to vector<2x8x16xf32>
    %236 = arith.truncf %235 : vector<2x8x16xf32> to vector<2x8x16xbf16>
    %237 = vector.extract_strided_slice %233 {offsets = [0, 16], sizes = [16, 16], strides = [1, 1]} : vector<16x48xf32> to vector<16x16xf32>
    %238 = vector.shape_cast %237 : vector<16x16xf32> to vector<2x8x16xf32>
    %239 = arith.truncf %238 : vector<2x8x16xf32> to vector<2x8x16xbf16>
    %240 = vector.extract_strided_slice %233 {offsets = [0, 32], sizes = [16, 16], strides = [1, 1]} : vector<16x48xf32> to vector<16x16xf32>
    %241 = vector.shape_cast %240 : vector<16x16xf32> to vector<2x8x16xf32>
    %242 = arith.truncf %241 : vector<2x8x16xf32> to vector<2x8x16xbf16>
    "tpu.trace_start"() <{level = 10 : i32, message = "bqd,bkd->bqk"}> : () -> ()
    %cst_65 = arith.constant dense<0.000000e+00> : vector<2x8x8xf32>
    %243 = tpu.matmul %236, %239, %cst_65 {dimension_numbers = #tpu.dot_dimension_numbers<[2], [2], [1], [1], [0, 0, 0, 1, 1, 1], [0], [0]>} : vector<2x8x16xbf16>, vector<2x8x16xbf16>, vector<2x8x8xf32> -> vector<2x8x8xf32>
    "tpu.trace_stop"() : () -> ()
    %cst_66 = arith.constant dense<0xFF800000> : vector<2x8xf32>
    %244 = vector.multi_reduction <maximumf>, %243, %cst_66 [2] : vector<2x8x8xf32> to vector<2x8xf32>
    %245 = vector.shape_cast %244 : vector<2x8xf32> to vector<2x8x1xf32>
    %246 = vector.broadcast %245 : vector<2x8x1xf32> to vector<2x8x8xf32>
    %247 = arith.subf %243, %246 : vector<2x8x8xf32>
    %248 = math.exp %247 : vector<2x8x8xf32>
    %cst_67 = arith.constant dense<0.000000e+00> : vector<2x8xf32>
    %249 = vector.multi_reduction <add>, %248, %cst_67 [2] : vector<2x8x8xf32> to vector<2x8xf32>
    %250 = vector.shape_cast %249 : vector<2x8xf32> to vector<2x8x1xf32>
    %251 = tpu.reciprocal %250 {approx = true} : vector<2x8x1xf32> -> vector<2x8x1xf32>
    %252 = vector.broadcast %251 : vector<2x8x1xf32> to vector<2x8x8xf32>
    %253 = arith.mulf %248, %252 : vector<2x8x8xf32>
    %254 = arith.truncf %253 : vector<2x8x8xf32> to vector<2x8x8xbf16>
    "tpu.trace_start"() <{level = 10 : i32, message = "bqk,bkd->bqd"}> : () -> ()
    %cst_68 = arith.constant dense<0.000000e+00> : vector<2x8x16xf32>
    %255 = tpu.matmul %254, %242, %cst_68 {dimension_numbers = #tpu.dot_dimension_numbers<[2], [1], [1], [2], [0, 0, 0, 1, 1, 2], [0], [0]>} : vector<2x8x8xbf16>, vector<2x8x16xbf16>, vector<2x8x16xf32> -> vector<2x8x16xf32>
    "tpu.trace_stop"() : () -> ()
    %256 = vector.shape_cast %255 : vector<2x8x16xf32> to vector<16x16xf32>
    %257 = arith.truncf %256 : vector<16x16xf32> to vector<16x16xbf16>
    %258 = vector.extract_strided_slice %217 {offsets = [0, 0, 0], sizes = [1, 16, 64], strides = [1, 1, 1]} : vector<4x16x64xbf16> to vector<1x16x64xbf16>
    %259 = vector.shape_cast %258 : vector<1x16x64xbf16> to vector<16x64xbf16>
    %cst_69 = arith.constant dense<0.000000e+00> : vector<16x64xf32>
    %260 = tpu.matmul %257, %259, %cst_69 {dimension_numbers = #tpu.dot_dimension_numbers<[1], [0], [0], [1], [0, 0, 1, 1], [], []>} : vector<16x16xbf16>, vector<16x64xbf16>, vector<16x64xf32> -> vector<16x64xf32>
    %261 = vector.extract_strided_slice %232 {offsets = [0, 48], sizes = [16, 48], strides = [1, 1]} : vector<16x192xf32> to vector<16x48xf32>
    %262 = vector.extract_strided_slice %261 {offsets = [0, 0], sizes = [16, 16], strides = [1, 1]} : vector<16x48xf32> to vector<16x16xf32>
    %263 = vector.shape_cast %262 : vector<16x16xf32> to vector<2x8x16xf32>
    %264 = arith.truncf %263 : vector<2x8x16xf32> to vector<2x8x16xbf16>
    %265 = vector.extract_strided_slice %261 {offsets = [0, 16], sizes = [16, 16], strides = [1, 1]} : vector<16x48xf32> to vector<16x16xf32>
    %266 = vector.shape_cast %265 : vector<16x16xf32> to vector<2x8x16xf32>
    %267 = arith.truncf %266 : vector<2x8x16xf32> to vector<2x8x16xbf16>
    %268 = vector.extract_strided_slice %261 {offsets = [0, 32], sizes = [16, 16], strides = [1, 1]} : vector<16x48xf32> to vector<16x16xf32>
    %269 = vector.shape_cast %268 : vector<16x16xf32> to vector<2x8x16xf32>
    %270 = arith.truncf %269 : vector<2x8x16xf32> to vector<2x8x16xbf16>
    "tpu.trace_start"() <{level = 10 : i32, message = "bqd,bkd->bqk"}> : () -> ()
    %cst_70 = arith.constant dense<0.000000e+00> : vector<2x8x8xf32>
    %271 = tpu.matmul %264, %267, %cst_70 {dimension_numbers = #tpu.dot_dimension_numbers<[2], [2], [1], [1], [0, 0, 0, 1, 1, 1], [0], [0]>} : vector<2x8x16xbf16>, vector<2x8x16xbf16>, vector<2x8x8xf32> -> vector<2x8x8xf32>
    "tpu.trace_stop"() : () -> ()
    %cst_71 = arith.constant dense<0xFF800000> : vector<2x8xf32>
    %272 = vector.multi_reduction <maximumf>, %271, %cst_71 [2] : vector<2x8x8xf32> to vector<2x8xf32>
    %273 = vector.shape_cast %272 : vector<2x8xf32> to vector<2x8x1xf32>
    %274 = vector.broadcast %273 : vector<2x8x1xf32> to vector<2x8x8xf32>
    %275 = arith.subf %271, %274 : vector<2x8x8xf32>
    %276 = math.exp %275 : vector<2x8x8xf32>
    %cst_72 = arith.constant dense<0.000000e+00> : vector<2x8xf32>
    %277 = vector.multi_reduction <add>, %276, %cst_72 [2] : vector<2x8x8xf32> to vector<2x8xf32>
    %278 = vector.shape_cast %277 : vector<2x8xf32> to vector<2x8x1xf32>
    %279 = tpu.reciprocal %278 {approx = true} : vector<2x8x1xf32> -> vector<2x8x1xf32>
    %280 = vector.broadcast %279 : vector<2x8x1xf32> to vector<2x8x8xf32>
    %281 = arith.mulf %276, %280 : vector<2x8x8xf32>
    %282 = arith.truncf %281 : vector<2x8x8xf32> to vector<2x8x8xbf16>
    "tpu.trace_start"() <{level = 10 : i32, message = "bqk,bkd->bqd"}> : () -> ()
    %cst_73 = arith.constant dense<0.000000e+00> : vector<2x8x16xf32>
    %283 = tpu.matmul %282, %270, %cst_73 {dimension_numbers = #tpu.dot_dimension_numbers<[2], [1], [1], [2], [0, 0, 0, 1, 1, 2], [0], [0]>} : vector<2x8x8xbf16>, vector<2x8x16xbf16>, vector<2x8x16xf32> -> vector<2x8x16xf32>
    "tpu.trace_stop"() : () -> ()
    %284 = vector.shape_cast %283 : vector<2x8x16xf32> to vector<16x16xf32>
    %285 = arith.truncf %284 : vector<16x16xf32> to vector<16x16xbf16>
    %286 = vector.extract_strided_slice %217 {offsets = [1, 0, 0], sizes = [1, 16, 64], strides = [1, 1, 1]} : vector<4x16x64xbf16> to vector<1x16x64xbf16>
    %287 = vector.shape_cast %286 : vector<1x16x64xbf16> to vector<16x64xbf16>
    %cst_74 = arith.constant dense<0.000000e+00> : vector<16x64xf32>
    %288 = tpu.matmul %285, %287, %cst_74 {dimension_numbers = #tpu.dot_dimension_numbers<[1], [0], [0], [1], [0, 0, 1, 1], [], []>} : vector<16x16xbf16>, vector<16x64xbf16>, vector<16x64xf32> -> vector<16x64xf32>
    %289 = arith.addf %260, %288 : vector<16x64xf32>
    %290 = vector.extract_strided_slice %232 {offsets = [0, 96], sizes = [16, 48], strides = [1, 1]} : vector<16x192xf32> to vector<16x48xf32>
    %291 = vector.extract_strided_slice %290 {offsets = [0, 0], sizes = [16, 16], strides = [1, 1]} : vector<16x48xf32> to vector<16x16xf32>
    %292 = vector.shape_cast %291 : vector<16x16xf32> to vector<2x8x16xf32>
    %293 = arith.truncf %292 : vector<2x8x16xf32> to vector<2x8x16xbf16>
    %294 = vector.extract_strided_slice %290 {offsets = [0, 16], sizes = [16, 16], strides = [1, 1]} : vector<16x48xf32> to vector<16x16xf32>
    %295 = vector.shape_cast %294 : vector<16x16xf32> to vector<2x8x16xf32>
    %296 = arith.truncf %295 : vector<2x8x16xf32> to vector<2x8x16xbf16>
    %297 = vector.extract_strided_slice %290 {offsets = [0, 32], sizes = [16, 16], strides = [1, 1]} : vector<16x48xf32> to vector<16x16xf32>
    %298 = vector.shape_cast %297 : vector<16x16xf32> to vector<2x8x16xf32>
    %299 = arith.truncf %298 : vector<2x8x16xf32> to vector<2x8x16xbf16>
    "tpu.trace_start"() <{level = 10 : i32, message = "bqd,bkd->bqk"}> : () -> ()
    %cst_75 = arith.constant dense<0.000000e+00> : vector<2x8x8xf32>
    %300 = tpu.matmul %293, %296, %cst_75 {dimension_numbers = #tpu.dot_dimension_numbers<[2], [2], [1], [1], [0, 0, 0, 1, 1, 1], [0], [0]>} : vector<2x8x16xbf16>, vector<2x8x16xbf16>, vector<2x8x8xf32> -> vector<2x8x8xf32>
    "tpu.trace_stop"() : () -> ()
    %cst_76 = arith.constant dense<0xFF800000> : vector<2x8xf32>
    %301 = vector.multi_reduction <maximumf>, %300, %cst_76 [2] : vector<2x8x8xf32> to vector<2x8xf32>
    %302 = vector.shape_cast %301 : vector<2x8xf32> to vector<2x8x1xf32>
    %303 = vector.broadcast %302 : vector<2x8x1xf32> to vector<2x8x8xf32>
    %304 = arith.subf %300, %303 : vector<2x8x8xf32>
    %305 = math.exp %304 : vector<2x8x8xf32>
    %cst_77 = arith.constant dense<0.000000e+00> : vector<2x8xf32>
    %306 = vector.multi_reduction <add>, %305, %cst_77 [2] : vector<2x8x8xf32> to vector<2x8xf32>
    %307 = vector.shape_cast %306 : vector<2x8xf32> to vector<2x8x1xf32>
    %308 = tpu.reciprocal %307 {approx = true} : vector<2x8x1xf32> -> vector<2x8x1xf32>
    %309 = vector.broadcast %308 : vector<2x8x1xf32> to vector<2x8x8xf32>
    %310 = arith.mulf %305, %309 : vector<2x8x8xf32>
    %311 = arith.truncf %310 : vector<2x8x8xf32> to vector<2x8x8xbf16>
    "tpu.trace_start"() <{level = 10 : i32, message = "bqk,bkd->bqd"}> : () -> ()
    %cst_78 = arith.constant dense<0.000000e+00> : vector<2x8x16xf32>
    %312 = tpu.matmul %311, %299, %cst_78 {dimension_numbers = #tpu.dot_dimension_numbers<[2], [1], [1], [2], [0, 0, 0, 1, 1, 2], [0], [0]>} : vector<2x8x8xbf16>, vector<2x8x16xbf16>, vector<2x8x16xf32> -> vector<2x8x16xf32>
    "tpu.trace_stop"() : () -> ()
    %313 = vector.shape_cast %312 : vector<2x8x16xf32> to vector<16x16xf32>
    %314 = arith.truncf %313 : vector<16x16xf32> to vector<16x16xbf16>
    %315 = vector.extract_strided_slice %217 {offsets = [2, 0, 0], sizes = [1, 16, 64], strides = [1, 1, 1]} : vector<4x16x64xbf16> to vector<1x16x64xbf16>
    %316 = vector.shape_cast %315 : vector<1x16x64xbf16> to vector<16x64xbf16>
    %cst_79 = arith.constant dense<0.000000e+00> : vector<16x64xf32>
    %317 = tpu.matmul %314, %316, %cst_79 {dimension_numbers = #tpu.dot_dimension_numbers<[1], [0], [0], [1], [0, 0, 1, 1], [], []>} : vector<16x16xbf16>, vector<16x64xbf16>, vector<16x64xf32> -> vector<16x64xf32>
    %318 = arith.addf %289, %317 : vector<16x64xf32>
    %319 = vector.extract_strided_slice %232 {offsets = [0, 144], sizes = [16, 48], strides = [1, 1]} : vector<16x192xf32> to vector<16x48xf32>
    %320 = vector.extract_strided_slice %319 {offsets = [0, 0], sizes = [16, 16], strides = [1, 1]} : vector<16x48xf32> to vector<16x16xf32>
    %321 = vector.shape_cast %320 : vector<16x16xf32> to vector<2x8x16xf32>
    %322 = arith.truncf %321 : vector<2x8x16xf32> to vector<2x8x16xbf16>
    %323 = vector.extract_strided_slice %319 {offsets = [0, 16], sizes = [16, 16], strides = [1, 1]} : vector<16x48xf32> to vector<16x16xf32>
    %324 = vector.shape_cast %323 : vector<16x16xf32> to vector<2x8x16xf32>
    %325 = arith.truncf %324 : vector<2x8x16xf32> to vector<2x8x16xbf16>
    %326 = vector.extract_strided_slice %319 {offsets = [0, 32], sizes = [16, 16], strides = [1, 1]} : vector<16x48xf32> to vector<16x16xf32>
    %327 = vector.shape_cast %326 : vector<16x16xf32> to vector<2x8x16xf32>
    %328 = arith.truncf %327 : vector<2x8x16xf32> to vector<2x8x16xbf16>
    "tpu.trace_start"() <{level = 10 : i32, message = "bqd,bkd->bqk"}> : () -> ()
    %cst_80 = arith.constant dense<0.000000e+00> : vector<2x8x8xf32>
    %329 = tpu.matmul %322, %325, %cst_80 {dimension_numbers = #tpu.dot_dimension_numbers<[2], [2], [1], [1], [0, 0, 0, 1, 1, 1], [0], [0]>} : vector<2x8x16xbf16>, vector<2x8x16xbf16>, vector<2x8x8xf32> -> vector<2x8x8xf32>
    "tpu.trace_stop"() : () -> ()
    %cst_81 = arith.constant dense<0xFF800000> : vector<2x8xf32>
    %330 = vector.multi_reduction <maximumf>, %329, %cst_81 [2] : vector<2x8x8xf32> to vector<2x8xf32>
    %331 = vector.shape_cast %330 : vector<2x8xf32> to vector<2x8x1xf32>
    %332 = vector.broadcast %331 : vector<2x8x1xf32> to vector<2x8x8xf32>
    %333 = arith.subf %329, %332 : vector<2x8x8xf32>
    %334 = math.exp %333 : vector<2x8x8xf32>
    %cst_82 = arith.constant dense<0.000000e+00> : vector<2x8xf32>
    %335 = vector.multi_reduction <add>, %334, %cst_82 [2] : vector<2x8x8xf32> to vector<2x8xf32>
    %336 = vector.shape_cast %335 : vector<2x8xf32> to vector<2x8x1xf32>
    %337 = tpu.reciprocal %336 {approx = true} : vector<2x8x1xf32> -> vector<2x8x1xf32>
    %338 = vector.broadcast %337 : vector<2x8x1xf32> to vector<2x8x8xf32>
    %339 = arith.mulf %334, %338 : vector<2x8x8xf32>
    %340 = arith.truncf %339 : vector<2x8x8xf32> to vector<2x8x8xbf16>
    "tpu.trace_start"() <{level = 10 : i32, message = "bqk,bkd->bqd"}> : () -> ()
    %cst_83 = arith.constant dense<0.000000e+00> : vector<2x8x16xf32>
    %341 = tpu.matmul %340, %328, %cst_83 {dimension_numbers = #tpu.dot_dimension_numbers<[2], [1], [1], [2], [0, 0, 0, 1, 1, 2], [0], [0]>} : vector<2x8x8xbf16>, vector<2x8x16xbf16>, vector<2x8x16xf32> -> vector<2x8x16xf32>
    "tpu.trace_stop"() : () -> ()
    %342 = vector.shape_cast %341 : vector<2x8x16xf32> to vector<16x16xf32>
    %343 = arith.truncf %342 : vector<16x16xf32> to vector<16x16xbf16>
    %344 = vector.extract_strided_slice %217 {offsets = [3, 0, 0], sizes = [1, 16, 64], strides = [1, 1, 1]} : vector<4x16x64xbf16> to vector<1x16x64xbf16>
    %345 = vector.shape_cast %344 : vector<1x16x64xbf16> to vector<16x64xbf16>
    %cst_84 = arith.constant dense<0.000000e+00> : vector<16x64xf32>
    %346 = tpu.matmul %343, %345, %cst_84 {dimension_numbers = #tpu.dot_dimension_numbers<[1], [0], [0], [1], [0, 0, 1, 1], [], []>} : vector<16x16xbf16>, vector<16x64xbf16>, vector<16x64xf32> -> vector<16x64xf32>
    %347 = arith.addf %318, %346 : vector<16x64xf32>
    %348 = vector.broadcast %223 : vector<1x64xf32> to vector<16x64xf32>
    %349 = arith.addf %347, %348 : vector<16x64xf32>
    %350 = arith.addf %205, %349 : vector<16x64xf32>
    %cst_85 = arith.constant dense<0.000000e+00> : vector<16xf32>
    %351 = vector.multi_reduction <add>, %350, %cst_85 [1] : vector<16x64xf32> to vector<16xf32>
    %352 = vector.shape_cast %351 : vector<16xf32> to vector<16x1xf32>
    %cst_86 = arith.constant 6.400000e+01 : f32
    %353 = vector.broadcast %cst_86 : f32 to vector<16x1xf32>
    %354 = arith.divf %352, %353 : vector<16x1xf32>
    %355 = vector.broadcast %354 : vector<16x1xf32> to vector<16x64xf32>
    %356 = arith.subf %350, %355 : vector<16x64xf32>
    %357 = arith.mulf %356, %356 : vector<16x64xf32>
    %cst_87 = arith.constant dense<0.000000e+00> : vector<16xf32>
    %358 = vector.multi_reduction <add>, %357, %cst_87 [1] : vector<16x64xf32> to vector<16xf32>
    %359 = vector.shape_cast %358 : vector<16xf32> to vector<16x1xf32>
    %cst_88 = arith.constant 6.400000e+01 : f32
    %360 = vector.broadcast %cst_88 : f32 to vector<16x1xf32>
    %361 = arith.divf %359, %360 : vector<16x1xf32>
    %362 = vector.broadcast %354 : vector<16x1xf32> to vector<16x64xf32>
    %363 = arith.subf %350, %362 : vector<16x64xf32>
    %cst_89 = arith.constant 9.99999974E-6 : f32
    %364 = vector.broadcast %cst_89 : f32 to vector<16x1xf32>
    %365 = arith.addf %361, %364 : vector<16x1xf32>
    %366 = math.rsqrt %365 : vector<16x1xf32>
    %367 = vector.broadcast %366 : vector<16x1xf32> to vector<16x64xf32>
    %368 = arith.mulf %363, %367 : vector<16x64xf32>
    %369 = vector.broadcast %224 : vector<1x64xf32> to vector<16x64xf32>
    %370 = arith.mulf %368, %369 : vector<16x64xf32>
    %371 = vector.broadcast %225 : vector<1x64xf32> to vector<16x64xf32>
    %372 = arith.addf %370, %371 : vector<16x64xf32>
    %373 = arith.truncf %372 : vector<16x64xf32> to vector<16x64xbf16>
    %cst_90 = arith.constant dense<0.000000e+00> : vector<16x128xf32>
    %374 = tpu.matmul %373, %218, %cst_90 {dimension_numbers = #tpu.dot_dimension_numbers<[1], [0], [0], [1], [0, 0, 1, 1], [], []>} : vector<16x64xbf16>, vector<64x128xbf16>, vector<16x128xf32> -> vector<16x128xf32>
    %375 = vector.broadcast %222 : vector<1x128xf32> to vector<16x128xf32>
    %376 = arith.addf %374, %375 : vector<16x128xf32>
    %cst_91 = arith.constant 0.000000e+00 : f32
    %377 = vector.broadcast %cst_91 : f32 to vector<16x128xf32>
    %378 = arith.maximumf %376, %377 : vector<16x128xf32>
    %379 = arith.truncf %378 : vector<16x128xf32> to vector<16x128xbf16>
    %cst_92 = arith.constant dense<0.000000e+00> : vector<16x64xf32>
    %380 = tpu.matmul %379, %219, %cst_92 {dimension_numbers = #tpu.dot_dimension_numbers<[1], [0], [0], [1], [0, 0, 1, 1], [], []>} : vector<16x128xbf16>, vector<128x64xbf16>, vector<16x64xf32> -> vector<16x64xf32>
    %381 = vector.broadcast %226 : vector<1x64xf32> to vector<16x64xf32>
    %382 = arith.addf %380, %381 : vector<16x64xf32>
    %383 = arith.addf %372, %382 : vector<16x64xf32>
    %cst_93 = arith.constant dense<0.000000e+00> : vector<16xf32>
    %384 = vector.multi_reduction <add>, %383, %cst_93 [1] : vector<16x64xf32> to vector<16xf32>
    %385 = vector.shape_cast %384 : vector<16xf32> to vector<16x1xf32>
    %cst_94 = arith.constant 6.400000e+01 : f32
    %386 = vector.broadcast %cst_94 : f32 to vector<16x1xf32>
    %387 = arith.divf %385, %386 : vector<16x1xf32>
    %388 = vector.broadcast %387 : vector<16x1xf32> to vector<16x64xf32>
    %389 = arith.subf %383, %388 : vector<16x64xf32>
    %390 = arith.mulf %389, %389 : vector<16x64xf32>
    %cst_95 = arith.constant dense<0.000000e+00> : vector<16xf32>
    %391 = vector.multi_reduction <add>, %390, %cst_95 [1] : vector<16x64xf32> to vector<16xf32>
    %392 = vector.shape_cast %391 : vector<16xf32> to vector<16x1xf32>
    %cst_96 = arith.constant 6.400000e+01 : f32
    %393 = vector.broadcast %cst_96 : f32 to vector<16x1xf32>
    %394 = arith.divf %392, %393 : vector<16x1xf32>
    %395 = vector.broadcast %387 : vector<16x1xf32> to vector<16x64xf32>
    %396 = arith.subf %383, %395 : vector<16x64xf32>
    %cst_97 = arith.constant 9.99999974E-6 : f32
    %397 = vector.broadcast %cst_97 : f32 to vector<16x1xf32>
    %398 = arith.addf %394, %397 : vector<16x1xf32>
    %399 = math.rsqrt %398 : vector<16x1xf32>
    %400 = vector.broadcast %399 : vector<16x1xf32> to vector<16x64xf32>
    %401 = arith.mulf %396, %400 : vector<16x64xf32>
    %402 = vector.broadcast %227 : vector<1x64xf32> to vector<16x64xf32>
    %403 = arith.mulf %401, %402 : vector<16x64xf32>
    %404 = vector.broadcast %228 : vector<1x64xf32> to vector<16x64xf32>
    %405 = arith.addf %403, %404 : vector<16x64xf32>
    %406 = vector.shape_cast %405 : vector<16x64xf32> to vector<2x8x64xf32>
    %cst_98 = arith.constant dense<0.000000e+00> : vector<2x64xf32>
    %407 = vector.multi_reduction <add>, %406, %cst_98 [1] : vector<2x8x64xf32> to vector<2x64xf32>
    %cst_99 = arith.constant 8.000000e+00 : f32
    %408 = vector.broadcast %cst_99 : f32 to vector<2x64xf32>
    %409 = arith.divf %407, %408 : vector<2x64xf32>
    %c0_100 = arith.constant 0 : index
    %c0_101 = arith.constant 0 : index
    %410 = vector.load %arg14[%c0_100, %c0_101] : memref<2x128xf32, #tpu.memory_space<vmem>>, vector<1x64xf32>
    %c1 = arith.constant 1 : index
    %c0_102 = arith.constant 0 : index
    %411 = vector.load %arg14[%c1, %c0_102] : memref<2x128xf32, #tpu.memory_space<vmem>>, vector<1x128xf32>
    %412 = arith.truncf %409 : vector<2x64xf32> to vector<2x64xbf16>
    %c0_103 = arith.constant 0 : index
    %c0_104 = arith.constant 0 : index
    %413 = vector.load %arg12[%c0_103, %c0_104] : memref<64x64xbf16, #tpu.memory_space<vmem>>, vector<64x64xbf16>
    %cst_105 = arith.constant dense<0.000000e+00> : vector<2x64xf32>
    %414 = tpu.matmul %412, %413, %cst_105 {dimension_numbers = #tpu.dot_dimension_numbers<[1], [0], [0], [1], [0, 0, 1, 1], [], []>} : vector<2x64xbf16>, vector<64x64xbf16>, vector<2x64xf32> -> vector<2x64xf32>
    %415 = vector.broadcast %410 : vector<1x64xf32> to vector<2x64xf32>
    %416 = arith.addf %414, %415 : vector<2x64xf32>
    %cst_106 = arith.constant 0.000000e+00 : f32
    %417 = vector.broadcast %cst_106 : f32 to vector<2x64xf32>
    %418 = arith.maximumf %416, %417 : vector<2x64xf32>
    %419 = arith.truncf %418 : vector<2x64xf32> to vector<2x64xbf16>
    %c0_107 = arith.constant 0 : index
    %c0_108 = arith.constant 0 : index
    %420 = vector.load %arg13[%c0_107, %c0_108] : memref<64x128xbf16, #tpu.memory_space<vmem>>, vector<64x128xbf16>
    %cst_109 = arith.constant dense<0.000000e+00> : vector<2x128xf32>
    %421 = tpu.matmul %419, %420, %cst_109 {dimension_numbers = #tpu.dot_dimension_numbers<[1], [0], [0], [1], [0, 0, 1, 1], [], []>} : vector<2x64xbf16>, vector<64x128xbf16>, vector<2x128xf32> -> vector<2x128xf32>
    %422 = vector.broadcast %411 : vector<1x128xf32> to vector<2x128xf32>
    %423 = arith.addf %421, %422 : vector<2x128xf32>
    %c0_110 = arith.constant 0 : index
    %c0_111 = arith.constant 0 : index
    %424 = vector.load %arg15[%c0_110, %c0_111] : memref<2x128xf32, #tpu.memory_space<vmem>>, vector<2x128xf32>
    tpu.vector_store %arg15[%c0_110, %c0_111], %423 {strides = array<i32>} : memref<2x128xf32, #tpu.memory_space<vmem>>, vector<2x128xf32>,
    return
  }
}

</mosaic_0001>

<llo_original>
// kernel: tpu_custom_call.1
$region0: #{tpu_custom_call.1}
  #allocation0 [shape = 'u32[]', space=smem, size = 0x4, offset = 0x4, fixed_abs, tag = 'smem constant byte address 0x4 - core index']
  #allocation1 [shape = 'u32[72,128]{1,0:T(1,128)}', space=vmem, size = 0x9000, scoped, tag = 'internal scratch']
  #allocation2 [shape = 'bf16[64,192]{1,0:T(8,128)(2,1)}', space=vmem, size = 0x8000, scoped, tag = 'scratch operand']
  #allocation3 [shape = 'bf16[4,16,64]{2,1,0:T(8,128)(2,1)}', space=vmem, size = 0x4000, scoped, tag = 'scratch operand']
  #allocation4 [shape = 'bf16[64,128]{1,0:T(8,128)(2,1)}', space=vmem, size = 0x4000, scoped, tag = 'scratch operand']
  #allocation5 [shape = 'bf16[128,64]{1,0:T(8,128)(2,1)}', space=vmem, size = 0x8000, scoped, tag = 'scratch operand']
  #allocation6 [shape = 'f32[8,192]{1,0:T(8,128)}', space=vmem, size = 0x2000, scoped, tag = 'scratch operand']
  #allocation7 [shape = 's32[5]{0}', space=sflag, size = 0x14, scoped, tag = 'scratch operand']
  #allocation20 [shape = 's32[]', space=sflag, size = 0x4, offset = 0, fixed_abs, tag = 'sflag constant byte address 0x0 - dummy sync flag']
  #allocation21 [shape = 's32[]', space=sflag, size = 0x4, offset = 0, fixed_abs, tag = 'sflag constant byte address 0x0 - dummy sync flag']
  #allocation22 [shape = 's32[]', space=sflag, size = 0x4, offset = 0, fixed_abs, tag = 'sflag constant byte address 0x0 - dummy sync flag']
  #allocation23 [shape = 'u32[]', space=smem, size = 0x4, offset = 0x44, fixed_abs, tag = 'smem constant byte address 0x44 - assertion arg 0']
  #allocation24 [shape = 'u32[]', space=smem, size = 0x4, offset = 0x48, fixed_abs, tag = 'smem constant byte address 0x48 - assertion arg 1']
  #allocation25 [shape = 's32[]', space=sflag, size = 0x4, offset = 0, fixed_abs, tag = 'sflag constant byte address 0x0 - dummy sync flag']
  #allocation26 [shape = 's32[]', space=sflag, size = 0x4, offset = 0, fixed_abs, tag = 'sflag constant byte address 0x0 - dummy sync flag']
  #allocation27 [shape = 's32[]', space=sflag, size = 0x4, offset = 0, fixed_abs, tag = 'sflag constant byte address 0x0 - dummy sync flag']
  #allocation28 [shape = 's32[]', space=sflag, size = 0x4, offset = 0, fixed_abs, tag = 'sflag constant byte address 0x0 - dummy sync flag']
  #allocation29 [shape = 's32[]', space=sflag, size = 0x4, offset = 0, fixed_abs, tag = 'sflag constant byte address 0x0 - dummy sync flag']
  %s0 = inlined_call_operand.hbm [shape: f32[2,8,64], index: 0, kind: input, shape index: {}]
  %s1 = inlined_call_operand.hbm [shape: f32[8,64], index: 1, kind: input, shape index: {}]
  %s2 = inlined_call_operand.vmem [shape: bf16[64,192], index: 2, kind: input, shape index: {}]
  %s3 = inlined_call_operand.vmem [shape: bf16[4,16,64], index: 3, kind: input, shape index: {}]
  %s4 = inlined_call_operand.hbm [shape: bf16[64,128], index: 4, kind: input, shape index: {}]
  %s5 = inlined_call_operand.vmem [shape: bf16[128,64], index: 5, kind: input, shape index: {}]
  %s6 = inlined_call_operand.hbm [shape: f32[8,192], index: 6, kind: input, shape index: {}]
  %s7 = inlined_call_operand.vmem [shape: bf16[64,192], index: 7, kind: input, shape index: {}]
  %s8 = inlined_call_operand.hbm [shape: bf16[4,16,64], index: 8, kind: input, shape index: {}]
  %s9 = inlined_call_operand.hbm [shape: bf16[64,128], index: 9, kind: input, shape index: {}]
  %s10 = inlined_call_operand.vmem [shape: bf16[128,64], index: 10, kind: input, shape index: {}]
  %s11 = inlined_call_operand.hbm [shape: f32[8,192], index: 11, kind: input, shape index: {}]
  %s12 = inlined_call_operand.hbm [shape: bf16[64,64], index: 12, kind: input, shape index: {}]
  %s13 = inlined_call_operand.hbm [shape: bf16[64,128], index: 13, kind: input, shape index: {}]
  %s14 = inlined_call_operand.vmem [shape: f32[2,128], index: 14, kind: input, shape index: {}]
  %s15 = inlined_call_operand.hbm [shape: f32[2,128], index: 15, kind: output, shape index: {}]
  %s16 = sld [smem:[#allocation0]]
  $region124: #{tpu_custom_call.1} parent=0
    _
  %s18 = ssub.s32 1, %s16
  %s19 = scalar_select 0, %s18, %s16
  $region1: #{tpu_custom_call.1} parent=0
    #allocation8 [shape = 'u8[8192]{0}', space=vmem, size = 0x2000, scoped, tag = 'input window, operand 0, single buffered']
    #allocation9 [shape = 's32[1]{0}', space=sflag, size = 0x4, scoped, tag = 'scoped memory for tpu_custom_call.1']
    #allocation10 [shape = 's32[1]{0}', space=sflag, size = 0x4, scoped, tag = 'scoped memory for tpu_custom_call.1']
    #allocation11 [shape = 'u8[4096]{0}', space=vmem, size = 0x1000, scoped, tag = 'input window, operand 1, single buffered']
    #allocation12 [shape = 's32[1]{0}', space=sflag, size = 0x4, scoped, tag = 'scoped memory for tpu_custom_call.1']
    #allocation13 [shape = 'u8[16384]{0}', space=vmem, size = 0x4000, scoped, tag = 'input window, operand 4, single buffered']
    #allocation14 [shape = 'u8[8192]{0}', space=vmem, size = 0x2000, scoped, tag = 'input window, operand 6, single buffered']
    #allocation15 [shape = 's32[1]{0}', space=sflag, size = 0x4, scoped, tag = 'scoped memory for tpu_custom_call.1']
    #allocation16 [shape = 'u8[16384]{0}', space=vmem, size = 0x4000, scoped, tag = 'input window, operand 12, single buffered']
    #allocation17 [shape = 'u8[16384]{0}', space=vmem, size = 0x4000, scoped, tag = 'input window, operand 13, single buffered']
    #allocation18 [shape = 's32[1]{0}', space=sflag, size = 0x4, scoped, tag = 'scoped memory for tpu_custom_call.1']
    #allocation19 [shape = 'u8[1024]{0}', space=vmem, size = 0x400, scoped, tag = 'output window, operand 0, single buffered']
    %20 = vsyncpa [#allocation9], 0
    %21 = vsyncpa [#allocation12], 0
    %22 = vsyncpa [#allocation15], 0
    %23 = vsyncpa [#allocation18], 0
    %24 = vsyncpa [#allocation10], 0
    // Predicated region
    $region2: #{tpu_custom_call.1} parent=1 // pred_check
      _
    $region3: #{tpu_custom_call.1} parent=1 // pred_check_branch
      %26 = sbr.rel (0) target = $region5
    $region4: #{tpu_custom_call.1} parent=1 // pred_region
      %28 = vsyncadd [#allocation9], 0
      %s29 = sshll.u32 %s0, 4
      %s30 = int_to_ptr.hbm [resolvable:$true] %s29
      %s31 = sshll.u32 [#allocation8], 4
      %s32 = int_to_ptr.vmem [resolvable:$true] %s31
      %37 = dma.hbm_to_vmem [thread:$0]  %s30, 256, %s32, [#allocation9], 128, 128, 8
    $region5: #{tpu_custom_call.1} parent=1 // pred_fallthru
      _
    // Predicated region
    $region6: #{tpu_custom_call.1} parent=1 // pred_check
      _
    $region7: #{tpu_custom_call.1} parent=1 // pred_check_branch
      %39 = sbr.rel (0) target = $region9
    $region8: #{tpu_custom_call.1} parent=1 // pred_region
      %41 = vsyncadd [#allocation12], 0
      %s43 = sshll.u32 %s1, 4
      %s44 = int_to_ptr.hbm [resolvable:$true] %s43
      %s45 = sshll.u32 [#allocation11], 4
      %s46 = int_to_ptr.vmem [resolvable:$true] %s45
      %48 = dma.hbm_to_vmem [thread:$0]  %s44, 128, %s46, [#allocation12]
    $region9: #{tpu_custom_call.1} parent=1 // pred_fallthru
      _
    // Predicated region
    $region10: #{tpu_custom_call.1} parent=1 // pred_check
      _
    $region11: #{tpu_custom_call.1} parent=1 // pred_check_branch
      %50 = sbr.rel (0) target = $region13
    $region12: #{tpu_custom_call.1} parent=1 // pred_region
      _
    $region13: #{tpu_custom_call.1} parent=1 // pred_fallthru
      _
    // Predicated region
    $region14: #{tpu_custom_call.1} parent=1 // pred_check
      _
    $region15: #{tpu_custom_call.1} parent=1 // pred_check_branch
      %52 = sbr.rel (0) target = $region17
    $region16: #{tpu_custom_call.1} parent=1 // pred_region
      _
    $region17: #{tpu_custom_call.1} parent=1 // pred_fallthru
      _
    // Predicated region
    $region18: #{tpu_custom_call.1} parent=1 // pred_check
      _
    $region19: #{tpu_custom_call.1} parent=1 // pred_check_branch
      %54 = sbr.rel (0) target = $region21
    $region20: #{tpu_custom_call.1} parent=1 // pred_region
      %56 = vsyncadd [#allocation12], 0
      %s57 = sshll.u32 %s4, 4
      %s58 = int_to_ptr.hbm [resolvable:$true] %s57
      %s59 = sshll.u32 [#allocation13], 4
      %s60 = int_to_ptr.vmem [resolvable:$true] %s59
      %65 = dma.hbm_to_vmem [thread:$0]  %s58, 512, %s60, [#allocation12], 64, 64, 4
    $region21: #{tpu_custom_call.1} parent=1 // pred_fallthru
      _
    // Predicated region
    $region22: #{tpu_custom_call.1} parent=1 // pred_check
      _
    $region23: #{tpu_custom_call.1} parent=1 // pred_check_branch
      %67 = sbr.rel (0) target = $region25
    $region24: #{tpu_custom_call.1} parent=1 // pred_region
      _
    $region25: #{tpu_custom_call.1} parent=1 // pred_fallthru
      _
    // Predicated region
    $region26: #{tpu_custom_call.1} parent=1 // pred_check
      _
    $region27: #{tpu_custom_call.1} parent=1 // pred_check_branch
      %69 = sbr.rel (0) target = $region29
    $region28: #{tpu_custom_call.1} parent=1 // pred_region
      %71 = vsyncadd [#allocation15], 0
      %s73 = sshll.u32 %s6, 4
      %s74 = int_to_ptr.hbm [resolvable:$true] %s73
      %s75 = sshll.u32 [#allocation14], 4
      %s76 = int_to_ptr.vmem [resolvable:$true] %s75
      %78 = dma.hbm_to_vmem [thread:$0]  %s74, 256, %s76, [#allocation15]
    $region29: #{tpu_custom_call.1} parent=1 // pred_fallthru
      _
    // Predicated region
    $region30: #{tpu_custom_call.1} parent=1 // pred_check
      _
    $region31: #{tpu_custom_call.1} parent=1 // pred_check_branch
      %80 = sbr.rel (0) target = $region33
    $region32: #{tpu_custom_call.1} parent=1 // pred_region
      %82 = vsyncadd [#allocation15], 0
      %s83 = sshll.u32 %s12, 4
      %s84 = int_to_ptr.hbm [resolvable:$true] %s83
      %s85 = sshll.u32 [#allocation16], 4
      %s86 = int_to_ptr.vmem [resolvable:$true] %s85
      %91 = dma.hbm_to_vmem [thread:$0]  %s84, 512, %s86, [#allocation15], 64, 64, 4
    $region33: #{tpu_custom_call.1} parent=1 // pred_fallthru
      _
    // Predicated region
    $region34: #{tpu_custom_call.1} parent=1 // pred_check
      _
    $region35: #{tpu_custom_call.1} parent=1 // pred_check_branch
      %93 = sbr.rel (0) target = $region37
    $region36: #{tpu_custom_call.1} parent=1 // pred_region
      %95 = vsyncadd [#allocation18], 0
      %s96 = sshll.u32 %s13, 4
      %s97 = int_to_ptr.hbm [resolvable:$true] %s96
      %s98 = sshll.u32 [#allocation17], 4
      %s99 = int_to_ptr.vmem [resolvable:$true] %s98
      %104 = dma.hbm_to_vmem [thread:$0]  %s97, 512, %s99, [#allocation18], 64, 64, 4
    $region37: #{tpu_custom_call.1} parent=1 // pred_fallthru
      _
    // Predicated region
    $region38: #{tpu_custom_call.1} parent=1 // pred_check
      _
    $region39: #{tpu_custom_call.1} parent=1 // pred_check_branch
      %106 = sbr.rel (0) target = $region41
    $region40: #{tpu_custom_call.1} parent=1 // pred_region
      _
    $region41: #{tpu_custom_call.1} parent=1 // pred_fallthru
      _
    // Predicated region
    $region42: #{tpu_custom_call.1} parent=1 // pred_check
      _
    $region43: #{tpu_custom_call.1} parent=1 // pred_check_branch
      %108 = sbr.rel (0) target = $region45
    $region44: #{tpu_custom_call.1} parent=1 // pred_region
      %110 = dma.done [#allocation9], 256
    $region45: #{tpu_custom_call.1} parent=1 // pred_fallthru
      _
    // Predicated region
    $region46: #{tpu_custom_call.1} parent=1 // pred_check
      _
    $region47: #{tpu_custom_call.1} parent=1 // pred_check_branch
      %112 = sbr.rel (0) target = $region49
    $region48: #{tpu_custom_call.1} parent=1 // pred_region
      %114 = dma.done [#allocation12], 128
    $region49: #{tpu_custom_call.1} parent=1 // pred_fallthru
      _
    // Predicated region
    $region50: #{tpu_custom_call.1} parent=1 // pred_check
      _
    $region51: #{tpu_custom_call.1} parent=1 // pred_check_branch
      %116 = sbr.rel (0) target = $region53
    $region52: #{tpu_custom_call.1} parent=1 // pred_region
      %118 = dma.done [#allocation12], 512
    $region53: #{tpu_custom_call.1} parent=1 // pred_fallthru
      _
    // Predicated region
    $region54: #{tpu_custom_call.1} parent=1 // pred_check
      _
    $region55: #{tpu_custom_call.1} parent=1 // pred_check_branch
      %120 = sbr.rel (0) target = $region57
    $region56: #{tpu_custom_call.1} parent=1 // pred_region
      %122 = dma.done [#allocation15], 256
    $region57: #{tpu_custom_call.1} parent=1 // pred_fallthru
      _
    // Predicated region
    $region58: #{tpu_custom_call.1} parent=1 // pred_check
      _
    $region59: #{tpu_custom_call.1} parent=1 // pred_check_branch
      %124 = sbr.rel (0) target = $region61
    $region60: #{tpu_custom_call.1} parent=1 // pred_region
      %126 = dma.done [#allocation15], 512
    $region61: #{tpu_custom_call.1} parent=1 // pred_fallthru
      _
    // Predicated region
    $region62: #{tpu_custom_call.1} parent=1 // pred_check
      _
    $region63: #{tpu_custom_call.1} parent=1 // pred_check_branch
      %128 = sbr.rel (0) target = $region65
    $region64: #{tpu_custom_call.1} parent=1 // pred_region
      %130 = dma.done [#allocation18], 512
    $region65: #{tpu_custom_call.1} parent=1 // pred_fallthru
      _
    // Predicated region
    $region66: #{tpu_custom_call.1} parent=1 // pred_check
      _
    $region67: #{tpu_custom_call.1} parent=1 // pred_check_branch
      %133 = sbr.rel (0) target = $region69
    $region68: #{tpu_custom_call.1} parent=1 // pred_region
      loop: start=0, step=1, limit=1
      $region70: #{tpu_custom_call.1} parent=68 // loop_pre_header
        _
      $region71: #{tpu_custom_call.1} parent=68 // loop_header
        %s135 = sphi 0, %s139
        %p136 = scmp.ge.s32.totalorder %s135, 1
        %s140 = sphi %s7, %s7
        %s141 = sphi [#allocation2], [#allocation2]
      $region72: #{tpu_custom_call.1} parent=68 // loop_header_branch
        %138 = sbr.rel (%p136) target = $region76
      $region73: #{tpu_custom_call.1} parent=68 // loop_body
        %v142 = vld [vmem:[%s140] sm:$0xff]
        %143 = vst [vmem:[%s141] sm:$0xff] %v142
        %v144 = vld [vmem:[%s140 + $0x8] sm:$0xff]
        %145 = vst [vmem:[%s141 + $0x8] sm:$0xff] %v144
        %v146 = vld [vmem:[%s140 + $0x10] sm:$0xff]
        %147 = vst [vmem:[%s141 + $0x10] sm:$0xff] %v146
        %v148 = vld [vmem:[%s140 + $0x18] sm:$0xff]
        %149 = vst [vmem:[%s141 + $0x18] sm:$0xff] %v148
        %v150 = vld [vmem:[%s140 + $0x20] sm:$0xff]
        %151 = vst [vmem:[%s141 + $0x20] sm:$0xff] %v150
        %v152 = vld [vmem:[%s140 + $0x28] sm:$0xff]
        %153 = vst [vmem:[%s141 + $0x28] sm:$0xff] %v152
        %v154 = vld [vmem:[%s140 + $0x30] sm:$0xff]
        %155 = vst [vmem:[%s141 + $0x30] sm:$0xff] %v154
        %v156 = vld [vmem:[%s140 + $0x38] sm:$0xff]
        %157 = vst [vmem:[%s141 + $0x38] sm:$0xff] %v156
      $region74: #{tpu_custom_call.1} parent=68 // loop_footer
        %s139 = sadd.s32 1, %s135
      $region75: #{tpu_custom_call.1} parent=68 // loop_footer_branch
        %134 = sbr.rel target = $region71
      $region76: #{tpu_custom_call.1} parent=68 // loop_exit
        _
    $region69: #{tpu_custom_call.1} parent=1 // pred_fallthru
      _
    // Predicated region
    $region77: #{tpu_custom_call.1} parent=1 // pred_check
      _
    $region78: #{tpu_custom_call.1} parent=1 // pred_check_branch
      %159 = sbr.rel target = $region80
    $region79: #{tpu_custom_call.1} parent=1 // pred_region
      _
    $region80: #{tpu_custom_call.1} parent=1 // pred_fallthru
      _
    // Predicated region
    $region81: #{tpu_custom_call.1} parent=1 // pred_check
      _
    $region82: #{tpu_custom_call.1} parent=1 // pred_check_branch
      %162 = sbr.rel (0) target = $region84
    $region83: #{tpu_custom_call.1} parent=1 // pred_region
      %163 = vsyncadd [#allocation7], 1024
    $region84: #{tpu_custom_call.1} parent=1 // pred_fallthru
      _
    %s164 = scalar_lea.sflag [#allocation7], 1
    // Predicated region
    $region85: #{tpu_custom_call.1} parent=1 // pred_check
      _
    $region86: #{tpu_custom_call.1} parent=1 // pred_check_branch
      %166 = sbr.rel target = $region88
    $region87: #{tpu_custom_call.1} parent=1 // pred_region
      %167 = sst [smem:[#allocation23]] [#allocation22]
      %168 = sst [smem:[#allocation24]] [#allocation21]
    $region88: #{tpu_custom_call.1} parent=1 // pred_fallthru
      _
    %170 = shalt.err (0)
    %s172 = sshll.u32 %s8, 4
    %s173 = int_to_ptr.hbm [resolvable:$true] %s172
    %s174 = sshll.u32 [#allocation3], 4
    %s175 = int_to_ptr.vmem [resolvable:$true] %s174
    %177 = dma.hbm_to_vmem [thread:$0]  %s173, 512, %s175, %s164
    %s178 = scalar_lea.sflag [#allocation7], 2
    // Predicated region
    $region89: #{tpu_custom_call.1} parent=1 // pred_check
      _
    $region90: #{tpu_custom_call.1} parent=1 // pred_check_branch
      %180 = sbr.rel target = $region92
    $region91: #{tpu_custom_call.1} parent=1 // pred_region
      %181 = sst [smem:[#allocation23]] [#allocation26]
      %182 = sst [smem:[#allocation24]] [#allocation25]
    $region92: #{tpu_custom_call.1} parent=1 // pred_fallthru
      _
    %184 = shalt.err (0)
    %s186 = sshll.u32 %s9, 4
    %s187 = int_to_ptr.hbm [resolvable:$true] %s186
    %s188 = sshll.u32 [#allocation4], 4
    %s189 = int_to_ptr.vmem [resolvable:$true] %s188
    %191 = dma.hbm_to_vmem [thread:$0]  %s187, 512, %s189, %s178
    %s192 = scalar_lea.sflag [#allocation7], 3
    // Predicated region
    $region93: #{tpu_custom_call.1} parent=1 // pred_check
      _
    $region94: #{tpu_custom_call.1} parent=1 // pred_check_branch
      %194 = sbr.rel (0) target = $region96
    $region95: #{tpu_custom_call.1} parent=1 // pred_region
      loop: start=0, step=1, limit=1
      $region97: #{tpu_custom_call.1} parent=95 // loop_pre_header
        _
      $region98: #{tpu_custom_call.1} parent=95 // loop_header
        %s196 = sphi 0, %s200
        %p197 = scmp.ge.s32.totalorder %s196, 1
        %s201 = sphi %s10, %s10
        %s202 = sphi [#allocation5], [#allocation5]
      $region99: #{tpu_custom_call.1} parent=95 // loop_header_branch
        %199 = sbr.rel (%p197) target = $region103
      $region100: #{tpu_custom_call.1} parent=95 // loop_body
        %v203 = vld [vmem:[%s201] sm:$0xff]
        %204 = vst [vmem:[%s202] sm:$0xff] %v203
        %v205 = vld [vmem:[%s201 + $0x8] sm:$0xff]
        %206 = vst [vmem:[%s202 + $0x8] sm:$0xff] %v205
        %v207 = vld [vmem:[%s201 + $0x10] sm:$0xff]
        %208 = vst [vmem:[%s202 + $0x10] sm:$0xff] %v207
        %v209 = vld [vmem:[%s201 + $0x18] sm:$0xff]
        %210 = vst [vmem:[%s202 + $0x18] sm:$0xff] %v209
        %v211 = vld [vmem:[%s201 + $0x20] sm:$0xff]
        %212 = vst [vmem:[%s202 + $0x20] sm:$0xff] %v211
        %v213 = vld [vmem:[%s201 + $0x28] sm:$0xff]
        %214 = vst [vmem:[%s202 + $0x28] sm:$0xff] %v213
        %v215 = vld [vmem:[%s201 + $0x30] sm:$0xff]
        %216 = vst [vmem:[%s202 + $0x30] sm:$0xff] %v215
        %v217 = vld [vmem:[%s201 + $0x38] sm:$0xff]
        %218 = vst [vmem:[%s202 + $0x38] sm:$0xff] %v217
      $region101: #{tpu_custom_call.1} parent=95 // loop_footer
        %s200 = sadd.s32 1, %s196
      $region102: #{tpu_custom_call.1} parent=95 // loop_footer_branch
        %195 = sbr.rel target = $region98
      $region103: #{tpu_custom_call.1} parent=95 // loop_exit
        _
    $region96: #{tpu_custom_call.1} parent=1 // pred_fallthru
      _
    // Predicated region
    $region104: #{tpu_custom_call.1} parent=1 // pred_check
      _
    $region105: #{tpu_custom_call.1} parent=1 // pred_check_branch
      %220 = sbr.rel target = $region107
    $region106: #{tpu_custom_call.1} parent=1 // pred_region
      _
    $region107: #{tpu_custom_call.1} parent=1 // pred_fallthru
      _
    // Predicated region
    $region108: #{tpu_custom_call.1} parent=1 // pred_check
      _
    $region109: #{tpu_custom_call.1} parent=1 // pred_check_branch
      %223 = sbr.rel (0) target = $region111
    $region110: #{tpu_custom_call.1} parent=1 // pred_region
      %224 = vsyncadd %s192, 1024
    $region111: #{tpu_custom_call.1} parent=1 // pred_fallthru
      _
    %s225 = scalar_lea.sflag [#allocation7], 4
    // Predicated region
    $region112: #{tpu_custom_call.1} parent=1 // pred_check
      _
    $region113: #{tpu_custom_call.1} parent=1 // pred_check_branch
      %227 = sbr.rel target = $region115
    $region114: #{tpu_custom_call.1} parent=1 // pred_region
      %228 = sst [smem:[#allocation23]] [#allocation29]
      %229 = sst [smem:[#allocation24]] [#allocation28]
    $region115: #{tpu_custom_call.1} parent=1 // pred_fallthru
      _
    %231 = shalt.err (0)
    %s233 = sshll.u32 %s11, 4
    %s234 = int_to_ptr.hbm [resolvable:$true] %s233
    %s235 = sshll.u32 [#allocation6], 4
    %s236 = int_to_ptr.vmem [resolvable:$true] %s235
    %238 = dma.hbm_to_vmem [thread:$0]  %s234, 256, %s236, %s225
    %v239 = vld [vmem:[#allocation8] sm:$0xff]
    %v240 = vld [vmem:[#allocation8 + $0x8] sm:$0xff]
    %v241 = vld [vmem:[#allocation11] sm:$0xff]
    %v242 = vadd.f32 %v239, %v241
    %v243 = vadd.f32 %v240, %v241
    %v244 = vld [vmem:[%s2] sm:$0xff]
    %v245 = vld [vmem:[%s2 + $0x8] sm:$0xff]
    %v246 = vld [vmem:[%s2 + $0x10] sm:$0xff]
    %v247 = vld [vmem:[%s2 + $0x18] sm:$0xff]
    %v248 = vld [vmem:[%s2 + $0x20] sm:$0xff]
    %v249 = vld [vmem:[%s2 + $0x28] sm:$0xff]
    %v250 = vld [vmem:[%s2 + $0x30] sm:$0xff]
    %v251 = vld [vmem:[%s2 + $0x38] sm:$0xff]
    %v252 = vld [vmem:[%s3] sm:$0xf]
    %v253 = vld [vmem:[%s3 + $0x4] sm:$0xf]
    %v254 = vld [vmem:[%s3 + $0x8] sm:$0xf]
    %v255 = vld [vmem:[%s3 + $0xc] sm:$0xf]
    %v256 = vld [vmem:[%s3 + $0x10] sm:$0xf]
    %v257 = vld [vmem:[%s3 + $0x14] sm:$0xf]
    %v258 = vld [vmem:[%s3 + $0x18] sm:$0xf]
    %v259 = vld [vmem:[%s3 + $0x1c] sm:$0xf]
    %v260 = vld [vmem:[#allocation13] sm:$0xf]
    %v261 = vld [vmem:[#allocation13 + $0x4] sm:$0xf]
    %v262 = vld [vmem:[#allocation13 + $0x8] sm:$0xf]
    %v263 = vld [vmem:[#allocation13 + $0xc] sm:$0xf]
    %v264 = vld [vmem:[#allocation13 + $0x10] sm:$0xf]
    %v265 = vld [vmem:[#allocation13 + $0x14] sm:$0xf]
    %v266 = vld [vmem:[#allocation13 + $0x18] sm:$0xf]
    %v267 = vld [vmem:[#allocation13 + $0x1c] sm:$0xf]
    %v268 = vld [vmem:[%s5] sm:$0xf]
    %v269 = vld [vmem:[%s5 + $0x4] sm:$0xf]
    %v270 = vld [vmem:[%s5 + $0x8] sm:$0xf]
    %v271 = vld [vmem:[%s5 + $0xc] sm:$0xf]
    %v272 = vld [vmem:[%s5 + $0x10] sm:$0xf]
    %v273 = vld [vmem:[%s5 + $0x14] sm:$0xf]
    %v274 = vld [vmem:[%s5 + $0x18] sm:$0xf]
    %v275 = vld [vmem:[%s5 + $0x1c] sm:$0xf]
    %v276 = vld [vmem:[%s5 + $0x20] sm:$0xf]
    %v277 = vld [vmem:[%s5 + $0x24] sm:$0xf]
    %v278 = vld [vmem:[%s5 + $0x28] sm:$0xf]
    %v279 = vld [vmem:[%s5 + $0x2c] sm:$0xf]
    %v280 = vld [vmem:[%s5 + $0x30] sm:$0xf]
    %v281 = vld [vmem:[%s5 + $0x34] sm:$0xf]
    %v282 = vld [vmem:[%s5 + $0x38] sm:$0xf]
    %v283 = vld [vmem:[%s5 + $0x3c] sm:$0xf]
    %v284 = vld [vmem:[#allocation14] sm:$0xff]
    %v285 = vld [vmem:[#allocation14 + $0x8] sm:$0xff]
    %v286 = vpack.c.bf16 %v243, %v242
    %v287 = vperm.slane %v284, 0
    %v288 = vperm.slane %v285, 0
    %v297 = vunpack.c.l.b16 %v244
    %v298 = vunpack.c.h.b16 %v244
    %v299 = vunpack.c.l.b16 %v245
    %v300 = vunpack.c.h.b16 %v245
    %v301 = vunpack.c.l.b16 %v246
    %v302 = vunpack.c.h.b16 %v246
    %v303 = vunpack.c.l.b16 %v247
    %v304 = vunpack.c.h.b16 %v247
    %v305 = vunpack.c.l.b16 %v248
    %v306 = vunpack.c.h.b16 %v248
    %v307 = vunpack.c.l.b16 %v249
    %v308 = vunpack.c.h.b16 %v249
    %v309 = vunpack.c.l.b16 %v250
    %v310 = vunpack.c.h.b16 %v250
    %v311 = vunpack.c.l.b16 %v251
    %v312 = vunpack.c.h.b16 %v251
    %v313 = vpack.c.b16 %v299, %v297
    %v314 = vpack.c.b16 %v300, %v298
    %v315 = vpack.c.b16 %v303, %v301
    %v316 = vpack.c.b16 %v304, %v302
    %v317 = vpack.c.b16 %v307, %v305
    %v318 = vpack.c.b16 %v308, %v306
    %v319 = vpack.c.b16 %v311, %v309
    %v320 = vpack.c.b16 %v312, %v310
    %vm329 = vcmask 523264
    %v331 = vsel %vm329, %v286, 0
    %333 = vmatpush.bf16.msra.mxu0 0
    %334 = vmatpush.bf16.msra.mxu0 0
    %335 = vmatpush.bf16.msra.mxu0 0
    %336 = vmatpush.bf16.msra.mxu0 0
    %337 = vmatpush.bf16.msra.mxu0 %v319
    %338 = vmatpush.bf16.msra.mxu0 %v317
    %339 = vmatpush.bf16.msra.mxu0 %v315
    %340 = vmatpush.bf16.msra.mxu0 %v313
    %341 = vmatmul.bf16.gmra.mxu0 %v331
    %v342 = vpop.f32.mrf.mxu0
    %v343 = vadd.f32 %v287, %v342
    %v344 = vpop.f32.mrf.mxu0
    %v345 = vadd.f32 %v287, %v344
    %346 = vdwg.mxu0
    %347 = vmatpush.bf16.msra.mxu0 0
    %348 = vmatpush.bf16.msra.mxu0 0
    %349 = vmatpush.bf16.msra.mxu0 0
    %350 = vmatpush.bf16.msra.mxu0 0
    %351 = vmatpush.bf16.msra.mxu0 %v320
    %352 = vmatpush.bf16.msra.mxu0 %v318
    %353 = vmatpush.bf16.msra.mxu0 %v316
    %354 = vmatpush.bf16.msra.mxu0 %v314
    %355 = vmatmul.bf16.gmra.mxu0 %v331
    %v356 = vpop.f32.mrf.mxu0
    %v357 = vadd.f32 %v288, %v356
    %v358 = vpop.f32.mrf.mxu0
    %v359 = vadd.f32 %v288, %v358
    %360 = vdwg.mxu0
    %v361 = vpack.c.bf16 %v343, %v343
    %v362 = vpack.c.bf16 %v345, %v345
    %v364 = vunpack.c.l.b16 %v361
    %v365 = vpack.c.b16 %v364, %v364
    %366 = vrot.lane.b32.xlu0 %v365, 112
    %v367 = vpop.permute.xlu0 %366
    %vm368 = vcmask 130048
    %v370 = vsel %vm368, %v361, 0
    %v373 = vsel %vm368, %v367, 0
    %375 = vmatpush.bf16.xpose.msra.mxu0 0
    %376 = vmatpush.bf16.xpose.msra.mxu0 0
    %377 = vmatpush.bf16.xpose.msra.mxu0 0
    %378 = vmatpush.bf16.xpose.msra.mxu0 0
    %379 = vmatpush.bf16.xpose.msra.mxu0 0
    %380 = vmatpush.bf16.xpose.msra.mxu0 0
    %381 = vmatpush.bf16.xpose.msra.mxu0 0
    %382 = vmatpush.bf16.xpose.msra.mxu0 %v373
    %383 = vmatmul.bf16.gmra.mxu0 %v370
    %v384 = vpop.f32.mrf.mxu0
    %v385 = vadd.f32 0.0, %v384
    %v386 = vpop.f32.mrf.mxu0
    %387 = vdwg.mxu0
    %v389 = vunpack.c.l.b16 %v362
    %v390 = vpack.c.b16 %v389, %v389
    %391 = vrot.lane.b32.xlu0 %v390, 112
    %v392 = vpop.permute.xlu0 %391
    %v394 = vsel %vm368, %v362, 0
    %v397 = vsel %vm368, %v392, 0
    %399 = vmatpush.bf16.xpose.msra.mxu0 0
    %400 = vmatpush.bf16.xpose.msra.mxu0 0
    %401 = vmatpush.bf16.xpose.msra.mxu0 0
    %402 = vmatpush.bf16.xpose.msra.mxu0 0
    %403 = vmatpush.bf16.xpose.msra.mxu0 0
    %404 = vmatpush.bf16.xpose.msra.mxu0 0
    %405 = vmatpush.bf16.xpose.msra.mxu0 0
    %406 = vmatpush.bf16.xpose.msra.mxu0 %v397
    %407 = vmatmul.bf16.gmra.mxu0 %v394
    %v408 = vpop.f32.mrf.mxu0
    %v409 = vadd.f32 0.0, %v408
    %v410 = vpop.f32.mrf.mxu0
    %411 = vdwg.mxu0
    %vm412 = vcmask 64512
    %v413 = vsel %vm412, %v385, -inf
    %414 = vmax.xlane.f32.xlu0 %v413
    %v415 = vpop.xlane.xlu0 %414
    %v416 = vsel %vm412, %v409, -inf
    %417 = vmax.xlane.f32.xlu0 %v416
    %v418 = vpop.xlane.xlu0 %417
    %v419 = vsub.f32 %v385, %v415
    %v420 = vsub.f32 %v409, %v418
    %v421 = vmul.f32 %v419, 1.442695
    %v422 = vpow.pop %v421
    %v423 = vmul.f32 %v420, 1.442695
    %v424 = vpow.pop %v423
    %v425 = vsel %vm412, %v422, 0.0
    %426 = vadd.xlane.f32.xlu0 %v425
    %v427 = vpop.xlane.xlu0 %426
    %v428 = vsel %vm412, %v424, 0.0
    %429 = vadd.xlane.f32.xlu0 %v428
    %v430 = vpop.xlane.xlu0 %429
    %v431 = vrcp.pop %v427
    %v432 = vrcp.pop %v430
    %v433 = vmul.f32 %v422, %v431
    %v434 = vmul.f32 %v424, %v432
    %v435 = vpack.c.bf16 %v433, %v433
    %v436 = vpack.c.bf16 %v434, %v434
    %437 = vrot.lane.b32.xlu0 %v365, 96
    %v438 = vpop.permute.xlu0 %437
    %v440 = vsel %vm412, %v435, 0
    %vm442 = vcmask 1043456
    %v444 = vsel %vm442, %v438, 0
    %446 = vmatpush.bf16.msra.mxu0 0
    %447 = vmatpush.bf16.msra.mxu0 0
    %448 = vmatpush.bf16.msra.mxu0 0
    %449 = vmatpush.bf16.msra.mxu0 0
    %450 = vmatpush.bf16.msra.mxu0 0
    %451 = vmatpush.bf16.msra.mxu0 0
    %452 = vmatpush.bf16.msra.mxu0 0
    %453 = vmatpush.bf16.msra.mxu0 %v444
    %454 = vmatmul.bf16.gmra.mxu0 %v440
    %v455 = vpop.f32.mrf.mxu0
    %v456 = vadd.f32 0.0, %v455
    %v457 = vpop.f32.mrf.mxu0
    %458 = vdwg.mxu0
    %459 = vrot.lane.b32.xlu0 %v390, 96
    %v460 = vpop.permute.xlu0 %459
    %v462 = vsel %vm412, %v436, 0
    %v465 = vsel %vm442, %v460, 0
    %467 = vmatpush.bf16.msra.mxu0 0
    %468 = vmatpush.bf16.msra.mxu0 0
    %469 = vmatpush.bf16.msra.mxu0 0
    %470 = vmatpush.bf16.msra.mxu0 0
    %471 = vmatpush.bf16.msra.mxu0 0
    %472 = vmatpush.bf16.msra.mxu0 0
    %473 = vmatpush.bf16.msra.mxu0 0
    %474 = vmatpush.bf16.msra.mxu0 %v465
    %475 = vmatmul.bf16.gmra.mxu0 %v462
    %v476 = vpop.f32.mrf.mxu0
    %v477 = vadd.f32 0.0, %v476
    %v478 = vpop.f32.mrf.mxu0
    %479 = vdwg.mxu0
    %v480 = vpack.c.bf16 %v477, %v456
    %481 = vrot.lane.b32.xlu0 %v365, 80
    %v482 = vpop.permute.xlu0 %481
    %483 = vrot.lane.b32.xlu0 %v365, 64
    %v484 = vpop.permute.xlu0 %483
    %v486 = vsel %vm368, %v482, 0
    %v489 = vsel %vm368, %v484, 0
    %491 = vmatpush.bf16.xpose.msra.mxu0 0
    %492 = vmatpush.bf16.xpose.msra.mxu0 0
    %493 = vmatpush.bf16.xpose.msra.mxu0 0
    %494 = vmatpush.bf16.xpose.msra.mxu0 0
    %495 = vmatpush.bf16.xpose.msra.mxu0 0
    %496 = vmatpush.bf16.xpose.msra.mxu0 0
    %497 = vmatpush.bf16.xpose.msra.mxu0 0
    %498 = vmatpush.bf16.xpose.msra.mxu0 %v489
    %499 = vmatmul.bf16.gmra.mxu0 %v486
    %v500 = vpop.f32.mrf.mxu0
    %v501 = vadd.f32 0.0, %v500
    %v502 = vpop.f32.mrf.mxu0
    %503 = vdwg.mxu0
    %504 = vrot.lane.b32.xlu0 %v390, 80
    %v505 = vpop.permute.xlu0 %504
    %506 = vrot.lane.b32.xlu0 %v390, 64
    %v507 = vpop.permute.xlu0 %506
    %v509 = vsel %vm368, %v505, 0
    %v512 = vsel %vm368, %v507, 0
    %514 = vmatpush.bf16.xpose.msra.mxu0 0
    %515 = vmatpush.bf16.xpose.msra.mxu0 0
    %516 = vmatpush.bf16.xpose.msra.mxu0 0
    %517 = vmatpush.bf16.xpose.msra.mxu0 0
    %518 = vmatpush.bf16.xpose.msra.mxu0 0
    %519 = vmatpush.bf16.xpose.msra.mxu0 0
    %520 = vmatpush.bf16.xpose.msra.mxu0 0
    %521 = vmatpush.bf16.xpose.msra.mxu0 %v512
    %522 = vmatmul.bf16.gmra.mxu0 %v509
    %v523 = vpop.f32.mrf.mxu0
    %v524 = vadd.f32 0.0, %v523
    %v525 = vpop.f32.mrf.mxu0
    %526 = vdwg.mxu0
    %v527 = vsel %vm412, %v501, -inf
    %528 = vmax.xlane.f32.xlu0 %v527
    %v529 = vpop.xlane.xlu0 %528
    %v530 = vsel %vm412, %v524, -inf
    %531 = vmax.xlane.f32.xlu0 %v530
    %v532 = vpop.xlane.xlu0 %531
    %v533 = vsub.f32 %v501, %v529
    %v534 = vsub.f32 %v524, %v532
    %v535 = vmul.f32 %v533, 1.442695
    %v536 = vpow.pop %v535
    %v537 = vmul.f32 %v534, 1.442695
    %v538 = vpow.pop %v537
    %v539 = vsel %vm412, %v536, 0.0
    %540 = vadd.xlane.f32.xlu0 %v539
    %v541 = vpop.xlane.xlu0 %540
    %v542 = vsel %vm412, %v538, 0.0
    %543 = vadd.xlane.f32.xlu0 %v542
    %v544 = vpop.xlane.xlu0 %543
    %v545 = vrcp.pop %v541
    %v546 = vrcp.pop %v544
    %v547 = vmul.f32 %v536, %v545
    %v548 = vmul.f32 %v538, %v546
    %v549 = vpack.c.bf16 %v547, %v547
    %v550 = vpack.c.bf16 %v548, %v548
    %551 = vrot.lane.b32.xlu0 %v365, 48
    %v552 = vpop.permute.xlu0 %551
    %v554 = vsel %vm412, %v549, 0
    %v557 = vsel %vm442, %v552, 0
    %559 = vmatpush.bf16.msra.mxu0 0
    %560 = vmatpush.bf16.msra.mxu0 0
    %561 = vmatpush.bf16.msra.mxu0 0
    %562 = vmatpush.bf16.msra.mxu0 0
    %563 = vmatpush.bf16.msra.mxu0 0
    %564 = vmatpush.bf16.msra.mxu0 0
    %565 = vmatpush.bf16.msra.mxu0 0
    %566 = vmatpush.bf16.msra.mxu0 %v557
    %567 = vmatmul.bf16.gmra.mxu0 %v554
    %v568 = vpop.f32.mrf.mxu0
    %v569 = vadd.f32 0.0, %v568
    %v570 = vpop.f32.mrf.mxu0
    %571 = vdwg.mxu0
    %572 = vrot.lane.b32.xlu0 %v390, 48
    %v573 = vpop.permute.xlu0 %572
    %v575 = vsel %vm412, %v550, 0
    %v578 = vsel %vm442, %v573, 0
    %580 = vmatpush.bf16.msra.mxu0 0
    %581 = vmatpush.bf16.msra.mxu0 0
    %582 = vmatpush.bf16.msra.mxu0 0
    %583 = vmatpush.bf16.msra.mxu0 0
    %584 = vmatpush.bf16.msra.mxu0 0
    %585 = vmatpush.bf16.msra.mxu0 0
    %586 = vmatpush.bf16.msra.mxu0 0
    %587 = vmatpush.bf16.msra.mxu0 %v578
    %588 = vmatmul.bf16.gmra.mxu0 %v575
    %v589 = vpop.f32.mrf.mxu0
    %v590 = vadd.f32 0.0, %v589
    %v591 = vpop.f32.mrf.mxu0
    %592 = vdwg.mxu0
    %v593 = vpack.c.bf16 %v590, %v569
    %v596 = vunpack.c.l.b16 %v254
    %v597 = vunpack.c.l.b16 %v255
    %v598 = vpack.c.b16 %v597, %v596
    %v601 = vsel %vm368, %v593, 0
    %603 = vmatpush.bf16.msra.mxu0 0
    %604 = vmatpush.bf16.msra.mxu0 0
    %605 = vmatpush.bf16.msra.mxu0 0
    %606 = vmatpush.bf16.msra.mxu0 0
    %607 = vmatpush.bf16.msra.mxu0 0
    %608 = vmatpush.bf16.msra.mxu0 0
    %609 = vmatpush.bf16.msra.mxu0 0
    %610 = vmatpush.bf16.msra.mxu0 %v598
    %611 = vmatmul.bf16.gmra.mxu0 %v601
    %v612 = vpop.f32.mrf.mxu0
    %v613 = vadd.f32 0.0, %v612
    %v614 = vpop.f32.mrf.mxu0
    %v615 = vadd.f32 0.0, %v614
    %616 = vdwg.mxu0
    %v619 = vunpack.c.l.b16 %v252
    %v620 = vunpack.c.l.b16 %v253
    %v621 = vpack.c.b16 %v620, %v619
    %v624 = vsel %vm368, %v480, 0
    %626 = vmatpush.bf16.msra.mxu0 0
    %627 = vmatpush.bf16.msra.mxu0 0
    %628 = vmatpush.bf16.msra.mxu0 0
    %629 = vmatpush.bf16.msra.mxu0 0
    %630 = vmatpush.bf16.msra.mxu0 0
    %631 = vmatpush.bf16.msra.mxu0 0
    %632 = vmatpush.bf16.msra.mxu0 0
    %633 = vmatpush.bf16.msra.mxu0 %v621
    %634 = vmatmul.bf16.gmra.mxu0 %v624
    %v635 = vpop.f32.mrf.mxu0
    %v636 = vadd.f32 %v613, %v635
    %v637 = vpop.f32.mrf.mxu0
    %v638 = vadd.f32 %v615, %v637
    %639 = vdwg.mxu0
    %v640 = vpack.c.bf16 %v357, %v357
    %v641 = vpack.c.bf16 %v359, %v359
    %642 = vrot.lane.b32.xlu0 %v365, 32
    %v643 = vpop.permute.xlu0 %642
    %644 = vrot.lane.b32.xlu0 %v365, 16
    %v645 = vpop.permute.xlu0 %644
    %v647 = vsel %vm368, %v643, 0
    %v650 = vsel %vm368, %v645, 0
    %652 = vmatpush.bf16.xpose.msra.mxu0 0
    %653 = vmatpush.bf16.xpose.msra.mxu0 0
    %654 = vmatpush.bf16.xpose.msra.mxu0 0
    %655 = vmatpush.bf16.xpose.msra.mxu0 0
    %656 = vmatpush.bf16.xpose.msra.mxu0 0
    %657 = vmatpush.bf16.xpose.msra.mxu0 0
    %658 = vmatpush.bf16.xpose.msra.mxu0 0
    %659 = vmatpush.bf16.xpose.msra.mxu0 %v650
    %660 = vmatmul.bf16.gmra.mxu0 %v647
    %v661 = vpop.f32.mrf.mxu0
    %v662 = vadd.f32 0.0, %v661
    %v663 = vpop.f32.mrf.mxu0
    %664 = vdwg.mxu0
    %665 = vrot.lane.b32.xlu0 %v390, 32
    %v666 = vpop.permute.xlu0 %665
    %667 = vrot.lane.b32.xlu0 %v390, 16
    %v668 = vpop.permute.xlu0 %667
    %v670 = vsel %vm368, %v666, 0
    %v673 = vsel %vm368, %v668, 0
    %675 = vmatpush.bf16.xpose.msra.mxu0 0
    %676 = vmatpush.bf16.xpose.msra.mxu0 0
    %677 = vmatpush.bf16.xpose.msra.mxu0 0
    %678 = vmatpush.bf16.xpose.msra.mxu0 0
    %679 = vmatpush.bf16.xpose.msra.mxu0 0
    %680 = vmatpush.bf16.xpose.msra.mxu0 0
    %681 = vmatpush.bf16.xpose.msra.mxu0 0
    %682 = vmatpush.bf16.xpose.msra.mxu0 %v673
    %683 = vmatmul.bf16.gmra.mxu0 %v670
    %v684 = vpop.f32.mrf.mxu0
    %v685 = vadd.f32 0.0, %v684
    %v686 = vpop.f32.mrf.mxu0
    %687 = vdwg.mxu0
    %v688 = vsel %vm412, %v662, -inf
    %689 = vmax.xlane.f32.xlu0 %v688
    %v690 = vpop.xlane.xlu0 %689
    %v691 = vsel %vm412, %v685, -inf
    %692 = vmax.xlane.f32.xlu0 %v691
    %v693 = vpop.xlane.xlu0 %692
    %v694 = vsub.f32 %v662, %v690
    %v695 = vsub.f32 %v685, %v693
    %v696 = vmul.f32 %v694, 1.442695
    %v697 = vpow.pop %v696
    %v698 = vmul.f32 %v695, 1.442695
    %v699 = vpow.pop %v698
    %v700 = vsel %vm412, %v697, 0.0
    %701 = vadd.xlane.f32.xlu0 %v700
    %v702 = vpop.xlane.xlu0 %701
    %v703 = vsel %vm412, %v699, 0.0
    %704 = vadd.xlane.f32.xlu0 %v703
    %v705 = vpop.xlane.xlu0 %704
    %v706 = vrcp.pop %v702
    %v707 = vrcp.pop %v705
    %v708 = vmul.f32 %v697, %v706
    %v709 = vmul.f32 %v699, %v707
    %v710 = vpack.c.bf16 %v708, %v708
    %v711 = vpack.c.bf16 %v709, %v709
    %v713 = vsel %vm412, %v710, 0
    %v716 = vsel %vm442, %v640, 0
    %718 = vmatpush.bf16.msra.mxu0 0
    %719 = vmatpush.bf16.msra.mxu0 0
    %720 = vmatpush.bf16.msra.mxu0 0
    %721 = vmatpush.bf16.msra.mxu0 0
    %722 = vmatpush.bf16.msra.mxu0 0
    %723 = vmatpush.bf16.msra.mxu0 0
    %724 = vmatpush.bf16.msra.mxu0 0
    %725 = vmatpush.bf16.msra.mxu0 %v716
    %726 = vmatmul.bf16.gmra.mxu0 %v713
    %v727 = vpop.f32.mrf.mxu0
    %v728 = vadd.f32 0.0, %v727
    %v729 = vpop.f32.mrf.mxu0
    %730 = vdwg.mxu0
    %v732 = vsel %vm412, %v711, 0
    %v735 = vsel %vm442, %v641, 0
    %737 = vmatpush.bf16.msra.mxu0 0
    %738 = vmatpush.bf16.msra.mxu0 0
    %739 = vmatpush.bf16.msra.mxu0 0
    %740 = vmatpush.bf16.msra.mxu0 0
    %741 = vmatpush.bf16.msra.mxu0 0
    %742 = vmatpush.bf16.msra.mxu0 0
    %743 = vmatpush.bf16.msra.mxu0 0
    %744 = vmatpush.bf16.msra.mxu0 %v735
    %745 = vmatmul.bf16.gmra.mxu0 %v732
    %v746 = vpop.f32.mrf.mxu0
    %v747 = vadd.f32 0.0, %v746
    %v748 = vpop.f32.mrf.mxu0
    %749 = vdwg.mxu0
    %v750 = vpack.c.bf16 %v747, %v728
    %v753 = vunpack.c.l.b16 %v256
    %v754 = vunpack.c.l.b16 %v257
    %v755 = vpack.c.b16 %v754, %v753
    %v758 = vsel %vm368, %v750, 0
    %760 = vmatpush.bf16.msra.mxu0 0
    %761 = vmatpush.bf16.msra.mxu0 0
    %762 = vmatpush.bf16.msra.mxu0 0
    %763 = vmatpush.bf16.msra.mxu0 0
    %764 = vmatpush.bf16.msra.mxu0 0
    %765 = vmatpush.bf16.msra.mxu0 0
    %766 = vmatpush.bf16.msra.mxu0 0
    %767 = vmatpush.bf16.msra.mxu0 %v755
    %768 = vmatmul.bf16.gmra.mxu0 %v758
    %v769 = vpop.f32.mrf.mxu0
    %v770 = vadd.f32 0.0, %v769
    %v771 = vpop.f32.mrf.mxu0
    %v772 = vadd.f32 0.0, %v771
    %773 = vdwg.mxu0
    %v774 = vadd.f32 %v636, %v770
    %v775 = vadd.f32 %v638, %v772
    %v777 = vunpack.c.l.b16 %v640
    %v778 = vpack.c.b16 %v777, %v777
    %779 = vrot.lane.b32.xlu0 %v778, 112
    %v780 = vpop.permute.xlu0 %779
    %781 = vrot.lane.b32.xlu0 %v778, 96
    %v782 = vpop.permute.xlu0 %781
    %v784 = vsel %vm368, %v780, 0
    %v787 = vsel %vm368, %v782, 0
    %789 = vmatpush.bf16.xpose.msra.mxu0 0
    %790 = vmatpush.bf16.xpose.msra.mxu0 0
    %791 = vmatpush.bf16.xpose.msra.mxu0 0
    %792 = vmatpush.bf16.xpose.msra.mxu0 0
    %793 = vmatpush.bf16.xpose.msra.mxu0 0
    %794 = vmatpush.bf16.xpose.msra.mxu0 0
    %795 = vmatpush.bf16.xpose.msra.mxu0 0
    %796 = vmatpush.bf16.xpose.msra.mxu0 %v787
    %797 = vmatmul.bf16.gmra.mxu0 %v784
    %v798 = vpop.f32.mrf.mxu0
    %v799 = vadd.f32 0.0, %v798
    %v800 = vpop.f32.mrf.mxu0
    %801 = vdwg.mxu0
    %v803 = vunpack.c.l.b16 %v641
    %v804 = vpack.c.b16 %v803, %v803
    %805 = vrot.lane.b32.xlu0 %v804, 112
    %v806 = vpop.permute.xlu0 %805
    %807 = vrot.lane.b32.xlu0 %v804, 96
    %v808 = vpop.permute.xlu0 %807
    %v810 = vsel %vm368, %v806, 0
    %v813 = vsel %vm368, %v808, 0
    %815 = vmatpush.bf16.xpose.msra.mxu0 0
    %816 = vmatpush.bf16.xpose.msra.mxu0 0
    %817 = vmatpush.bf16.xpose.msra.mxu0 0
    %818 = vmatpush.bf16.xpose.msra.mxu0 0
    %819 = vmatpush.bf16.xpose.msra.mxu0 0
    %820 = vmatpush.bf16.xpose.msra.mxu0 0
    %821 = vmatpush.bf16.xpose.msra.mxu0 0
    %822 = vmatpush.bf16.xpose.msra.mxu0 %v813
    %823 = vmatmul.bf16.gmra.mxu0 %v810
    %v824 = vpop.f32.mrf.mxu0
    %v825 = vadd.f32 0.0, %v824
    %v826 = vpop.f32.mrf.mxu0
    %827 = vdwg.mxu0
    %v828 = vsel %vm412, %v799, -inf
    %829 = vmax.xlane.f32.xlu0 %v828
    %v830 = vpop.xlane.xlu0 %829
    %v831 = vsel %vm412, %v825, -inf
    %832 = vmax.xlane.f32.xlu0 %v831
    %v833 = vpop.xlane.xlu0 %832
    %v834 = vsub.f32 %v799, %v830
    %v835 = vsub.f32 %v825, %v833
    %v836 = vmul.f32 %v834, 1.442695
    %v837 = vpow.pop %v836
    %v838 = vmul.f32 %v835, 1.442695
    %v839 = vpow.pop %v838
    %v840 = vsel %vm412, %v837, 0.0
    %841 = vadd.xlane.f32.xlu0 %v840
    %v842 = vpop.xlane.xlu0 %841
    %v843 = vsel %vm412, %v839, 0.0
    %844 = vadd.xlane.f32.xlu0 %v843
    %v845 = vpop.xlane.xlu0 %844
    %v846 = vrcp.pop %v842
    %v847 = vrcp.pop %v845
    %v848 = vmul.f32 %v837, %v846
    %v849 = vmul.f32 %v839, %v847
    %v850 = vpack.c.bf16 %v848, %v848
    %v851 = vpack.c.bf16 %v849, %v849
    %852 = vrot.lane.b32.xlu0 %v778, 80
    %v853 = vpop.permute.xlu0 %852
    %v855 = vsel %vm412, %v850, 0
    %v858 = vsel %vm442, %v853, 0
    %860 = vmatpush.bf16.msra.mxu0 0
    %861 = vmatpush.bf16.msra.mxu0 0
    %862 = vmatpush.bf16.msra.mxu0 0
    %863 = vmatpush.bf16.msra.mxu0 0
    %864 = vmatpush.bf16.msra.mxu0 0
    %865 = vmatpush.bf16.msra.mxu0 0
    %866 = vmatpush.bf16.msra.mxu0 0
    %867 = vmatpush.bf16.msra.mxu0 %v858
    %868 = vmatmul.bf16.gmra.mxu0 %v855
    %v869 = vpop.f32.mrf.mxu0
    %v870 = vadd.f32 0.0, %v869
    %v871 = vpop.f32.mrf.mxu0
    %872 = vdwg.mxu0
    %873 = vrot.lane.b32.xlu0 %v804, 80
    %v874 = vpop.permute.xlu0 %873
    %v876 = vsel %vm412, %v851, 0
    %v879 = vsel %vm442, %v874, 0
    %881 = vmatpush.bf16.msra.mxu0 0
    %882 = vmatpush.bf16.msra.mxu0 0
    %883 = vmatpush.bf16.msra.mxu0 0
    %884 = vmatpush.bf16.msra.mxu0 0
    %885 = vmatpush.bf16.msra.mxu0 0
    %886 = vmatpush.bf16.msra.mxu0 0
    %887 = vmatpush.bf16.msra.mxu0 0
    %888 = vmatpush.bf16.msra.mxu0 %v879
    %889 = vmatmul.bf16.gmra.mxu0 %v876
    %v890 = vpop.f32.mrf.mxu0
    %v891 = vadd.f32 0.0, %v890
    %v892 = vpop.f32.mrf.mxu0
    %893 = vdwg.mxu0
    %v894 = vpack.c.bf16 %v891, %v870
    %v897 = vunpack.c.l.b16 %v258
    %v898 = vunpack.c.l.b16 %v259
    %v899 = vpack.c.b16 %v898, %v897
    %v902 = vsel %vm368, %v894, 0
    %904 = vmatpush.bf16.msra.mxu0 0
    %905 = vmatpush.bf16.msra.mxu0 0
    %906 = vmatpush.bf16.msra.mxu0 0
    %907 = vmatpush.bf16.msra.mxu0 0
    %908 = vmatpush.bf16.msra.mxu0 0
    %909 = vmatpush.bf16.msra.mxu0 0
    %910 = vmatpush.bf16.msra.mxu0 0
    %911 = vmatpush.bf16.msra.mxu0 %v899
    %912 = vmatmul.bf16.gmra.mxu0 %v902
    %v913 = vpop.f32.mrf.mxu0
    %v914 = vadd.f32 0.0, %v913
    %v915 = vpop.f32.mrf.mxu0
    %v916 = vadd.f32 0.0, %v915
    %917 = vdwg.mxu0
    %v918 = vadd.f32 %v774, %v914
    %v919 = vadd.f32 %v775, %v916
    %v920 = vperm.slane %v284, 2
    %v921 = vadd.f32 %v918, %v920
    %v922 = vadd.f32 %v919, %v920
    %v923 = vadd.f32 %v242, %v921
    %v924 = vadd.f32 %v243, %v922
    %v925 = vsel %vm329, %v923, 0.0
    %926 = vadd.xlane.f32.xlu0 %v925
    %v927 = vpop.xlane.xlu0 %926
    %v928 = vsel %vm329, %v924, 0.0
    %929 = vadd.xlane.f32.xlu0 %v928
    %v930 = vpop.xlane.xlu0 %929
    %v931 = vrcp.pop 64.0
    %v932 = vmul.f32 64.0, %v931
    %v933 = vsub.f32 1.0, %v932
    %v934 = vmul.f32 %v931, %v933
    %v935 = vadd.f32 %v931, %v934
    %vm936 = vweird.f32 %v931
    %v937 = vsel %vm936, %v931, %v935
    %v938 = vmul.f32 %v927, %v937
    %v939 = vmul.f32 %v930, %v937
    %v940 = vsub.f32 %v923, %v938
    %v941 = vsub.f32 %v924, %v939
    %v942 = vmul.f32 %v940, %v940
    %v943 = vmul.f32 %v941, %v941
    %v944 = vsel %vm329, %v942, 0.0
    %945 = vadd.xlane.f32.xlu0 %v944
    %v946 = vpop.xlane.xlu0 %945
    %v947 = vsel %vm329, %v943, 0.0
    %948 = vadd.xlane.f32.xlu0 %v947
    %v949 = vpop.xlane.xlu0 %948
    %v950 = vmul.f32 %v946, %v937
    %v951 = vmul.f32 %v949, %v937
    %v952 = vadd.f32 %v950, 1e-05
    %v953 = vadd.f32 %v951, 1e-05
    %v954 = vrsqrt.pop %v952
    %v955 = vmul.f32 %v954, %v952
    %v956 = vmul.f32 %v955, %v954
    %v957 = vmul.f32 0.5, %v956
    %v958 = vsub.f32 1.5, %v957
    %v959 = vmul.f32 %v954, %v958
    %vm960 = vweird.f32 %v952
    %vm961 = vweird.f32 %v954
    %vm962 = vmor %vm960, %vm961
    %v963 = vsel %vm962, %v954, %v959
    %v964 = vrsqrt.pop %v953
    %v965 = vmul.f32 %v964, %v953
    %v966 = vmul.f32 %v965, %v964
    %v967 = vmul.f32 0.5, %v966
    %v968 = vsub.f32 1.5, %v967
    %v969 = vmul.f32 %v964, %v968
    %vm970 = vweird.f32 %v953
    %vm971 = vweird.f32 %v964
    %vm972 = vmor %vm970, %vm971
    %v973 = vsel %vm972, %v964, %v969
    %v974 = vmul.f32 %v940, %v963
    %v975 = vmul.f32 %v941, %v973
    %v976 = vperm.slane %v284, 3
    %v977 = vmul.f32 %v974, %v976
    %v978 = vmul.f32 %v975, %v976
    %v979 = vperm.slane %v284, 4
    %v980 = vadd.f32 %v977, %v979
    %v981 = vadd.f32 %v978, %v979
    %v982 = vpack.c.bf16 %v981, %v980
    %v983 = vperm.slane %v284, 1
    %v992 = vunpack.c.l.b16 %v260
    %v993 = vunpack.c.l.b16 %v261
    %v994 = vunpack.c.l.b16 %v262
    %v995 = vunpack.c.l.b16 %v263
    %v996 = vunpack.c.l.b16 %v264
    %v997 = vunpack.c.l.b16 %v265
    %v998 = vunpack.c.l.b16 %v266
    %v999 = vunpack.c.l.b16 %v267
    %v1000 = vpack.c.b16 %v993, %v992
    %v1001 = vpack.c.b16 %v995, %v994
    %v1002 = vpack.c.b16 %v997, %v996
    %v1003 = vpack.c.b16 %v999, %v998
    %v1009 = vsel %vm329, %v982, 0
    %1011 = vmatpush.bf16.msra.mxu0 0
    %1012 = vmatpush.bf16.msra.mxu0 0
    %1013 = vmatpush.bf16.msra.mxu0 0
    %1014 = vmatpush.bf16.msra.mxu0 0
    %1015 = vmatpush.bf16.msra.mxu0 %v1003
    %1016 = vmatpush.bf16.msra.mxu0 %v1002
    %1017 = vmatpush.bf16.msra.mxu0 %v1001
    %1018 = vmatpush.bf16.msra.mxu0 %v1000
    %1019 = vmatmul.bf16.gmra.mxu0 %v1009
    %v1020 = vpop.f32.mrf.mxu0
    %v1021 = vadd.f32 %v983, %v1020
    %v1022 = vpop.f32.mrf.mxu0
    %v1023 = vadd.f32 %v983, %v1022
    %1024 = vdwg.mxu0
    %v1025 = vmax.f32 %v1021, 0.0
    %v1026 = vmax.f32 %v1023, 0.0
    %v1027 = vpack.c.bf16 %v1026, %v1025
    %v1028 = vperm.slane %v284, 5
    %v1045 = vunpack.c.l.b16 %v268
    %v1046 = vunpack.c.l.b16 %v269
    %v1047 = vunpack.c.l.b16 %v270
    %v1048 = vunpack.c.l.b16 %v271
    %v1049 = vunpack.c.l.b16 %v272
    %v1050 = vunpack.c.l.b16 %v273
    %v1051 = vunpack.c.l.b16 %v274
    %v1052 = vunpack.c.l.b16 %v275
    %v1053 = vunpack.c.l.b16 %v276
    %v1054 = vunpack.c.l.b16 %v277
    %v1055 = vunpack.c.l.b16 %v278
    %v1056 = vunpack.c.l.b16 %v279
    %v1057 = vunpack.c.l.b16 %v280
    %v1058 = vunpack.c.l.b16 %v281
    %v1059 = vunpack.c.l.b16 %v282
    %v1060 = vunpack.c.l.b16 %v283
    %v1061 = vpack.c.b16 %v1046, %v1045
    %v1062 = vpack.c.b16 %v1048, %v1047
    %v1063 = vpack.c.b16 %v1050, %v1049
    %v1064 = vpack.c.b16 %v1052, %v1051
    %v1065 = vpack.c.b16 %v1054, %v1053
    %v1066 = vpack.c.b16 %v1056, %v1055
    %v1067 = vpack.c.b16 %v1058, %v1057
    %v1068 = vpack.c.b16 %v1060, %v1059
    %1077 = vmatpush.bf16.msra.mxu0 %v1068
    %1078 = vmatpush.bf16.msra.mxu0 %v1067
    %1079 = vmatpush.bf16.msra.mxu0 %v1066
    %1080 = vmatpush.bf16.msra.mxu0 %v1065
    %1081 = vmatpush.bf16.msra.mxu0 %v1064
    %1082 = vmatpush.bf16.msra.mxu0 %v1063
    %1083 = vmatpush.bf16.msra.mxu0 %v1062
    %1084 = vmatpush.bf16.msra.mxu0 %v1061
    %1085 = vmatmul.bf16.gmra.mxu0 %v1027
    %v1086 = vpop.f32.mrf.mxu0
    %v1087 = vadd.f32 %v1028, %v1086
    %v1088 = vpop.f32.mrf.mxu0
    %v1089 = vadd.f32 %v1028, %v1088
    %1090 = vdwg.mxu0
    %v1091 = vadd.f32 %v980, %v1087
    %v1092 = vadd.f32 %v981, %v1089
    %v1093 = vsel %vm329, %v1091, 0.0
    %1094 = vadd.xlane.f32.xlu0 %v1093
    %v1095 = vpop.xlane.xlu0 %1094
    %v1096 = vsel %vm329, %v1092, 0.0
    %1097 = vadd.xlane.f32.xlu0 %v1096
    %v1098 = vpop.xlane.xlu0 %1097
    %v1099 = vmul.f32 %v1095, %v937
    %v1100 = vmul.f32 %v1098, %v937
    %v1101 = vsub.f32 %v1091, %v1099
    %v1102 = vsub.f32 %v1092, %v1100
    %v1103 = vmul.f32 %v1101, %v1101
    %v1104 = vmul.f32 %v1102, %v1102
    %v1105 = vsel %vm329, %v1103, 0.0
    %1106 = vadd.xlane.f32.xlu0 %v1105
    %v1107 = vpop.xlane.xlu0 %1106
    %v1108 = vsel %vm329, %v1104, 0.0
    %1109 = vadd.xlane.f32.xlu0 %v1108
    %v1110 = vpop.xlane.xlu0 %1109
    %v1111 = vmul.f32 %v1107, %v937
    %v1112 = vmul.f32 %v1110, %v937
    %v1113 = vadd.f32 %v1111, 1e-05
    %v1114 = vadd.f32 %v1112, 1e-05
    %v1115 = vrsqrt.pop %v1113
    %v1116 = vmul.f32 %v1115, %v1113
    %v1117 = vmul.f32 %v1116, %v1115
    %v1118 = vmul.f32 0.5, %v1117
    %v1119 = vsub.f32 1.5, %v1118
    %v1120 = vmul.f32 %v1115, %v1119
    %vm1121 = vweird.f32 %v1113
    %vm1122 = vweird.f32 %v1115
    %vm1123 = vmor %vm1121, %vm1122
    %v1124 = vsel %vm1123, %v1115, %v1120
    %v1125 = vrsqrt.pop %v1114
    %v1126 = vmul.f32 %v1125, %v1114
    %v1127 = vmul.f32 %v1126, %v1125
    %v1128 = vmul.f32 0.5, %v1127
    %v1129 = vsub.f32 1.5, %v1128
    %v1130 = vmul.f32 %v1125, %v1129
    %vm1131 = vweird.f32 %v1114
    %vm1132 = vweird.f32 %v1125
    %vm1133 = vmor %vm1131, %vm1132
    %v1134 = vsel %vm1133, %v1125, %v1130
    %v1135 = vmul.f32 %v1101, %v1124
    %v1136 = vmul.f32 %v1102, %v1134
    %v1137 = vperm.slane %v284, 6
    %v1138 = vmul.f32 %v1135, %v1137
    %v1139 = vmul.f32 %v1136, %v1137
    %v1140 = vperm.slane %v284, 7
    %v1141 = vadd.f32 %v1138, %v1140
    %v1142 = vadd.f32 %v1139, %v1140
    %s1143 = smul.u32 4, 8
    %s1144 = smul.u32 %s1143, 2
    %s1145 = sshll.u32 %s1144, 4
    %1146 = dma.done [#allocation7], %s1145
    %s1147 = smul.u32 4, 4
    %s1148 = smul.u32 %s1147, 2
    %s1149 = smul.u32 %s1148, 1
    %s1150 = sshll.u32 %s1149, 4
    %1151 = dma.done %s164, %s1150
    %s1152 = smul.u32 %s1143, 1
    %s1153 = sshll.u32 %s1152, 4
    %1154 = dma.done %s178, %s1153
    %s1155 = smul.u32 4, 16
    %s1156 = smul.u32 %s1155, 1
    %s1157 = sshll.u32 %s1156, 4
    %1158 = dma.done %s192, %s1157
    %s1159 = smul.u32 8, 1
    %s1160 = smul.u32 %s1159, 2
    %s1161 = sshll.u32 %s1160, 4
    %1162 = dma.done %s225, %s1161
    %v1163 = vld [vmem:[#allocation2] sm:$0xff]
    %v1164 = vld [vmem:[#allocation2 + $0x8] sm:$0xff]
    %v1165 = vld [vmem:[#allocation2 + $0x10] sm:$0xff]
    %v1166 = vld [vmem:[#allocation2 + $0x18] sm:$0xff]
    %v1167 = vld [vmem:[#allocation2 + $0x20] sm:$0xff]
    %v1168 = vld [vmem:[#allocation2 + $0x28] sm:$0xff]
    %v1169 = vld [vmem:[#allocation2 + $0x30] sm:$0xff]
    %v1170 = vld [vmem:[#allocation2 + $0x38] sm:$0xff]
    %v1171 = vld [vmem:[#allocation3] sm:$0xf]
    %v1172 = vld [vmem:[#allocation3 + $0x4] sm:$0xf]
    %v1173 = vld [vmem:[#allocation3 + $0x8] sm:$0xf]
    %v1174 = vld [vmem:[#allocation3 + $0xc] sm:$0xf]
    %v1175 = vld [vmem:[#allocation3 + $0x10] sm:$0xf]
    %v1176 = vld [vmem:[#allocation3 + $0x14] sm:$0xf]
    %v1177 = vld [vmem:[#allocation3 + $0x18] sm:$0xf]
    %v1178 = vld [vmem:[#allocation3 + $0x1c] sm:$0xf]
    %v1179 = vld [vmem:[#allocation4] sm:$0xf]
    %v1180 = vld [vmem:[#allocation4 + $0x4] sm:$0xf]
    %v1181 = vld [vmem:[#allocation4 + $0x8] sm:$0xf]
    %v1182 = vld [vmem:[#allocation4 + $0xc] sm:$0xf]
    %v1183 = vld [vmem:[#allocation4 + $0x10] sm:$0xf]
    %v1184 = vld [vmem:[#allocation4 + $0x14] sm:$0xf]
    %v1185 = vld [vmem:[#allocation4 + $0x18] sm:$0xf]
    %v1186 = vld [vmem:[#allocation4 + $0x1c] sm:$0xf]
    %v1187 = vld [vmem:[#allocation5] sm:$0xf]
    %v1188 = vld [vmem:[#allocation5 + $0x4] sm:$0xf]
    %v1189 = vld [vmem:[#allocation5 + $0x8] sm:$0xf]
    %v1190 = vld [vmem:[#allocation5 + $0xc] sm:$0xf]
    %v1191 = vld [vmem:[#allocation5 + $0x10] sm:$0xf]
    %v1192 = vld [vmem:[#allocation5 + $0x14] sm:$0xf]
    %v1193 = vld [vmem:[#allocation5 + $0x18] sm:$0xf]
    %v1194 = vld [vmem:[#allocation5 + $0x1c] sm:$0xf]
    %v1195 = vld [vmem:[#allocation5 + $0x20] sm:$0xf]
    %v1196 = vld [vmem:[#allocation5 + $0x24] sm:$0xf]
    %v1197 = vld [vmem:[#allocation5 + $0x28] sm:$0xf]
    %v1198 = vld [vmem:[#allocation5 + $0x2c] sm:$0xf]
    %v1199 = vld [vmem:[#allocation5 + $0x30] sm:$0xf]
    %v1200 = vld [vmem:[#allocation5 + $0x34] sm:$0xf]
    %v1201 = vld [vmem:[#allocation5 + $0x38] sm:$0xf]
    %v1202 = vld [vmem:[#allocation5 + $0x3c] sm:$0xf]
    %v1203 = vld [vmem:[#allocation6] sm:$0xff]
    %v1204 = vld [vmem:[#allocation6 + $0x8] sm:$0xff]
    %v1205 = vpack.c.bf16 %v1142, %v1141
    %v1206 = vperm.slane %v1203, 0
    %v1207 = vperm.slane %v1204, 0
    %v1216 = vunpack.c.l.b16 %v1163
    %v1217 = vunpack.c.h.b16 %v1163
    %v1218 = vunpack.c.l.b16 %v1164
    %v1219 = vunpack.c.h.b16 %v1164
    %v1220 = vunpack.c.l.b16 %v1165
    %v1221 = vunpack.c.h.b16 %v1165
    %v1222 = vunpack.c.l.b16 %v1166
    %v1223 = vunpack.c.h.b16 %v1166
    %v1224 = vunpack.c.l.b16 %v1167
    %v1225 = vunpack.c.h.b16 %v1167
    %v1226 = vunpack.c.l.b16 %v1168
    %v1227 = vunpack.c.h.b16 %v1168
    %v1228 = vunpack.c.l.b16 %v1169
    %v1229 = vunpack.c.h.b16 %v1169
    %v1230 = vunpack.c.l.b16 %v1170
    %v1231 = vunpack.c.h.b16 %v1170
    %v1232 = vpack.c.b16 %v1218, %v1216
    %v1233 = vpack.c.b16 %v1219, %v1217
    %v1234 = vpack.c.b16 %v1222, %v1220
    %v1235 = vpack.c.b16 %v1223, %v1221
    %v1236 = vpack.c.b16 %v1226, %v1224
    %v1237 = vpack.c.b16 %v1227, %v1225
    %v1238 = vpack.c.b16 %v1230, %v1228
    %v1239 = vpack.c.b16 %v1231, %v1229
    %v1249 = vsel %vm329, %v1205, 0
    %1251 = vmatpush.bf16.msra.mxu0 0
    %1252 = vmatpush.bf16.msra.mxu0 0
    %1253 = vmatpush.bf16.msra.mxu0 0
    %1254 = vmatpush.bf16.msra.mxu0 0
    %1255 = vmatpush.bf16.msra.mxu0 %v1238
    %1256 = vmatpush.bf16.msra.mxu0 %v1236
    %1257 = vmatpush.bf16.msra.mxu0 %v1234
    %1258 = vmatpush.bf16.msra.mxu0 %v1232
    %1259 = vmatmul.bf16.gmra.mxu0 %v1249
    %v1260 = vpop.f32.mrf.mxu0
    %v1261 = vadd.f32 %v1206, %v1260
    %v1262 = vpop.f32.mrf.mxu0
    %v1263 = vadd.f32 %v1206, %v1262
    %1264 = vdwg.mxu0
    %1265 = vmatpush.bf16.msra.mxu0 0
    %1266 = vmatpush.bf16.msra.mxu0 0
    %1267 = vmatpush.bf16.msra.mxu0 0
    %1268 = vmatpush.bf16.msra.mxu0 0
    %1269 = vmatpush.bf16.msra.mxu0 %v1239
    %1270 = vmatpush.bf16.msra.mxu0 %v1237
    %1271 = vmatpush.bf16.msra.mxu0 %v1235
    %1272 = vmatpush.bf16.msra.mxu0 %v1233
    %1273 = vmatmul.bf16.gmra.mxu0 %v1249
    %v1274 = vpop.f32.mrf.mxu0
    %v1275 = vadd.f32 %v1207, %v1274
    %v1276 = vpop.f32.mrf.mxu0
    %v1277 = vadd.f32 %v1207, %v1276
    %1278 = vdwg.mxu0
    %v1279 = vpack.c.bf16 %v1261, %v1261
    %v1280 = vpack.c.bf16 %v1263, %v1263
    %v1282 = vunpack.c.l.b16 %v1279
    %v1283 = vpack.c.b16 %v1282, %v1282
    %1284 = vrot.lane.b32.xlu0 %v1283, 112
    %v1285 = vpop.permute.xlu0 %1284
    %v1287 = vsel %vm368, %v1279, 0
    %v1290 = vsel %vm368, %v1285, 0
    %1292 = vmatpush.bf16.xpose.msra.mxu0 0
    %1293 = vmatpush.bf16.xpose.msra.mxu0 0
    %1294 = vmatpush.bf16.xpose.msra.mxu0 0
    %1295 = vmatpush.bf16.xpose.msra.mxu0 0
    %1296 = vmatpush.bf16.xpose.msra.mxu0 0
    %1297 = vmatpush.bf16.xpose.msra.mxu0 0
    %1298 = vmatpush.bf16.xpose.msra.mxu0 0
    %1299 = vmatpush.bf16.xpose.msra.mxu0 %v1290
    %1300 = vmatmul.bf16.gmra.mxu0 %v1287
    %v1301 = vpop.f32.mrf.mxu0
    %v1302 = vadd.f32 0.0, %v1301
    %v1303 = vpop.f32.mrf.mxu0
    %1304 = vdwg.mxu0
    %v1306 = vunpack.c.l.b16 %v1280
    %v1307 = vpack.c.b16 %v1306, %v1306
    %1308 = vrot.lane.b32.xlu0 %v1307, 112
    %v1309 = vpop.permute.xlu0 %1308
    %v1311 = vsel %vm368, %v1280, 0
    %v1314 = vsel %vm368, %v1309, 0
    %1316 = vmatpush.bf16.xpose.msra.mxu0 0
    %1317 = vmatpush.bf16.xpose.msra.mxu0 0
    %1318 = vmatpush.bf16.xpose.msra.mxu0 0
    %1319 = vmatpush.bf16.xpose.msra.mxu0 0
    %1320 = vmatpush.bf16.xpose.msra.mxu0 0
    %1321 = vmatpush.bf16.xpose.msra.mxu0 0
    %1322 = vmatpush.bf16.xpose.msra.mxu0 0
    %1323 = vmatpush.bf16.xpose.msra.mxu0 %v1314
    %1324 = vmatmul.bf16.gmra.mxu0 %v1311
    %v1325 = vpop.f32.mrf.mxu0
    %v1326 = vadd.f32 0.0, %v1325
    %v1327 = vpop.f32.mrf.mxu0
    %1328 = vdwg.mxu0
    %v1329 = vsel %vm412, %v1302, -inf
    %1330 = vmax.xlane.f32.xlu0 %v1329
    %v1331 = vpop.xlane.xlu0 %1330
    %v1332 = vsel %vm412, %v1326, -inf
    %1333 = vmax.xlane.f32.xlu0 %v1332
    %v1334 = vpop.xlane.xlu0 %1333
    %v1335 = vsub.f32 %v1302, %v1331
    %v1336 = vsub.f32 %v1326, %v1334
    %v1337 = vmul.f32 %v1335, 1.442695
    %v1338 = vpow.pop %v1337
    %v1339 = vmul.f32 %v1336, 1.442695
    %v1340 = vpow.pop %v1339
    %v1341 = vsel %vm412, %v1338, 0.0
    %1342 = vadd.xlane.f32.xlu0 %v1341
    %v1343 = vpop.xlane.xlu0 %1342
    %v1344 = vsel %vm412, %v1340, 0.0
    %1345 = vadd.xlane.f32.xlu0 %v1344
    %v1346 = vpop.xlane.xlu0 %1345
    %v1347 = vrcp.pop %v1343
    %v1348 = vrcp.pop %v1346
    %v1349 = vmul.f32 %v1338, %v1347
    %v1350 = vmul.f32 %v1340, %v1348
    %v1351 = vpack.c.bf16 %v1349, %v1349
    %v1352 = vpack.c.bf16 %v1350, %v1350
    %1353 = vrot.lane.b32.xlu0 %v1283, 96
    %v1354 = vpop.permute.xlu0 %1353
    %v1356 = vsel %vm412, %v1351, 0
    %v1359 = vsel %vm442, %v1354, 0
    %1361 = vmatpush.bf16.msra.mxu0 0
    %1362 = vmatpush.bf16.msra.mxu0 0
    %1363 = vmatpush.bf16.msra.mxu0 0
    %1364 = vmatpush.bf16.msra.mxu0 0
    %1365 = vmatpush.bf16.msra.mxu0 0
    %1366 = vmatpush.bf16.msra.mxu0 0
    %1367 = vmatpush.bf16.msra.mxu0 0
    %1368 = vmatpush.bf16.msra.mxu0 %v1359
    %1369 = vmatmul.bf16.gmra.mxu0 %v1356
    %v1370 = vpop.f32.mrf.mxu0
    %v1371 = vadd.f32 0.0, %v1370
    %v1372 = vpop.f32.mrf.mxu0
    %1373 = vdwg.mxu0
    %1374 = vrot.lane.b32.xlu0 %v1307, 96
    %v1375 = vpop.permute.xlu0 %1374
    %v1377 = vsel %vm412, %v1352, 0
    %v1380 = vsel %vm442, %v1375, 0
    %1382 = vmatpush.bf16.msra.mxu0 0
    %1383 = vmatpush.bf16.msra.mxu0 0
    %1384 = vmatpush.bf16.msra.mxu0 0
    %1385 = vmatpush.bf16.msra.mxu0 0
    %1386 = vmatpush.bf16.msra.mxu0 0
    %1387 = vmatpush.bf16.msra.mxu0 0
    %1388 = vmatpush.bf16.msra.mxu0 0
    %1389 = vmatpush.bf16.msra.mxu0 %v1380
    %1390 = vmatmul.bf16.gmra.mxu0 %v1377
    %v1391 = vpop.f32.mrf.mxu0
    %v1392 = vadd.f32 0.0, %v1391
    %v1393 = vpop.f32.mrf.mxu0
    %1394 = vdwg.mxu0
    %v1395 = vpack.c.bf16 %v1392, %v1371
    %1396 = vrot.lane.b32.xlu0 %v1283, 80
    %v1397 = vpop.permute.xlu0 %1396
    %1398 = vrot.lane.b32.xlu0 %v1283, 64
    %v1399 = vpop.permute.xlu0 %1398
    %v1401 = vsel %vm368, %v1397, 0
    %v1404 = vsel %vm368, %v1399, 0
    %1406 = vmatpush.bf16.xpose.msra.mxu0 0
    %1407 = vmatpush.bf16.xpose.msra.mxu0 0
    %1408 = vmatpush.bf16.xpose.msra.mxu0 0
    %1409 = vmatpush.bf16.xpose.msra.mxu0 0
    %1410 = vmatpush.bf16.xpose.msra.mxu0 0
    %1411 = vmatpush.bf16.xpose.msra.mxu0 0
    %1412 = vmatpush.bf16.xpose.msra.mxu0 0
    %1413 = vmatpush.bf16.xpose.msra.mxu0 %v1404
    %1414 = vmatmul.bf16.gmra.mxu0 %v1401
    %v1415 = vpop.f32.mrf.mxu0
    %v1416 = vadd.f32 0.0, %v1415
    %v1417 = vpop.f32.mrf.mxu0
    %1418 = vdwg.mxu0
    %1419 = vrot.lane.b32.xlu0 %v1307, 80
    %v1420 = vpop.permute.xlu0 %1419
    %1421 = vrot.lane.b32.xlu0 %v1307, 64
    %v1422 = vpop.permute.xlu0 %1421
    %v1424 = vsel %vm368, %v1420, 0
    %v1427 = vsel %vm368, %v1422, 0
    %1429 = vmatpush.bf16.xpose.msra.mxu0 0
    %1430 = vmatpush.bf16.xpose.msra.mxu0 0
    %1431 = vmatpush.bf16.xpose.msra.mxu0 0
    %1432 = vmatpush.bf16.xpose.msra.mxu0 0
    %1433 = vmatpush.bf16.xpose.msra.mxu0 0
    %1434 = vmatpush.bf16.xpose.msra.mxu0 0
    %1435 = vmatpush.bf16.xpose.msra.mxu0 0
    %1436 = vmatpush.bf16.xpose.msra.mxu0 %v1427
    %1437 = vmatmul.bf16.gmra.mxu0 %v1424
    %v1438 = vpop.f32.mrf.mxu0
    %v1439 = vadd.f32 0.0, %v1438
    %v1440 = vpop.f32.mrf.mxu0
    %1441 = vdwg.mxu0
    %v1442 = vsel %vm412, %v1416, -inf
    %1443 = vmax.xlane.f32.xlu0 %v1442
    %v1444 = vpop.xlane.xlu0 %1443
    %v1445 = vsel %vm412, %v1439, -inf
    %1446 = vmax.xlane.f32.xlu0 %v1445
    %v1447 = vpop.xlane.xlu0 %1446
    %v1448 = vsub.f32 %v1416, %v1444
    %v1449 = vsub.f32 %v1439, %v1447
    %v1450 = vmul.f32 %v1448, 1.442695
    %v1451 = vpow.pop %v1450
    %v1452 = vmul.f32 %v1449, 1.442695
    %v1453 = vpow.pop %v1452
    %v1454 = vsel %vm412, %v1451, 0.0
    %1455 = vadd.xlane.f32.xlu0 %v1454
    %v1456 = vpop.xlane.xlu0 %1455
    %v1457 = vsel %vm412, %v1453, 0.0
    %1458 = vadd.xlane.f32.xlu0 %v1457
    %v1459 = vpop.xlane.xlu0 %1458
    %v1460 = vrcp.pop %v1456
    %v1461 = vrcp.pop %v1459
    %v1462 = vmul.f32 %v1451, %v1460
    %v1463 = vmul.f32 %v1453, %v1461
    %v1464 = vpack.c.bf16 %v1462, %v1462
    %v1465 = vpack.c.bf16 %v1463, %v1463
    %1466 = vrot.lane.b32.xlu0 %v1283, 48
    %v1467 = vpop.permute.xlu0 %1466
    %v1469 = vsel %vm412, %v1464, 0
    %v1472 = vsel %vm442, %v1467, 0
    %1474 = vmatpush.bf16.msra.mxu0 0
    %1475 = vmatpush.bf16.msra.mxu0 0
    %1476 = vmatpush.bf16.msra.mxu0 0
    %1477 = vmatpush.bf16.msra.mxu0 0
    %1478 = vmatpush.bf16.msra.mxu0 0
    %1479 = vmatpush.bf16.msra.mxu0 0
    %1480 = vmatpush.bf16.msra.mxu0 0
    %1481 = vmatpush.bf16.msra.mxu0 %v1472
    %1482 = vmatmul.bf16.gmra.mxu0 %v1469
    %v1483 = vpop.f32.mrf.mxu0
    %v1484 = vadd.f32 0.0, %v1483
    %v1485 = vpop.f32.mrf.mxu0
    %1486 = vdwg.mxu0
    %1487 = vrot.lane.b32.xlu0 %v1307, 48
    %v1488 = vpop.permute.xlu0 %1487
    %v1490 = vsel %vm412, %v1465, 0
    %v1493 = vsel %vm442, %v1488, 0
    %1495 = vmatpush.bf16.msra.mxu0 0
    %1496 = vmatpush.bf16.msra.mxu0 0
    %1497 = vmatpush.bf16.msra.mxu0 0
    %1498 = vmatpush.bf16.msra.mxu0 0
    %1499 = vmatpush.bf16.msra.mxu0 0
    %1500 = vmatpush.bf16.msra.mxu0 0
    %1501 = vmatpush.bf16.msra.mxu0 0
    %1502 = vmatpush.bf16.msra.mxu0 %v1493
    %1503 = vmatmul.bf16.gmra.mxu0 %v1490
    %v1504 = vpop.f32.mrf.mxu0
    %v1505 = vadd.f32 0.0, %v1504
    %v1506 = vpop.f32.mrf.mxu0
    %1507 = vdwg.mxu0
    %v1508 = vpack.c.bf16 %v1505, %v1484
    %v1511 = vunpack.c.l.b16 %v1173
    %v1512 = vunpack.c.l.b16 %v1174
    %v1513 = vpack.c.b16 %v1512, %v1511
    %v1516 = vsel %vm368, %v1508, 0
    %1518 = vmatpush.bf16.msra.mxu0 0
    %1519 = vmatpush.bf16.msra.mxu0 0
    %1520 = vmatpush.bf16.msra.mxu0 0
    %1521 = vmatpush.bf16.msra.mxu0 0
    %1522 = vmatpush.bf16.msra.mxu0 0
    %1523 = vmatpush.bf16.msra.mxu0 0
    %1524 = vmatpush.bf16.msra.mxu0 0
    %1525 = vmatpush.bf16.msra.mxu0 %v1513
    %1526 = vmatmul.bf16.gmra.mxu0 %v1516
    %v1527 = vpop.f32.mrf.mxu0
    %v1528 = vadd.f32 0.0, %v1527
    %v1529 = vpop.f32.mrf.mxu0
    %v1530 = vadd.f32 0.0, %v1529
    %1531 = vdwg.mxu0
    %v1534 = vunpack.c.l.b16 %v1171
    %v1535 = vunpack.c.l.b16 %v1172
    %v1536 = vpack.c.b16 %v1535, %v1534
    %v1539 = vsel %vm368, %v1395, 0
    %1541 = vmatpush.bf16.msra.mxu0 0
    %1542 = vmatpush.bf16.msra.mxu0 0
    %1543 = vmatpush.bf16.msra.mxu0 0
    %1544 = vmatpush.bf16.msra.mxu0 0
    %1545 = vmatpush.bf16.msra.mxu0 0
    %1546 = vmatpush.bf16.msra.mxu0 0
    %1547 = vmatpush.bf16.msra.mxu0 0
    %1548 = vmatpush.bf16.msra.mxu0 %v1536
    %1549 = vmatmul.bf16.gmra.mxu0 %v1539
    %v1550 = vpop.f32.mrf.mxu0
    %v1551 = vadd.f32 %v1528, %v1550
    %v1552 = vpop.f32.mrf.mxu0
    %v1553 = vadd.f32 %v1530, %v1552
    %1554 = vdwg.mxu0
    %v1555 = vpack.c.bf16 %v1275, %v1275
    %v1556 = vpack.c.bf16 %v1277, %v1277
    %1557 = vrot.lane.b32.xlu0 %v1283, 32
    %v1558 = vpop.permute.xlu0 %1557
    %1559 = vrot.lane.b32.xlu0 %v1283, 16
    %v1560 = vpop.permute.xlu0 %1559
    %v1562 = vsel %vm368, %v1558, 0
    %v1565 = vsel %vm368, %v1560, 0
    %1567 = vmatpush.bf16.xpose.msra.mxu0 0
    %1568 = vmatpush.bf16.xpose.msra.mxu0 0
    %1569 = vmatpush.bf16.xpose.msra.mxu0 0
    %1570 = vmatpush.bf16.xpose.msra.mxu0 0
    %1571 = vmatpush.bf16.xpose.msra.mxu0 0
    %1572 = vmatpush.bf16.xpose.msra.mxu0 0
    %1573 = vmatpush.bf16.xpose.msra.mxu0 0
    %1574 = vmatpush.bf16.xpose.msra.mxu0 %v1565
    %1575 = vmatmul.bf16.gmra.mxu0 %v1562
    %v1576 = vpop.f32.mrf.mxu0
    %v1577 = vadd.f32 0.0, %v1576
    %v1578 = vpop.f32.mrf.mxu0
    %1579 = vdwg.mxu0
    %1580 = vrot.lane.b32.xlu0 %v1307, 32
    %v1581 = vpop.permute.xlu0 %1580
    %1582 = vrot.lane.b32.xlu0 %v1307, 16
    %v1583 = vpop.permute.xlu0 %1582
    %v1585 = vsel %vm368, %v1581, 0
    %v1588 = vsel %vm368, %v1583, 0
    %1590 = vmatpush.bf16.xpose.msra.mxu0 0
    %1591 = vmatpush.bf16.xpose.msra.mxu0 0
    %1592 = vmatpush.bf16.xpose.msra.mxu0 0
    %1593 = vmatpush.bf16.xpose.msra.mxu0 0
    %1594 = vmatpush.bf16.xpose.msra.mxu0 0
    %1595 = vmatpush.bf16.xpose.msra.mxu0 0
    %1596 = vmatpush.bf16.xpose.msra.mxu0 0
    %1597 = vmatpush.bf16.xpose.msra.mxu0 %v1588
    %1598 = vmatmul.bf16.gmra.mxu0 %v1585
    %v1599 = vpop.f32.mrf.mxu0
    %v1600 = vadd.f32 0.0, %v1599
    %v1601 = vpop.f32.mrf.mxu0
    %1602 = vdwg.mxu0
    %v1603 = vsel %vm412, %v1577, -inf
    %1604 = vmax.xlane.f32.xlu0 %v1603
    %v1605 = vpop.xlane.xlu0 %1604
    %v1606 = vsel %vm412, %v1600, -inf
    %1607 = vmax.xlane.f32.xlu0 %v1606
    %v1608 = vpop.xlane.xlu0 %1607
    %v1609 = vsub.f32 %v1577, %v1605
    %v1610 = vsub.f32 %v1600, %v1608
    %v1611 = vmul.f32 %v1609, 1.442695
    %v1612 = vpow.pop %v1611
    %v1613 = vmul.f32 %v1610, 1.442695
    %v1614 = vpow.pop %v1613
    %v1615 = vsel %vm412, %v1612, 0.0
    %1616 = vadd.xlane.f32.xlu0 %v1615
    %v1617 = vpop.xlane.xlu0 %1616
    %v1618 = vsel %vm412, %v1614, 0.0
    %1619 = vadd.xlane.f32.xlu0 %v1618
    %v1620 = vpop.xlane.xlu0 %1619
    %v1621 = vrcp.pop %v1617
    %v1622 = vrcp.pop %v1620
    %v1623 = vmul.f32 %v1612, %v1621
    %v1624 = vmul.f32 %v1614, %v1622
    %v1625 = vpack.c.bf16 %v1623, %v1623
    %v1626 = vpack.c.bf16 %v1624, %v1624
    %v1628 = vsel %vm412, %v1625, 0
    %v1631 = vsel %vm442, %v1555, 0
    %1633 = vmatpush.bf16.msra.mxu0 0
    %1634 = vmatpush.bf16.msra.mxu0 0
    %1635 = vmatpush.bf16.msra.mxu0 0
    %1636 = vmatpush.bf16.msra.mxu0 0
    %1637 = vmatpush.bf16.msra.mxu0 0
    %1638 = vmatpush.bf16.msra.mxu0 0
    %1639 = vmatpush.bf16.msra.mxu0 0
    %1640 = vmatpush.bf16.msra.mxu0 %v1631
    %1641 = vmatmul.bf16.gmra.mxu0 %v1628
    %v1642 = vpop.f32.mrf.mxu0
    %v1643 = vadd.f32 0.0, %v1642
    %v1644 = vpop.f32.mrf.mxu0
    %1645 = vdwg.mxu0
    %v1647 = vsel %vm412, %v1626, 0
    %v1650 = vsel %vm442, %v1556, 0
    %1652 = vmatpush.bf16.msra.mxu0 0
    %1653 = vmatpush.bf16.msra.mxu0 0
    %1654 = vmatpush.bf16.msra.mxu0 0
    %1655 = vmatpush.bf16.msra.mxu0 0
    %1656 = vmatpush.bf16.msra.mxu0 0
    %1657 = vmatpush.bf16.msra.mxu0 0
    %1658 = vmatpush.bf16.msra.mxu0 0
    %1659 = vmatpush.bf16.msra.mxu0 %v1650
    %1660 = vmatmul.bf16.gmra.mxu0 %v1647
    %v1661 = vpop.f32.mrf.mxu0
    %v1662 = vadd.f32 0.0, %v1661
    %v1663 = vpop.f32.mrf.mxu0
    %1664 = vdwg.mxu0
    %v1665 = vpack.c.bf16 %v1662, %v1643
    %v1668 = vunpack.c.l.b16 %v1175
    %v1669 = vunpack.c.l.b16 %v1176
    %v1670 = vpack.c.b16 %v1669, %v1668
    %v1673 = vsel %vm368, %v1665, 0
    %1675 = vmatpush.bf16.msra.mxu0 0
    %1676 = vmatpush.bf16.msra.mxu0 0
    %1677 = vmatpush.bf16.msra.mxu0 0
    %1678 = vmatpush.bf16.msra.mxu0 0
    %1679 = vmatpush.bf16.msra.mxu0 0
    %1680 = vmatpush.bf16.msra.mxu0 0
    %1681 = vmatpush.bf16.msra.mxu0 0
    %1682 = vmatpush.bf16.msra.mxu0 %v1670
    %1683 = vmatmul.bf16.gmra.mxu0 %v1673
    %v1684 = vpop.f32.mrf.mxu0
    %v1685 = vadd.f32 0.0, %v1684
    %v1686 = vpop.f32.mrf.mxu0
    %v1687 = vadd.f32 0.0, %v1686
    %1688 = vdwg.mxu0
    %v1689 = vadd.f32 %v1551, %v1685
    %v1690 = vadd.f32 %v1553, %v1687
    %v1692 = vunpack.c.l.b16 %v1555
    %v1693 = vpack.c.b16 %v1692, %v1692
    %1694 = vrot.lane.b32.xlu0 %v1693, 112
    %v1695 = vpop.permute.xlu0 %1694
    %1696 = vrot.lane.b32.xlu0 %v1693, 96
    %v1697 = vpop.permute.xlu0 %1696
    %v1699 = vsel %vm368, %v1695, 0
    %v1702 = vsel %vm368, %v1697, 0
    %1704 = vmatpush.bf16.xpose.msra.mxu0 0
    %1705 = vmatpush.bf16.xpose.msra.mxu0 0
    %1706 = vmatpush.bf16.xpose.msra.mxu0 0
    %1707 = vmatpush.bf16.xpose.msra.mxu0 0
    %1708 = vmatpush.bf16.xpose.msra.mxu0 0
    %1709 = vmatpush.bf16.xpose.msra.mxu0 0
    %1710 = vmatpush.bf16.xpose.msra.mxu0 0
    %1711 = vmatpush.bf16.xpose.msra.mxu0 %v1702
    %1712 = vmatmul.bf16.gmra.mxu0 %v1699
    %v1713 = vpop.f32.mrf.mxu0
    %v1714 = vadd.f32 0.0, %v1713
    %v1715 = vpop.f32.mrf.mxu0
    %1716 = vdwg.mxu0
    %v1718 = vunpack.c.l.b16 %v1556
    %v1719 = vpack.c.b16 %v1718, %v1718
    %1720 = vrot.lane.b32.xlu0 %v1719, 112
    %v1721 = vpop.permute.xlu0 %1720
    %1722 = vrot.lane.b32.xlu0 %v1719, 96
    %v1723 = vpop.permute.xlu0 %1722
    %v1725 = vsel %vm368, %v1721, 0
    %v1728 = vsel %vm368, %v1723, 0
    %1730 = vmatpush.bf16.xpose.msra.mxu0 0
    %1731 = vmatpush.bf16.xpose.msra.mxu0 0
    %1732 = vmatpush.bf16.xpose.msra.mxu0 0
    %1733 = vmatpush.bf16.xpose.msra.mxu0 0
    %1734 = vmatpush.bf16.xpose.msra.mxu0 0
    %1735 = vmatpush.bf16.xpose.msra.mxu0 0
    %1736 = vmatpush.bf16.xpose.msra.mxu0 0
    %1737 = vmatpush.bf16.xpose.msra.mxu0 %v1728
    %1738 = vmatmul.bf16.gmra.mxu0 %v1725
    %v1739 = vpop.f32.mrf.mxu0
    %v1740 = vadd.f32 0.0, %v1739
    %v1741 = vpop.f32.mrf.mxu0
    %1742 = vdwg.mxu0
    %v1743 = vsel %vm412, %v1714, -inf
    %1744 = vmax.xlane.f32.xlu0 %v1743
    %v1745 = vpop.xlane.xlu0 %1744
    %v1746 = vsel %vm412, %v1740, -inf
    %1747 = vmax.xlane.f32.xlu0 %v1746
    %v1748 = vpop.xlane.xlu0 %1747
    %v1749 = vsub.f32 %v1714, %v1745
    %v1750 = vsub.f32 %v1740, %v1748
    %v1751 = vmul.f32 %v1749, 1.442695
    %v1752 = vpow.pop %v1751
    %v1753 = vmul.f32 %v1750, 1.442695
    %v1754 = vpow.pop %v1753
    %v1755 = vsel %vm412, %v1752, 0.0
    %1756 = vadd.xlane.f32.xlu0 %v1755
    %v1757 = vpop.xlane.xlu0 %1756
    %v1758 = vsel %vm412, %v1754, 0.0
    %1759 = vadd.xlane.f32.xlu0 %v1758
    %v1760 = vpop.xlane.xlu0 %1759
    %v1761 = vrcp.pop %v1757
    %v1762 = vrcp.pop %v1760
    %v1763 = vmul.f32 %v1752, %v1761
    %v1764 = vmul.f32 %v1754, %v1762
    %v1765 = vpack.c.bf16 %v1763, %v1763
    %v1766 = vpack.c.bf16 %v1764, %v1764
    %1767 = vrot.lane.b32.xlu0 %v1693, 80
    %v1768 = vpop.permute.xlu0 %1767
    %v1770 = vsel %vm412, %v1765, 0
    %v1773 = vsel %vm442, %v1768, 0
    %1775 = vmatpush.bf16.msra.mxu0 0
    %1776 = vmatpush.bf16.msra.mxu0 0
    %1777 = vmatpush.bf16.msra.mxu0 0
    %1778 = vmatpush.bf16.msra.mxu0 0
    %1779 = vmatpush.bf16.msra.mxu0 0
    %1780 = vmatpush.bf16.msra.mxu0 0
    %1781 = vmatpush.bf16.msra.mxu0 0
    %1782 = vmatpush.bf16.msra.mxu0 %v1773
    %1783 = vmatmul.bf16.gmra.mxu0 %v1770
    %v1784 = vpop.f32.mrf.mxu0
    %v1785 = vadd.f32 0.0, %v1784
    %v1786 = vpop.f32.mrf.mxu0
    %1787 = vdwg.mxu0
    %1788 = vrot.lane.b32.xlu0 %v1719, 80
    %v1789 = vpop.permute.xlu0 %1788
    %v1791 = vsel %vm412, %v1766, 0
    %v1794 = vsel %vm442, %v1789, 0
    %1796 = vmatpush.bf16.msra.mxu0 0
    %1797 = vmatpush.bf16.msra.mxu0 0
    %1798 = vmatpush.bf16.msra.mxu0 0
    %1799 = vmatpush.bf16.msra.mxu0 0
    %1800 = vmatpush.bf16.msra.mxu0 0
    %1801 = vmatpush.bf16.msra.mxu0 0
    %1802 = vmatpush.bf16.msra.mxu0 0
    %1803 = vmatpush.bf16.msra.mxu0 %v1794
    %1804 = vmatmul.bf16.gmra.mxu0 %v1791
    %v1805 = vpop.f32.mrf.mxu0
    %v1806 = vadd.f32 0.0, %v1805
    %v1807 = vpop.f32.mrf.mxu0
    %1808 = vdwg.mxu0
    %v1809 = vpack.c.bf16 %v1806, %v1785
    %v1812 = vunpack.c.l.b16 %v1177
    %v1813 = vunpack.c.l.b16 %v1178
    %v1814 = vpack.c.b16 %v1813, %v1812
    %v1817 = vsel %vm368, %v1809, 0
    %1819 = vmatpush.bf16.msra.mxu0 0
    %1820 = vmatpush.bf16.msra.mxu0 0
    %1821 = vmatpush.bf16.msra.mxu0 0
    %1822 = vmatpush.bf16.msra.mxu0 0
    %1823 = vmatpush.bf16.msra.mxu0 0
    %1824 = vmatpush.bf16.msra.mxu0 0
    %1825 = vmatpush.bf16.msra.mxu0 0
    %1826 = vmatpush.bf16.msra.mxu0 %v1814
    %1827 = vmatmul.bf16.gmra.mxu0 %v1817
    %v1828 = vpop.f32.mrf.mxu0
    %v1829 = vadd.f32 0.0, %v1828
    %v1830 = vpop.f32.mrf.mxu0
    %v1831 = vadd.f32 0.0, %v1830
    %1832 = vdwg.mxu0
    %v1833 = vadd.f32 %v1689, %v1829
    %v1834 = vadd.f32 %v1690, %v1831
    %v1835 = vperm.slane %v1203, 2
    %v1836 = vadd.f32 %v1833, %v1835
    %v1837 = vadd.f32 %v1834, %v1835
    %v1838 = vadd.f32 %v1141, %v1836
    %v1839 = vadd.f32 %v1142, %v1837
    %v1840 = vsel %vm329, %v1838, 0.0
    %1841 = vadd.xlane.f32.xlu0 %v1840
    %v1842 = vpop.xlane.xlu0 %1841
    %v1843 = vsel %vm329, %v1839, 0.0
    %1844 = vadd.xlane.f32.xlu0 %v1843
    %v1845 = vpop.xlane.xlu0 %1844
    %v1846 = vmul.f32 %v1842, %v937
    %v1847 = vmul.f32 %v1845, %v937
    %v1848 = vsub.f32 %v1838, %v1846
    %v1849 = vsub.f32 %v1839, %v1847
    %v1850 = vmul.f32 %v1848, %v1848
    %v1851 = vmul.f32 %v1849, %v1849
    %v1852 = vsel %vm329, %v1850, 0.0
    %1853 = vadd.xlane.f32.xlu0 %v1852
    %v1854 = vpop.xlane.xlu0 %1853
    %v1855 = vsel %vm329, %v1851, 0.0
    %1856 = vadd.xlane.f32.xlu0 %v1855
    %v1857 = vpop.xlane.xlu0 %1856
    %v1858 = vmul.f32 %v1854, %v937
    %v1859 = vmul.f32 %v1857, %v937
    %v1860 = vadd.f32 %v1858, 1e-05
    %v1861 = vadd.f32 %v1859, 1e-05
    %v1862 = vrsqrt.pop %v1860
    %v1863 = vmul.f32 %v1862, %v1860
    %v1864 = vmul.f32 %v1863, %v1862
    %v1865 = vmul.f32 0.5, %v1864
    %v1866 = vsub.f32 1.5, %v1865
    %v1867 = vmul.f32 %v1862, %v1866
    %vm1868 = vweird.f32 %v1860
    %vm1869 = vweird.f32 %v1862
    %vm1870 = vmor %vm1868, %vm1869
    %v1871 = vsel %vm1870, %v1862, %v1867
    %v1872 = vrsqrt.pop %v1861
    %v1873 = vmul.f32 %v1872, %v1861
    %v1874 = vmul.f32 %v1873, %v1872
    %v1875 = vmul.f32 0.5, %v1874
    %v1876 = vsub.f32 1.5, %v1875
    %v1877 = vmul.f32 %v1872, %v1876
    %vm1878 = vweird.f32 %v1861
    %vm1879 = vweird.f32 %v1872
    %vm1880 = vmor %vm1878, %vm1879
    %v1881 = vsel %vm1880, %v1872, %v1877
    %v1882 = vmul.f32 %v1848, %v1871
    %v1883 = vmul.f32 %v1849, %v1881
    %v1884 = vperm.slane %v1203, 3
    %v1885 = vmul.f32 %v1882, %v1884
    %v1886 = vmul.f32 %v1883, %v1884
    %v1887 = vperm.slane %v1203, 4
    %v1888 = vadd.f32 %v1885, %v1887
    %v1889 = vadd.f32 %v1886, %v1887
    %v1890 = vpack.c.bf16 %v1889, %v1888
    %v1891 = vperm.slane %v1203, 1
    %v1900 = vunpack.c.l.b16 %v1179
    %v1901 = vunpack.c.l.b16 %v1180
    %v1902 = vunpack.c.l.b16 %v1181
    %v1903 = vunpack.c.l.b16 %v1182
    %v1904 = vunpack.c.l.b16 %v1183
    %v1905 = vunpack.c.l.b16 %v1184
    %v1906 = vunpack.c.l.b16 %v1185
    %v1907 = vunpack.c.l.b16 %v1186
    %v1908 = vpack.c.b16 %v1901, %v1900
    %v1909 = vpack.c.b16 %v1903, %v1902
    %v1910 = vpack.c.b16 %v1905, %v1904
    %v1911 = vpack.c.b16 %v1907, %v1906
    %v1917 = vsel %vm329, %v1890, 0
    %1919 = vmatpush.bf16.msra.mxu0 0
    %1920 = vmatpush.bf16.msra.mxu0 0
    %1921 = vmatpush.bf16.msra.mxu0 0
    %1922 = vmatpush.bf16.msra.mxu0 0
    %1923 = vmatpush.bf16.msra.mxu0 %v1911
    %1924 = vmatpush.bf16.msra.mxu0 %v1910
    %1925 = vmatpush.bf16.msra.mxu0 %v1909
    %1926 = vmatpush.bf16.msra.mxu0 %v1908
    %1927 = vmatmul.bf16.gmra.mxu0 %v1917
    %v1928 = vpop.f32.mrf.mxu0
    %v1929 = vadd.f32 %v1891, %v1928
    %v1930 = vpop.f32.mrf.mxu0
    %v1931 = vadd.f32 %v1891, %v1930
    %1932 = vdwg.mxu0
    %v1933 = vmax.f32 %v1929, 0.0
    %v1934 = vmax.f32 %v1931, 0.0
    %v1935 = vpack.c.bf16 %v1934, %v1933
    %v1936 = vperm.slane %v1203, 5
    %v1953 = vunpack.c.l.b16 %v1187
    %v1954 = vunpack.c.l.b16 %v1188
    %v1955 = vunpack.c.l.b16 %v1189
    %v1956 = vunpack.c.l.b16 %v1190
    %v1957 = vunpack.c.l.b16 %v1191
    %v1958 = vunpack.c.l.b16 %v1192
    %v1959 = vunpack.c.l.b16 %v1193
    %v1960 = vunpack.c.l.b16 %v1194
    %v1961 = vunpack.c.l.b16 %v1195
    %v1962 = vunpack.c.l.b16 %v1196
    %v1963 = vunpack.c.l.b16 %v1197
    %v1964 = vunpack.c.l.b16 %v1198
    %v1965 = vunpack.c.l.b16 %v1199
    %v1966 = vunpack.c.l.b16 %v1200
    %v1967 = vunpack.c.l.b16 %v1201
    %v1968 = vunpack.c.l.b16 %v1202
    %v1969 = vpack.c.b16 %v1954, %v1953
    %v1970 = vpack.c.b16 %v1956, %v1955
    %v1971 = vpack.c.b16 %v1958, %v1957
    %v1972 = vpack.c.b16 %v1960, %v1959
    %v1973 = vpack.c.b16 %v1962, %v1961
    %v1974 = vpack.c.b16 %v1964, %v1963
    %v1975 = vpack.c.b16 %v1966, %v1965
    %v1976 = vpack.c.b16 %v1968, %v1967
    %1985 = vmatpush.bf16.msra.mxu0 %v1976
    %1986 = vmatpush.bf16.msra.mxu0 %v1975
    %1987 = vmatpush.bf16.msra.mxu0 %v1974
    %1988 = vmatpush.bf16.msra.mxu0 %v1973
    %1989 = vmatpush.bf16.msra.mxu0 %v1972
    %1990 = vmatpush.bf16.msra.mxu0 %v1971
    %1991 = vmatpush.bf16.msra.mxu0 %v1970
    %1992 = vmatpush.bf16.msra.mxu0 %v1969
    %1993 = vmatmul.bf16.gmra.mxu0 %v1935
    %v1994 = vpop.f32.mrf.mxu0
    %v1995 = vadd.f32 %v1936, %v1994
    %v1996 = vpop.f32.mrf.mxu0
    %v1997 = vadd.f32 %v1936, %v1996
    %1998 = vdwg.mxu0
    %v1999 = vadd.f32 %v1888, %v1995
    %v2000 = vadd.f32 %v1889, %v1997
    %v2001 = vsel %vm329, %v1999, 0.0
    %2002 = vadd.xlane.f32.xlu0 %v2001
    %v2003 = vpop.xlane.xlu0 %2002
    %v2004 = vsel %vm329, %v2000, 0.0
    %2005 = vadd.xlane.f32.xlu0 %v2004
    %v2006 = vpop.xlane.xlu0 %2005
    %v2007 = vmul.f32 %v2003, %v937
    %v2008 = vmul.f32 %v2006, %v937
    %v2009 = vsub.f32 %v1999, %v2007
    %v2010 = vsub.f32 %v2000, %v2008
    %v2011 = vmul.f32 %v2009, %v2009
    %v2012 = vmul.f32 %v2010, %v2010
    %v2013 = vsel %vm329, %v2011, 0.0
    %2014 = vadd.xlane.f32.xlu0 %v2013
    %v2015 = vpop.xlane.xlu0 %2014
    %v2016 = vsel %vm329, %v2012, 0.0
    %2017 = vadd.xlane.f32.xlu0 %v2016
    %v2018 = vpop.xlane.xlu0 %2017
    %v2019 = vmul.f32 %v2015, %v937
    %v2020 = vmul.f32 %v2018, %v937
    %v2021 = vadd.f32 %v2019, 1e-05
    %v2022 = vadd.f32 %v2020, 1e-05
    %v2023 = vrsqrt.pop %v2021
    %v2024 = vmul.f32 %v2023, %v2021
    %v2025 = vmul.f32 %v2024, %v2023
    %v2026 = vmul.f32 0.5, %v2025
    %v2027 = vsub.f32 1.5, %v2026
    %v2028 = vmul.f32 %v2023, %v2027
    %vm2029 = vweird.f32 %v2021
    %vm2030 = vweird.f32 %v2023
    %vm2031 = vmor %vm2029, %vm2030
    %v2032 = vsel %vm2031, %v2023, %v2028
    %v2033 = vrsqrt.pop %v2022
    %v2034 = vmul.f32 %v2033, %v2022
    %v2035 = vmul.f32 %v2034, %v2033
    %v2036 = vmul.f32 0.5, %v2035
    %v2037 = vsub.f32 1.5, %v2036
    %v2038 = vmul.f32 %v2033, %v2037
    %vm2039 = vweird.f32 %v2022
    %vm2040 = vweird.f32 %v2033
    %vm2041 = vmor %vm2039, %vm2040
    %v2042 = vsel %vm2041, %v2033, %v2038
    %v2043 = vmul.f32 %v2009, %v2032
    %v2044 = vmul.f32 %v2010, %v2042
    %v2045 = vperm.slane %v1203, 6
    %v2046 = vmul.f32 %v2043, %v2045
    %v2047 = vmul.f32 %v2044, %v2045
    %v2048 = vperm.slane %v1203, 7
    %v2049 = vadd.f32 %v2046, %v2048
    %v2050 = vadd.f32 %v2047, %v2048
    %v2051 = vsel %vm329, %v2049, 0.0
    %v2052 = vrot.slane %v2051, 4
    %v2053 = vadd.f32 %v2051, %v2052
    %v2054 = vrot.slane %v2053, 2
    %v2055 = vadd.f32 %v2053, %v2054
    %v2056 = vrot.slane %v2055, 1
    %v2057 = vadd.f32 %v2055, %v2056
    %v2058 = vsel %vm329, %v2050, 0.0
    %v2059 = vrot.slane %v2058, 4
    %v2060 = vadd.f32 %v2058, %v2059
    %v2061 = vrot.slane %v2060, 2
    %v2062 = vadd.f32 %v2060, %v2061
    %v2063 = vrot.slane %v2062, 1
    %v2064 = vadd.f32 %v2062, %v2063
    %v2065 = vrcp.pop 8.0
    %v2066 = vmul.f32 8.0, %v2065
    %v2067 = vsub.f32 1.0, %v2066
    %v2068 = vmul.f32 %v2065, %v2067
    %v2069 = vadd.f32 %v2065, %v2068
    %vm2070 = vweird.f32 %v2065
    %v2071 = vsel %vm2070, %v2065, %v2069
    %v2072 = vmul.f32 %v2057, %v2071
    %v2073 = vmul.f32 %v2064, %v2071
    %v2074 = vld [vmem:[%s14] sm:$0x1]
    %v2075 = vld [vmem:[%s14 + $0x1] sm:$0x1]
    %v2076 = vpack.c.bf16 %v2072, %v2072
    %v2077 = vpack.c.bf16 %v2073, %v2073
    %v2078 = vld [vmem:[#allocation16] sm:$0xf]
    %v2079 = vld [vmem:[#allocation16 + $0x4] sm:$0xf]
    %v2080 = vld [vmem:[#allocation16 + $0x8] sm:$0xf]
    %v2081 = vld [vmem:[#allocation16 + $0xc] sm:$0xf]
    %v2082 = vld [vmem:[#allocation16 + $0x10] sm:$0xf]
    %v2083 = vld [vmem:[#allocation16 + $0x14] sm:$0xf]
    %v2084 = vld [vmem:[#allocation16 + $0x18] sm:$0xf]
    %v2085 = vld [vmem:[#allocation16 + $0x1c] sm:$0xf]
    %v2086 = vperm.slane %v2074, 0
    %v2089 = vunpack.c.l.b16 %v2076
    %v2090 = vunpack.c.l.b16 %v2077
    %vm2091 = vcmask 1041409
    %v2092 = vsel %vm2091, %v2090, %v2089
    %v2093 = vpack.c.b16 %v2092, %v2092
    %v2102 = vunpack.c.l.b16 %v2078
    %v2103 = vunpack.c.l.b16 %v2079
    %v2104 = vunpack.c.l.b16 %v2080
    %v2105 = vunpack.c.l.b16 %v2081
    %v2106 = vunpack.c.l.b16 %v2082
    %v2107 = vunpack.c.l.b16 %v2083
    %v2108 = vunpack.c.l.b16 %v2084
    %v2109 = vunpack.c.l.b16 %v2085
    %v2110 = vpack.c.b16 %v2103, %v2102
    %v2111 = vpack.c.b16 %v2105, %v2104
    %v2112 = vpack.c.b16 %v2107, %v2106
    %v2113 = vpack.c.b16 %v2109, %v2108
    %v2119 = vsel %vm329, %v2093, 0
    %2121 = vmatpush.bf16.msra.mxu0 0
    %2122 = vmatpush.bf16.msra.mxu0 0
    %2123 = vmatpush.bf16.msra.mxu0 0
    %2124 = vmatpush.bf16.msra.mxu0 0
    %2125 = vmatpush.bf16.msra.mxu0 %v2113
    %2126 = vmatpush.bf16.msra.mxu0 %v2112
    %2127 = vmatpush.bf16.msra.mxu0 %v2111
    %2128 = vmatpush.bf16.msra.mxu0 %v2110
    %2129 = vmatmul.bf16.gmra.mxu0 %v2119
    %v2130 = vpop.f32.mrf.mxu0
    %v2131 = vadd.f32 %v2086, %v2130
    %v2132 = vpop.f32.mrf.mxu0
    %2133 = vdwg.mxu0
    %v2134 = vmax.f32 %v2131, 0.0
    %v2135 = vpack.c.bf16 %v2134, %v2134
    %v2136 = vld [vmem:[#allocation17] sm:$0xf]
    %v2137 = vld [vmem:[#allocation17 + $0x4] sm:$0xf]
    %v2138 = vld [vmem:[#allocation17 + $0x8] sm:$0xf]
    %v2139 = vld [vmem:[#allocation17 + $0xc] sm:$0xf]
    %v2140 = vld [vmem:[#allocation17 + $0x10] sm:$0xf]
    %v2141 = vld [vmem:[#allocation17 + $0x14] sm:$0xf]
    %v2142 = vld [vmem:[#allocation17 + $0x18] sm:$0xf]
    %v2143 = vld [vmem:[#allocation17 + $0x1c] sm:$0xf]
    %v2144 = vperm.slane %v2075, 0
    %v2153 = vunpack.c.l.b16 %v2136
    %v2154 = vunpack.c.l.b16 %v2137
    %v2155 = vunpack.c.l.b16 %v2138
    %v2156 = vunpack.c.l.b16 %v2139
    %v2157 = vunpack.c.l.b16 %v2140
    %v2158 = vunpack.c.l.b16 %v2141
    %v2159 = vunpack.c.l.b16 %v2142
    %v2160 = vunpack.c.l.b16 %v2143
    %v2161 = vpack.c.b16 %v2154, %v2153
    %v2162 = vpack.c.b16 %v2156, %v2155
    %v2163 = vpack.c.b16 %v2158, %v2157
    %v2164 = vpack.c.b16 %v2160, %v2159
    %v2170 = vsel %vm329, %v2135, 0
    %2172 = vmatpush.bf16.msra.mxu0 0
    %2173 = vmatpush.bf16.msra.mxu0 0
    %2174 = vmatpush.bf16.msra.mxu0 0
    %2175 = vmatpush.bf16.msra.mxu0 0
    %2176 = vmatpush.bf16.msra.mxu0 %v2164
    %2177 = vmatpush.bf16.msra.mxu0 %v2163
    %2178 = vmatpush.bf16.msra.mxu0 %v2162
    %2179 = vmatpush.bf16.msra.mxu0 %v2161
    %2180 = vmatmul.bf16.gmra.mxu0 %v2170
    %v2181 = vpop.f32.mrf.mxu0
    %v2182 = vadd.f32 %v2144, %v2181
    %v2183 = vpop.f32.mrf.mxu0
    %2184 = vdwg.mxu0
    %2185 = vst [vmem:[#allocation19] sm:$0x3] %v2182
    // Predicated region
    $region116: #{tpu_custom_call.1} parent=1 // pred_check
      _
    $region117: #{tpu_custom_call.1} parent=1 // pred_check_branch
      %2187 = sbr.rel (0) target = $region119
    $region118: #{tpu_custom_call.1} parent=1 // pred_region
      %2189 = vsyncadd [#allocation10], 0
      %s2191 = sshll.u32 [#allocation19], 4
      %s2192 = int_to_ptr.vmem [resolvable:$true] %s2191
      %s2193 = sshll.u32 %s15, 4
      %s2194 = int_to_ptr.hbm [resolvable:$true] %s2193
      %2196 = dma.vmem_to_hbm [thread:$0]  %s2192, 32, %s2194, [#allocation10]
    $region119: #{tpu_custom_call.1} parent=1 // pred_fallthru
      _
    // Predicated region
    $region120: #{tpu_custom_call.1} parent=1 // pred_check
      _
    $region121: #{tpu_custom_call.1} parent=1 // pred_check_branch
      %2198 = sbr.rel (0) target = $region123
    $region122: #{tpu_custom_call.1} parent=1 // pred_region
      %2200 = dma.done [#allocation10], 32
    $region123: #{tpu_custom_call.1} parent=1 // pred_fallthru
      _
    %2201 = vsyncpa [#allocation9], 1
    %2202 = vsyncpa [#allocation12], 1
    %2203 = vsyncpa [#allocation15], 1
    %2204 = vsyncpa [#allocation18], 1
    %2205 = vsyncpa [#allocation10], 1
  %2206 = vsyncmov [#allocation7]
  %s2207 = vpop.sfrf %2206
  %p2208 = scmp.eq.s32.totalorder %s2207, 0
  %p2209 = pneg %p2208
  %2211 = shalt.err (%p2209)
  %s2212 = scalar_lea.sflag [#allocation7], 1
  %2213 = vsyncmov %s2212
  %s2214 = vpop.sfrf %2213
  %p2215 = scmp.eq.s32.totalorder %s2214, 0
  %p2216 = pneg %p2215
  %2218 = shalt.err (%p2216)
  %s2219 = scalar_lea.sflag [#allocation7], 2
  %2220 = vsyncmov %s2219
  %s2221 = vpop.sfrf %2220
  %p2222 = scmp.eq.s32.totalorder %s2221, 0
  %p2223 = pneg %p2222
  %2225 = shalt.err (%p2223)
  %s2226 = scalar_lea.sflag [#allocation7], 3
  %2227 = vsyncmov %s2226
  %s2228 = vpop.sfrf %2227
  %p2229 = scmp.eq.s32.totalorder %s2228, 0
  %p2230 = pneg %p2229
  %2232 = shalt.err (%p2230)
  %s2233 = scalar_lea.sflag [#allocation7], 4
  %2234 = vsyncmov %s2233
  %s2235 = vpop.sfrf %2234
  %p2236 = scmp.eq.s32.totalorder %s2235, 0
  %p2237 = pneg %p2236
  %2239 = shalt.err (%p2237)

</llo_original>
